<compile_context>
chip_gen: v6e
topology: v6e:2x2x1
jax: 0.10.0
libtpu: 0.0.40
codegen_flags: <defaults>
</compile_context>

<pallas_src>
import functools

import jax
import jax.numpy as jnp
from jax.experimental import pallas as pl
from jax.experimental.pallas import tpu as pltpu


LANES = 128  # TPU lane width: channel dims are padded to this so loads/stores
             # are lane-dense and every MXU contraction uses the full width.


# ----------------------------------------------------------------------------
# Fused kernel: 3x3 conv (pad=1, stride=1) + bias + ReLU + Gram matrix,
# one batch element per grid step.
# ----------------------------------------------------------------------------
def _conv3x3_relu_gram_kernel(x_ref, w_ref, b_ref, feat_ref, gram_ref,
                              xpad_ref, *, gram_scale, row_block):
    # x_ref:    (1, H, W, Cp)   f32  (channels pre-padded to Cp = 128)
    # w_ref:    (9, Cp, Cp)     bf16 (tap-major reshaped conv weights)
    # b_ref:    (1, Cp)         f32
    # feat_ref: (1, H, W, Cp)   f32  conv+ReLU output (lane-dense store)
    # gram_ref: (1, Cp, Cp)     f32  Gram matrix of the output feature map
    # xpad_ref: (H+2, W+2, Cp)  f32  VMEM scratch: zero-padded input (halo)
    H, W, Cp = feat_ref.shape[1], feat_ref.shape[2], feat_ref.shape[3]
    HB = row_block

    # In-kernel halo: build the spatially zero-padded activation once in VMEM
    # (no wrapper-side jnp.pad => no extra padded copy round-tripped via HBM).
    xpad_ref[...] = jnp.zeros_like(xpad_ref)
    xpad_ref[1:H + 1, 1:W + 1, :] = x_ref[0]

    gram_acc = jnp.zeros((Cp, Cp), jnp.float32)

    # Row-band blocking bounds register pressure; each tap is a full-lane
    # (HB*W, Cp) x (Cp, Cp) bf16 MXU contraction accumulated in f32.
    for h0 in range(0, H, HB):
        acc = jnp.zeros((HB * W, Cp), jnp.float32)
        for kh in range(3):
            for kw in range(3):
                patch = xpad_ref[h0 + kh:h0 + kh + HB, kw:kw + W, :]
                patch = patch.astype(jnp.bfloat16).reshape(HB * W, Cp)
                acc = acc + jnp.dot(patch, w_ref[kh * 3 + kw],
                                    preferred_element_type=jnp.float32)
        act = jnp.maximum(acc + b_ref[...], 0.0)        # bias + ReLU, f32 VPU
        feat_ref[0, h0:h0 + HB, :, :] = (
            act.reshape(HB, W, Cp).astype(feat_ref.dtype))
        # Fused Gram epilogue: accumulate f^T f on the MXU while the feature
        # band is still on-chip (no second pallas_call / HBM re-read).
        gram_acc = gram_acc + jnp.dot(
            act.T.astype(jnp.bfloat16), act.astype(jnp.bfloat16),
            preferred_element_type=jnp.float32)

    gram_ref[0] = (gram_acc * gram_scale).astype(gram_ref.dtype)


def conv3x3_relu_gram(x_nhwc, w9, b2, true_cout):
    """x_nhwc: (N,H,W,128) f32 channel-padded; w9: (9,128,128) bf16;
    b2: (1,128) f32.  Returns (features (N,H,W,128) f32, gram (N,128,128) f32).
    Gram is normalized by 1/(true_cout * H * W), matching G = f f^T / (C*H*W).
    """
    N, H, W, Cp = x_nhwc.shape
    assert Cp == LANES
    row_block = 8 if H % 8 == 0 else H

    kernel = functools.partial(
        _conv3x3_relu_gram_kernel,
        gram_scale=1.0 / float(true_cout * H * W),
        row_block=row_block)

    return pl.pallas_call(
        kernel,
        out_shape=(jax.ShapeDtypeStruct((N, H, W, Cp), jnp.float32),
                   jax.ShapeDtypeStruct((N, Cp, Cp), jnp.float32)),
        grid_spec=pltpu.PrefetchScalarGridSpec(
            num_scalar_prefetch=0,
            grid=(N,),
            in_specs=[
                pl.BlockSpec((1, H, W, Cp), lambda n: (n, 0, 0, 0)),
                pl.BlockSpec((9, Cp, Cp), lambda n: (0, 0, 0)),
                pl.BlockSpec((1, Cp), lambda n: (0, 0)),
            ],
            out_specs=[
                pl.BlockSpec((1, H, W, Cp), lambda n: (n, 0, 0, 0)),
                pl.BlockSpec((1, Cp, Cp), lambda n: (n, 0, 0)),
            ],
            scratch_shapes=[pltpu.VMEM((H + 2, W + 2, Cp), jnp.float32)],
        ),
        compiler_params=pltpu.CompilerParams(
            dimension_semantics=("parallel",),
            vmem_limit_bytes=32 * 1024 * 1024,
        ),
    )(x_nhwc, w9, b2)


# ----------------------------------------------------------------------------
# BaseArch equivalent: forward(x) -> (content_features, style_features)
# ----------------------------------------------------------------------------
class BaseArchPallas:
    """Concrete feature extractor matching BaseArch.forward semantics.

    forward(x: NCHW f32) -> (content_features, style_features)
      content_features: list of conv+ReLU feature maps, NCHW (PyTorch layout)
      style_features:   list of Gram matrices, (N, C, C)
    """

    def __init__(self, in_channels=4, hidden=(8, 16), seed=0):
        key = jax.random.PRNGKey(seed)
        self.hidden = tuple(hidden)
        self.weights = []   # (9, LANES, LANES) bf16, zero-padded taps
        self.biases = []    # (1, LANES) f32, zero-padded
        cin = in_channels
        for cout in hidden:
            key, kw_key, kb_key = jax.random.split(key, 3)
            w = jax.random.normal(kw_key, (3, 3, cin, cout), jnp.float32) * 0.1
            b = jax.random.normal(kb_key, (cout,), jnp.float32) * 0.01
            # Pad channels to the 128-lane pipeline width; padded channels get
            # zero weights/bias so their activations are exactly zero.
            wp = jnp.zeros((3, 3, LANES, LANES), jnp.float32)
            wp = wp.at[:, :, :cin, :cout].set(w)
            self.weights.append(
                wp.reshape(9, LANES, LANES).astype(jnp.bfloat16))
            bp = jnp.zeros((LANES,), jnp.float32).at[:cout].set(b)
            self.biases.append(bp.reshape(1, LANES))
            cin = cout

    def extract_features(self, x_nchw):
        n, c, h, w = x_nchw.shape
        # NCHW -> NHWC plus a one-time channel pad of the network input (glue).
        feat = jnp.transpose(x_nchw, (0, 2, 3, 1))
        feat = jnp.pad(feat, ((0, 0), (0, 0), (0, 0), (0, LANES - c)))
        content, style = [], []
        for w9, b2, cout in zip(self.weights, self.biases, self.hidden):
            feat, gram = conv3x3_relu_gram(feat, w9, b2, cout)
            # Padded channels are identically zero; slice them off for outputs.
            content.append(jnp.transpose(feat[..., :cout], (0, 3, 1, 2)))
            style.append(gram[:, :cout, :cout])
        return content, style

    def forward(self, x_nchw):
        return self.extract_features(x_nchw)

    __call__ = forward


if __name__ == "__main__":
    key = jax.random.PRNGKey(0)
    x = jax.random.normal(key, (2, 4, 16, 16), jnp.float32)   # NCHW like PyTorch

    model = BaseArchPallas(in_channels=4, hidden=(8, 16), seed=0)
    content_feats, style_feats = model(x)

    for t in content_feats + style_feats:
        jax.block_until_ready(t)

    # light sanity checks
    assert content_feats[0].shape == (2, 8, 16, 16)
    assert content_feats[1].shape == (2, 16, 16, 16)
    assert style_feats[0].shape == (2, 8, 8)
    assert style_feats[1].shape == (2, 16, 16)
    assert all(bool(jnp.all(jnp.isfinite(t))) for t in content_feats + style_feats)

    print("KERNEL_OK")
</pallas_src>

<mosaic_0001>
module attributes {stable_mosaic.version = 11 : i64} {
  func.func @_conv3x3_relu_gram_kernel(%arg0: i32, %arg1: memref<1x16x16x128xf32, #tpu.memory_space<vmem>>, %arg2: memref<9x128x128xbf16, #tpu.memory_space<vmem>>, %arg3: memref<1x128xf32, #tpu.memory_space<vmem>>, %arg4: memref<1x16x16x128xf32, #tpu.memory_space<vmem>>, %arg5: memref<1x128x128xf32, #tpu.memory_space<vmem>>, %arg6: memref<18x18x128xf32, #tpu.memory_space<vmem>>) attributes {dimension_semantics = [#tpu.dimension_semantics<parallel>], iteration_bounds = array<i64: 2>, scalar_prefetch = 0 : i64, scratch_operands = 1 : i64, tpu.core_type = #tpu.core_type<tc>, window_params = [{transform_indices = @transform_0, window_bounds = array<i64: 1, 16, 16, 128>}, {pipeline_mode = #tpu.pipeline_mode<synchronous>, transform_indices = @transform_1, window_bounds = array<i64: 9, 128, 128>}, {pipeline_mode = #tpu.pipeline_mode<synchronous>, transform_indices = @transform_2, window_bounds = array<i64: 1, 128>}, {transform_indices = @transform_3, window_bounds = array<i64: 1, 16, 16, 128>}, {transform_indices = @transform_4, window_bounds = array<i64: 1, 128, 128>}]} {
    %cst = arith.constant 0.000000e+00 : f32
    %0 = vector.broadcast %cst : f32 to vector<18x18x128xf32>
    %c0 = arith.constant 0 : index
    %c0_0 = arith.constant 0 : index
    %c0_1 = arith.constant 0 : index
    %1 = vector.load %arg6[%c0, %c0_0, %c0_1] : memref<18x18x128xf32, #tpu.memory_space<vmem>>, vector<18x18x128xf32>
    tpu.vector_store %arg6[%c0, %c0_0, %c0_1], %0 {strides = array<i32>} : memref<18x18x128xf32, #tpu.memory_space<vmem>>, vector<18x18x128xf32>,
    %c0_2 = arith.constant 0 : index
    %c0_3 = arith.constant 0 : index
    %c0_4 = arith.constant 0 : index
    %c0_5 = arith.constant 0 : index
    %2 = vector.load %arg1[%c0_2, %c0_3, %c0_4, %c0_5] : memref<1x16x16x128xf32, #tpu.memory_space<vmem>>, vector<1x16x16x128xf32>
    %3 = vector.shape_cast %2 : vector<1x16x16x128xf32> to vector<16x16x128xf32>
    %c1 = arith.constant 1 : index
    %c1_6 = arith.constant 1 : index
    %c0_7 = arith.constant 0 : index
    %4 = vector.load %arg6[%c1, %c1_6, %c0_7] : memref<18x18x128xf32, #tpu.memory_space<vmem>>, vector<16x16x128xf32>
    tpu.vector_store %arg6[%c1, %c1_6, %c0_7], %3 {strides = array<i32>} : memref<18x18x128xf32, #tpu.memory_space<vmem>>, vector<16x16x128xf32>,
    %cst_8 = arith.constant 0.000000e+00 : f32
    %5 = vector.broadcast %cst_8 : f32 to vector<128x128xf32>
    %cst_9 = arith.constant 0.000000e+00 : f32
    %6 = vector.broadcast %cst_9 : f32 to vector<128x128xf32>
    %c0_10 = arith.constant 0 : index
    %c0_11 = arith.constant 0 : index
    %c0_12 = arith.constant 0 : index
    %7 = vector.load %arg6[%c0_10, %c0_11, %c0_12] : memref<18x18x128xf32, #tpu.memory_space<vmem>>, vector<8x16x128xf32>
    %8 = arith.truncf %7 : vector<8x16x128xf32> to vector<8x16x128xbf16>
    %9 = vector.shape_cast %8 : vector<8x16x128xbf16> to vector<128x128xbf16>
    %c0_13 = arith.constant 0 : index
    %c0_14 = arith.constant 0 : index
    %c0_15 = arith.constant 0 : index
    %10 = vector.load %arg2[%c0_13, %c0_14, %c0_15] : memref<9x128x128xbf16, #tpu.memory_space<vmem>>, vector<1x128x128xbf16>
    %11 = vector.shape_cast %10 : vector<1x128x128xbf16> to vector<128x128xbf16>
    %cst_16 = arith.constant dense<0.000000e+00> : vector<128x128xf32>
    %12 = tpu.matmul %9, %11, %cst_16 {dimension_numbers = #tpu.dot_dimension_numbers<[1], [0], [0], [1], [0, 0, 1, 1], [], []>} : vector<128x128xbf16>, vector<128x128xbf16>, vector<128x128xf32> -> vector<128x128xf32>
    %13 = arith.addf %6, %12 : vector<128x128xf32>
    %c0_17 = arith.constant 0 : index
    %c1_18 = arith.constant 1 : index
    %c0_19 = arith.constant 0 : index
    %14 = vector.load %arg6[%c0_17, %c1_18, %c0_19] : memref<18x18x128xf32, #tpu.memory_space<vmem>>, vector<8x16x128xf32>
    %15 = arith.truncf %14 : vector<8x16x128xf32> to vector<8x16x128xbf16>
    %16 = vector.shape_cast %15 : vector<8x16x128xbf16> to vector<128x128xbf16>
    %c1_20 = arith.constant 1 : index
    %c0_21 = arith.constant 0 : index
    %c0_22 = arith.constant 0 : index
    %17 = vector.load %arg2[%c1_20, %c0_21, %c0_22] : memref<9x128x128xbf16, #tpu.memory_space<vmem>>, vector<1x128x128xbf16>
    %18 = vector.shape_cast %17 : vector<1x128x128xbf16> to vector<128x128xbf16>
    %cst_23 = arith.constant dense<0.000000e+00> : vector<128x128xf32>
    %19 = tpu.matmul %16, %18, %cst_23 {dimension_numbers = #tpu.dot_dimension_numbers<[1], [0], [0], [1], [0, 0, 1, 1], [], []>} : vector<128x128xbf16>, vector<128x128xbf16>, vector<128x128xf32> -> vector<128x128xf32>
    %20 = arith.addf %13, %19 : vector<128x128xf32>
    %c0_24 = arith.constant 0 : index
    %c2 = arith.constant 2 : index
    %c0_25 = arith.constant 0 : index
    %21 = vector.load %arg6[%c0_24, %c2, %c0_25] : memref<18x18x128xf32, #tpu.memory_space<vmem>>, vector<8x16x128xf32>
    %22 = arith.truncf %21 : vector<8x16x128xf32> to vector<8x16x128xbf16>
    %23 = vector.shape_cast %22 : vector<8x16x128xbf16> to vector<128x128xbf16>
    %c2_26 = arith.constant 2 : index
    %c0_27 = arith.constant 0 : index
    %c0_28 = arith.constant 0 : index
    %24 = vector.load %arg2[%c2_26, %c0_27, %c0_28] : memref<9x128x128xbf16, #tpu.memory_space<vmem>>, vector<1x128x128xbf16>
    %25 = vector.shape_cast %24 : vector<1x128x128xbf16> to vector<128x128xbf16>
    %cst_29 = arith.constant dense<0.000000e+00> : vector<128x128xf32>
    %26 = tpu.matmul %23, %25, %cst_29 {dimension_numbers = #tpu.dot_dimension_numbers<[1], [0], [0], [1], [0, 0, 1, 1], [], []>} : vector<128x128xbf16>, vector<128x128xbf16>, vector<128x128xf32> -> vector<128x128xf32>
    %27 = arith.addf %20, %26 : vector<128x128xf32>
    %c1_30 = arith.constant 1 : index
    %c0_31 = arith.constant 0 : index
    %c0_32 = arith.constant 0 : index
    %28 = vector.load %arg6[%c1_30, %c0_31, %c0_32] : memref<18x18x128xf32, #tpu.memory_space<vmem>>, vector<8x16x128xf32>
    %29 = arith.truncf %28 : vector<8x16x128xf32> to vector<8x16x128xbf16>
    %30 = vector.shape_cast %29 : vector<8x16x128xbf16> to vector<128x128xbf16>
    %c3 = arith.constant 3 : index
    %c0_33 = arith.constant 0 : index
    %c0_34 = arith.constant 0 : index
    %31 = vector.load %arg2[%c3, %c0_33, %c0_34] : memref<9x128x128xbf16, #tpu.memory_space<vmem>>, vector<1x128x128xbf16>
    %32 = vector.shape_cast %31 : vector<1x128x128xbf16> to vector<128x128xbf16>
    %cst_35 = arith.constant dense<0.000000e+00> : vector<128x128xf32>
    %33 = tpu.matmul %30, %32, %cst_35 {dimension_numbers = #tpu.dot_dimension_numbers<[1], [0], [0], [1], [0, 0, 1, 1], [], []>} : vector<128x128xbf16>, vector<128x128xbf16>, vector<128x128xf32> -> vector<128x128xf32>
    %34 = arith.addf %27, %33 : vector<128x128xf32>
    %c1_36 = arith.constant 1 : index
    %c1_37 = arith.constant 1 : index
    %c0_38 = arith.constant 0 : index
    %35 = vector.load %arg6[%c1_36, %c1_37, %c0_38] : memref<18x18x128xf32, #tpu.memory_space<vmem>>, vector<8x16x128xf32>
    %36 = arith.truncf %35 : vector<8x16x128xf32> to vector<8x16x128xbf16>
    %37 = vector.shape_cast %36 : vector<8x16x128xbf16> to vector<128x128xbf16>
    %c4 = arith.constant 4 : index
    %c0_39 = arith.constant 0 : index
    %c0_40 = arith.constant 0 : index
    %38 = vector.load %arg2[%c4, %c0_39, %c0_40] : memref<9x128x128xbf16, #tpu.memory_space<vmem>>, vector<1x128x128xbf16>
    %39 = vector.shape_cast %38 : vector<1x128x128xbf16> to vector<128x128xbf16>
    %cst_41 = arith.constant dense<0.000000e+00> : vector<128x128xf32>
    %40 = tpu.matmul %37, %39, %cst_41 {dimension_numbers = #tpu.dot_dimension_numbers<[1], [0], [0], [1], [0, 0, 1, 1], [], []>} : vector<128x128xbf16>, vector<128x128xbf16>, vector<128x128xf32> -> vector<128x128xf32>
    %41 = arith.addf %34, %40 : vector<128x128xf32>
    %c1_42 = arith.constant 1 : index
    %c2_43 = arith.constant 2 : index
    %c0_44 = arith.constant 0 : index
    %42 = vector.load %arg6[%c1_42, %c2_43, %c0_44] : memref<18x18x128xf32, #tpu.memory_space<vmem>>, vector<8x16x128xf32>
    %43 = arith.truncf %42 : vector<8x16x128xf32> to vector<8x16x128xbf16>
    %44 = vector.shape_cast %43 : vector<8x16x128xbf16> to vector<128x128xbf16>
    %c5 = arith.constant 5 : index
    %c0_45 = arith.constant 0 : index
    %c0_46 = arith.constant 0 : index
    %45 = vector.load %arg2[%c5, %c0_45, %c0_46] : memref<9x128x128xbf16, #tpu.memory_space<vmem>>, vector<1x128x128xbf16>
    %46 = vector.shape_cast %45 : vector<1x128x128xbf16> to vector<128x128xbf16>
    %cst_47 = arith.constant dense<0.000000e+00> : vector<128x128xf32>
    %47 = tpu.matmul %44, %46, %cst_47 {dimension_numbers = #tpu.dot_dimension_numbers<[1], [0], [0], [1], [0, 0, 1, 1], [], []>} : vector<128x128xbf16>, vector<128x128xbf16>, vector<128x128xf32> -> vector<128x128xf32>
    %48 = arith.addf %41, %47 : vector<128x128xf32>
    %c2_48 = arith.constant 2 : index
    %c0_49 = arith.constant 0 : index
    %c0_50 = arith.constant 0 : index
    %49 = vector.load %arg6[%c2_48, %c0_49, %c0_50] : memref<18x18x128xf32, #tpu.memory_space<vmem>>, vector<8x16x128xf32>
    %50 = arith.truncf %49 : vector<8x16x128xf32> to vector<8x16x128xbf16>
    %51 = vector.shape_cast %50 : vector<8x16x128xbf16> to vector<128x128xbf16>
    %c6 = arith.constant 6 : index
    %c0_51 = arith.constant 0 : index
    %c0_52 = arith.constant 0 : index
    %52 = vector.load %arg2[%c6, %c0_51, %c0_52] : memref<9x128x128xbf16, #tpu.memory_space<vmem>>, vector<1x128x128xbf16>
    %53 = vector.shape_cast %52 : vector<1x128x128xbf16> to vector<128x128xbf16>
    %cst_53 = arith.constant dense<0.000000e+00> : vector<128x128xf32>
    %54 = tpu.matmul %51, %53, %cst_53 {dimension_numbers = #tpu.dot_dimension_numbers<[1], [0], [0], [1], [0, 0, 1, 1], [], []>} : vector<128x128xbf16>, vector<128x128xbf16>, vector<128x128xf32> -> vector<128x128xf32>
    %55 = arith.addf %48, %54 : vector<128x128xf32>
    %c2_54 = arith.constant 2 : index
    %c1_55 = arith.constant 1 : index
    %c0_56 = arith.constant 0 : index
    %56 = vector.load %arg6[%c2_54, %c1_55, %c0_56] : memref<18x18x128xf32, #tpu.memory_space<vmem>>, vector<8x16x128xf32>
    %57 = arith.truncf %56 : vector<8x16x128xf32> to vector<8x16x128xbf16>
    %58 = vector.shape_cast %57 : vector<8x16x128xbf16> to vector<128x128xbf16>
    %c7 = arith.constant 7 : index
    %c0_57 = arith.constant 0 : index
    %c0_58 = arith.constant 0 : index
    %59 = vector.load %arg2[%c7, %c0_57, %c0_58] : memref<9x128x128xbf16, #tpu.memory_space<vmem>>, vector<1x128x128xbf16>
    %60 = vector.shape_cast %59 : vector<1x128x128xbf16> to vector<128x128xbf16>
    %cst_59 = arith.constant dense<0.000000e+00> : vector<128x128xf32>
    %61 = tpu.matmul %58, %60, %cst_59 {dimension_numbers = #tpu.dot_dimension_numbers<[1], [0], [0], [1], [0, 0, 1, 1], [], []>} : vector<128x128xbf16>, vector<128x128xbf16>, vector<128x128xf32> -> vector<128x128xf32>
    %62 = arith.addf %55, %61 : vector<128x128xf32>
    %c2_60 = arith.constant 2 : index
    %c2_61 = arith.constant 2 : index
    %c0_62 = arith.constant 0 : index
    %63 = vector.load %arg6[%c2_60, %c2_61, %c0_62] : memref<18x18x128xf32, #tpu.memory_space<vmem>>, vector<8x16x128xf32>
    %64 = arith.truncf %63 : vector<8x16x128xf32> to vector<8x16x128xbf16>
    %65 = vector.shape_cast %64 : vector<8x16x128xbf16> to vector<128x128xbf16>
    %c8 = arith.constant 8 : index
    %c0_63 = arith.constant 0 : index
    %c0_64 = arith.constant 0 : index
    %66 = vector.load %arg2[%c8, %c0_63, %c0_64] : memref<9x128x128xbf16, #tpu.memory_space<vmem>>, vector<1x128x128xbf16>
    %67 = vector.shape_cast %66 : vector<1x128x128xbf16> to vector<128x128xbf16>
    %cst_65 = arith.constant dense<0.000000e+00> : vector<128x128xf32>
    %68 = tpu.matmul %65, %67, %cst_65 {dimension_numbers = #tpu.dot_dimension_numbers<[1], [0], [0], [1], [0, 0, 1, 1], [], []>} : vector<128x128xbf16>, vector<128x128xbf16>, vector<128x128xf32> -> vector<128x128xf32>
    %69 = arith.addf %62, %68 : vector<128x128xf32>
    %c0_66 = arith.constant 0 : index
    %c0_67 = arith.constant 0 : index
    %70 = vector.load %arg3[%c0_66, %c0_67] : memref<1x128xf32, #tpu.memory_space<vmem>>, vector<1x128xf32>
    %71 = vector.broadcast %70 : vector<1x128xf32> to vector<128x128xf32>
    %72 = arith.addf %69, %71 : vector<128x128xf32>
    %cst_68 = arith.constant 0.000000e+00 : f32
    %73 = vector.broadcast %cst_68 : f32 to vector<128x128xf32>
    %74 = arith.maximumf %72, %73 : vector<128x128xf32>
    %75 = vector.shape_cast %74 : vector<128x128xf32> to vector<8x16x128xf32>
    %c0_69 = arith.constant 0 : index
    %c0_70 = arith.constant 0 : index
    %c0_71 = arith.constant 0 : index
    %c0_72 = arith.constant 0 : index
    %76 = vector.load %arg4[%c0_69, %c0_70, %c0_71, %c0_72] : memref<1x16x16x128xf32, #tpu.memory_space<vmem>>, vector<1x8x16x128xf32>
    %77 = vector.shape_cast %76 : vector<1x8x16x128xf32> to vector<8x16x128xf32>
    %78 = vector.shape_cast %75 : vector<8x16x128xf32> to vector<1x8x16x128xf32>
    tpu.vector_store %arg4[%c0_69, %c0_70, %c0_71, %c0_72], %78 {strides = array<i32>} : memref<1x16x16x128xf32, #tpu.memory_space<vmem>>, vector<1x8x16x128xf32>,
    %79 = tpu.transpose %74, [1, 0] : vector<128x128xf32> -> vector<128x128xf32>
    %80 = arith.truncf %79 : vector<128x128xf32> to vector<128x128xbf16>
    %81 = arith.truncf %74 : vector<128x128xf32> to vector<128x128xbf16>
    %cst_73 = arith.constant dense<0.000000e+00> : vector<128x128xf32>
    %82 = tpu.matmul %80, %81, %cst_73 {dimension_numbers = #tpu.dot_dimension_numbers<[1], [0], [0], [1], [0, 0, 1, 1], [], []>} : vector<128x128xbf16>, vector<128x128xbf16>, vector<128x128xf32> -> vector<128x128xf32>
    %83 = arith.addf %5, %82 : vector<128x128xf32>
    %cst_74 = arith.constant 0.000000e+00 : f32
    %84 = vector.broadcast %cst_74 : f32 to vector<128x128xf32>
    %c8_75 = arith.constant 8 : index
    %c0_76 = arith.constant 0 : index
    %c0_77 = arith.constant 0 : index
    %85 = vector.load %arg6[%c8_75, %c0_76, %c0_77] : memref<18x18x128xf32, #tpu.memory_space<vmem>>, vector<8x16x128xf32>
    %86 = arith.truncf %85 : vector<8x16x128xf32> to vector<8x16x128xbf16>
    %87 = vector.shape_cast %86 : vector<8x16x128xbf16> to vector<128x128xbf16>
    %c0_78 = arith.constant 0 : index
    %c0_79 = arith.constant 0 : index
    %c0_80 = arith.constant 0 : index
    %88 = vector.load %arg2[%c0_78, %c0_79, %c0_80] : memref<9x128x128xbf16, #tpu.memory_space<vmem>>, vector<1x128x128xbf16>
    %89 = vector.shape_cast %88 : vector<1x128x128xbf16> to vector<128x128xbf16>
    %cst_81 = arith.constant dense<0.000000e+00> : vector<128x128xf32>
    %90 = tpu.matmul %87, %89, %cst_81 {dimension_numbers = #tpu.dot_dimension_numbers<[1], [0], [0], [1], [0, 0, 1, 1], [], []>} : vector<128x128xbf16>, vector<128x128xbf16>, vector<128x128xf32> -> vector<128x128xf32>
    %91 = arith.addf %84, %90 : vector<128x128xf32>
    %c8_82 = arith.constant 8 : index
    %c1_83 = arith.constant 1 : index
    %c0_84 = arith.constant 0 : index
    %92 = vector.load %arg6[%c8_82, %c1_83, %c0_84] : memref<18x18x128xf32, #tpu.memory_space<vmem>>, vector<8x16x128xf32>
    %93 = arith.truncf %92 : vector<8x16x128xf32> to vector<8x16x128xbf16>
    %94 = vector.shape_cast %93 : vector<8x16x128xbf16> to vector<128x128xbf16>
    %c1_85 = arith.constant 1 : index
    %c0_86 = arith.constant 0 : index
    %c0_87 = arith.constant 0 : index
    %95 = vector.load %arg2[%c1_85, %c0_86, %c0_87] : memref<9x128x128xbf16, #tpu.memory_space<vmem>>, vector<1x128x128xbf16>
    %96 = vector.shape_cast %95 : vector<1x128x128xbf16> to vector<128x128xbf16>
    %cst_88 = arith.constant dense<0.000000e+00> : vector<128x128xf32>
    %97 = tpu.matmul %94, %96, %cst_88 {dimension_numbers = #tpu.dot_dimension_numbers<[1], [0], [0], [1], [0, 0, 1, 1], [], []>} : vector<128x128xbf16>, vector<128x128xbf16>, vector<128x128xf32> -> vector<128x128xf32>
    %98 = arith.addf %91, %97 : vector<128x128xf32>
    %c8_89 = arith.constant 8 : index
    %c2_90 = arith.constant 2 : index
    %c0_91 = arith.constant 0 : index
    %99 = vector.load %arg6[%c8_89, %c2_90, %c0_91] : memref<18x18x128xf32, #tpu.memory_space<vmem>>, vector<8x16x128xf32>
    %100 = arith.truncf %99 : vector<8x16x128xf32> to vector<8x16x128xbf16>
    %101 = vector.shape_cast %100 : vector<8x16x128xbf16> to vector<128x128xbf16>
    %c2_92 = arith.constant 2 : index
    %c0_93 = arith.constant 0 : index
    %c0_94 = arith.constant 0 : index
    %102 = vector.load %arg2[%c2_92, %c0_93, %c0_94] : memref<9x128x128xbf16, #tpu.memory_space<vmem>>, vector<1x128x128xbf16>
    %103 = vector.shape_cast %102 : vector<1x128x128xbf16> to vector<128x128xbf16>
    %cst_95 = arith.constant dense<0.000000e+00> : vector<128x128xf32>
    %104 = tpu.matmul %101, %103, %cst_95 {dimension_numbers = #tpu.dot_dimension_numbers<[1], [0], [0], [1], [0, 0, 1, 1], [], []>} : vector<128x128xbf16>, vector<128x128xbf16>, vector<128x128xf32> -> vector<128x128xf32>
    %105 = arith.addf %98, %104 : vector<128x128xf32>
    %c9 = arith.constant 9 : index
    %c0_96 = arith.constant 0 : index
    %c0_97 = arith.constant 0 : index
    %106 = vector.load %arg6[%c9, %c0_96, %c0_97] : memref<18x18x128xf32, #tpu.memory_space<vmem>>, vector<8x16x128xf32>
    %107 = arith.truncf %106 : vector<8x16x128xf32> to vector<8x16x128xbf16>
    %108 = vector.shape_cast %107 : vector<8x16x128xbf16> to vector<128x128xbf16>
    %c3_98 = arith.constant 3 : index
    %c0_99 = arith.constant 0 : index
    %c0_100 = arith.constant 0 : index
    %109 = vector.load %arg2[%c3_98, %c0_99, %c0_100] : memref<9x128x128xbf16, #tpu.memory_space<vmem>>, vector<1x128x128xbf16>
    %110 = vector.shape_cast %109 : vector<1x128x128xbf16> to vector<128x128xbf16>
    %cst_101 = arith.constant dense<0.000000e+00> : vector<128x128xf32>
    %111 = tpu.matmul %108, %110, %cst_101 {dimension_numbers = #tpu.dot_dimension_numbers<[1], [0], [0], [1], [0, 0, 1, 1], [], []>} : vector<128x128xbf16>, vector<128x128xbf16>, vector<128x128xf32> -> vector<128x128xf32>
    %112 = arith.addf %105, %111 : vector<128x128xf32>
    %c9_102 = arith.constant 9 : index
    %c1_103 = arith.constant 1 : index
    %c0_104 = arith.constant 0 : index
    %113 = vector.load %arg6[%c9_102, %c1_103, %c0_104] : memref<18x18x128xf32, #tpu.memory_space<vmem>>, vector<8x16x128xf32>
    %114 = arith.truncf %113 : vector<8x16x128xf32> to vector<8x16x128xbf16>
    %115 = vector.shape_cast %114 : vector<8x16x128xbf16> to vector<128x128xbf16>
    %c4_105 = arith.constant 4 : index
    %c0_106 = arith.constant 0 : index
    %c0_107 = arith.constant 0 : index
    %116 = vector.load %arg2[%c4_105, %c0_106, %c0_107] : memref<9x128x128xbf16, #tpu.memory_space<vmem>>, vector<1x128x128xbf16>
    %117 = vector.shape_cast %116 : vector<1x128x128xbf16> to vector<128x128xbf16>
    %cst_108 = arith.constant dense<0.000000e+00> : vector<128x128xf32>
    %118 = tpu.matmul %115, %117, %cst_108 {dimension_numbers = #tpu.dot_dimension_numbers<[1], [0], [0], [1], [0, 0, 1, 1], [], []>} : vector<128x128xbf16>, vector<128x128xbf16>, vector<128x128xf32> -> vector<128x128xf32>
    %119 = arith.addf %112, %118 : vector<128x128xf32>
    %c9_109 = arith.constant 9 : index
    %c2_110 = arith.constant 2 : index
    %c0_111 = arith.constant 0 : index
    %120 = vector.load %arg6[%c9_109, %c2_110, %c0_111] : memref<18x18x128xf32, #tpu.memory_space<vmem>>, vector<8x16x128xf32>
    %121 = arith.truncf %120 : vector<8x16x128xf32> to vector<8x16x128xbf16>
    %122 = vector.shape_cast %121 : vector<8x16x128xbf16> to vector<128x128xbf16>
    %c5_112 = arith.constant 5 : index
    %c0_113 = arith.constant 0 : index
    %c0_114 = arith.constant 0 : index
    %123 = vector.load %arg2[%c5_112, %c0_113, %c0_114] : memref<9x128x128xbf16, #tpu.memory_space<vmem>>, vector<1x128x128xbf16>
    %124 = vector.shape_cast %123 : vector<1x128x128xbf16> to vector<128x128xbf16>
    %cst_115 = arith.constant dense<0.000000e+00> : vector<128x128xf32>
    %125 = tpu.matmul %122, %124, %cst_115 {dimension_numbers = #tpu.dot_dimension_numbers<[1], [0], [0], [1], [0, 0, 1, 1], [], []>} : vector<128x128xbf16>, vector<128x128xbf16>, vector<128x128xf32> -> vector<128x128xf32>
    %126 = arith.addf %119, %125 : vector<128x128xf32>
    %c10 = arith.constant 10 : index
    %c0_116 = arith.constant 0 : index
    %c0_117 = arith.constant 0 : index
    %127 = vector.load %arg6[%c10, %c0_116, %c0_117] : memref<18x18x128xf32, #tpu.memory_space<vmem>>, vector<8x16x128xf32>
    %128 = arith.truncf %127 : vector<8x16x128xf32> to vector<8x16x128xbf16>
    %129 = vector.shape_cast %128 : vector<8x16x128xbf16> to vector<128x128xbf16>
    %c6_118 = arith.constant 6 : index
    %c0_119 = arith.constant 0 : index
    %c0_120 = arith.constant 0 : index
    %130 = vector.load %arg2[%c6_118, %c0_119, %c0_120] : memref<9x128x128xbf16, #tpu.memory_space<vmem>>, vector<1x128x128xbf16>
    %131 = vector.shape_cast %130 : vector<1x128x128xbf16> to vector<128x128xbf16>
    %cst_121 = arith.constant dense<0.000000e+00> : vector<128x128xf32>
    %132 = tpu.matmul %129, %131, %cst_121 {dimension_numbers = #tpu.dot_dimension_numbers<[1], [0], [0], [1], [0, 0, 1, 1], [], []>} : vector<128x128xbf16>, vector<128x128xbf16>, vector<128x128xf32> -> vector<128x128xf32>
    %133 = arith.addf %126, %132 : vector<128x128xf32>
    %c10_122 = arith.constant 10 : index
    %c1_123 = arith.constant 1 : index
    %c0_124 = arith.constant 0 : index
    %134 = vector.load %arg6[%c10_122, %c1_123, %c0_124] : memref<18x18x128xf32, #tpu.memory_space<vmem>>, vector<8x16x128xf32>
    %135 = arith.truncf %134 : vector<8x16x128xf32> to vector<8x16x128xbf16>
    %136 = vector.shape_cast %135 : vector<8x16x128xbf16> to vector<128x128xbf16>
    %c7_125 = arith.constant 7 : index
    %c0_126 = arith.constant 0 : index
    %c0_127 = arith.constant 0 : index
    %137 = vector.load %arg2[%c7_125, %c0_126, %c0_127] : memref<9x128x128xbf16, #tpu.memory_space<vmem>>, vector<1x128x128xbf16>
    %138 = vector.shape_cast %137 : vector<1x128x128xbf16> to vector<128x128xbf16>
    %cst_128 = arith.constant dense<0.000000e+00> : vector<128x128xf32>
    %139 = tpu.matmul %136, %138, %cst_128 {dimension_numbers = #tpu.dot_dimension_numbers<[1], [0], [0], [1], [0, 0, 1, 1], [], []>} : vector<128x128xbf16>, vector<128x128xbf16>, vector<128x128xf32> -> vector<128x128xf32>
    %140 = arith.addf %133, %139 : vector<128x128xf32>
    %c10_129 = arith.constant 10 : index
    %c2_130 = arith.constant 2 : index
    %c0_131 = arith.constant 0 : index
    %141 = vector.load %arg6[%c10_129, %c2_130, %c0_131] : memref<18x18x128xf32, #tpu.memory_space<vmem>>, vector<8x16x128xf32>
    %142 = arith.truncf %141 : vector<8x16x128xf32> to vector<8x16x128xbf16>
    %143 = vector.shape_cast %142 : vector<8x16x128xbf16> to vector<128x128xbf16>
    %c8_132 = arith.constant 8 : index
    %c0_133 = arith.constant 0 : index
    %c0_134 = arith.constant 0 : index
    %144 = vector.load %arg2[%c8_132, %c0_133, %c0_134] : memref<9x128x128xbf16, #tpu.memory_space<vmem>>, vector<1x128x128xbf16>
    %145 = vector.shape_cast %144 : vector<1x128x128xbf16> to vector<128x128xbf16>
    %cst_135 = arith.constant dense<0.000000e+00> : vector<128x128xf32>
    %146 = tpu.matmul %143, %145, %cst_135 {dimension_numbers = #tpu.dot_dimension_numbers<[1], [0], [0], [1], [0, 0, 1, 1], [], []>} : vector<128x128xbf16>, vector<128x128xbf16>, vector<128x128xf32> -> vector<128x128xf32>
    %147 = arith.addf %140, %146 : vector<128x128xf32>
    %c0_136 = arith.constant 0 : index
    %c0_137 = arith.constant 0 : index
    %148 = vector.load %arg3[%c0_136, %c0_137] : memref<1x128xf32, #tpu.memory_space<vmem>>, vector<1x128xf32>
    %149 = vector.broadcast %148 : vector<1x128xf32> to vector<128x128xf32>
    %150 = arith.addf %147, %149 : vector<128x128xf32>
    %cst_138 = arith.constant 0.000000e+00 : f32
    %151 = vector.broadcast %cst_138 : f32 to vector<128x128xf32>
    %152 = arith.maximumf %150, %151 : vector<128x128xf32>
    %153 = vector.shape_cast %152 : vector<128x128xf32> to vector<8x16x128xf32>
    %c0_139 = arith.constant 0 : index
    %c8_140 = arith.constant 8 : index
    %c0_141 = arith.constant 0 : index
    %c0_142 = arith.constant 0 : index
    %154 = vector.load %arg4[%c0_139, %c8_140, %c0_141, %c0_142] : memref<1x16x16x128xf32, #tpu.memory_space<vmem>>, vector<1x8x16x128xf32>
    %155 = vector.shape_cast %154 : vector<1x8x16x128xf32> to vector<8x16x128xf32>
    %156 = vector.shape_cast %153 : vector<8x16x128xf32> to vector<1x8x16x128xf32>
    tpu.vector_store %arg4[%c0_139, %c8_140, %c0_141, %c0_142], %156 {strides = array<i32>} : memref<1x16x16x128xf32, #tpu.memory_space<vmem>>, vector<1x8x16x128xf32>,
    %157 = tpu.transpose %152, [1, 0] : vector<128x128xf32> -> vector<128x128xf32>
    %158 = arith.truncf %157 : vector<128x128xf32> to vector<128x128xbf16>
    %159 = arith.truncf %152 : vector<128x128xf32> to vector<128x128xbf16>
    %cst_143 = arith.constant dense<0.000000e+00> : vector<128x128xf32>
    %160 = tpu.matmul %158, %159, %cst_143 {dimension_numbers = #tpu.dot_dimension_numbers<[1], [0], [0], [1], [0, 0, 1, 1], [], []>} : vector<128x128xbf16>, vector<128x128xbf16>, vector<128x128xf32> -> vector<128x128xf32>
    %161 = arith.addf %83, %160 : vector<128x128xf32>
    %cst_144 = arith.constant 4.8828125E-4 : f32
    %162 = vector.broadcast %cst_144 : f32 to vector<128x128xf32>
    %163 = arith.mulf %161, %162 : vector<128x128xf32>
    %c0_145 = arith.constant 0 : index
    %c0_146 = arith.constant 0 : index
    %c0_147 = arith.constant 0 : index
    %164 = vector.load %arg5[%c0_145, %c0_146, %c0_147] : memref<1x128x128xf32, #tpu.memory_space<vmem>>, vector<1x128x128xf32>
    %165 = vector.shape_cast %164 : vector<1x128x128xf32> to vector<128x128xf32>
    %166 = vector.shape_cast %163 : vector<128x128xf32> to vector<1x128x128xf32>
    tpu.vector_store %arg5[%c0_145, %c0_146, %c0_147], %166 {strides = array<i32>} : memref<1x128x128xf32, #tpu.memory_space<vmem>>, vector<1x128x128xf32>,
    return
  }
  func.func @transform_0(%arg0: i32) -> (i32, i32, i32, i32) {
    %c0_i32 = arith.constant 0 : i32
    %c0_i32_0 = arith.constant 0 : i32
    %c0_i32_1 = arith.constant 0 : i32
    %c0_i32_2 = arith.constant 0 : i32
    return %arg0, %c0_i32, %c0_i32_0, %c0_i32_1 : i32, i32, i32, i32
  }
  func.func @transform_1(%arg0: i32) -> (i32, i32, i32) {
    %c0_i32 = arith.constant 0 : i32
    %c0_i32_0 = arith.constant 0 : i32
    %c0_i32_1 = arith.constant 0 : i32
    %c0_i32_2 = arith.constant 0 : i32
    return %c0_i32, %c0_i32_0, %c0_i32_1 : i32, i32, i32
  }
  func.func @transform_2(%arg0: i32) -> (i32, i32) {
    %c0_i32 = arith.constant 0 : i32
    %c0_i32_0 = arith.constant 0 : i32
    %c0_i32_1 = arith.constant 0 : i32
    return %c0_i32, %c0_i32_0 : i32, i32
  }
  func.func @transform_3(%arg0: i32) -> (i32, i32, i32, i32) {
    %c0_i32 = arith.constant 0 : i32
    %c0_i32_0 = arith.constant 0 : i32
    %c0_i32_1 = arith.constant 0 : i32
    %c0_i32_2 = arith.constant 0 : i32
    return %arg0, %c0_i32, %c0_i32_0, %c0_i32_1 : i32, i32, i32, i32
  }
  func.func @transform_4(%arg0: i32) -> (i32, i32, i32) {
    %c0_i32 = arith.constant 0 : i32
    %c0_i32_0 = arith.constant 0 : i32
    %c0_i32_1 = arith.constant 0 : i32
    return %arg0, %c0_i32, %c0_i32_0 : i32, i32, i32
  }
}

</mosaic_0001>

<llo_original>
// kernel: tpu_custom_call.1
$region0: #{tpu_custom_call.1}
  #allocation0 [shape = 'u32[]', space=smem, size = 0x4, offset = 0x4, fixed_abs, tag = 'smem constant byte address 0x4 - core index']
  #allocation1 [shape = 'u32[144,128]{1,0:T(1,128)}', space=vmem, size = 0x12000, scoped, tag = 'internal scratch']
  #allocation2 [shape = 'f32[18,18,128]{2,1,0:T(8,128)}', space=vmem, size = 0x36000, scoped, tag = 'scratch operand']
  %s0 = inlined_call_operand.hbm [shape: f32[2,16,16,128], index: 0, kind: input, shape index: {}]
  %s1 = inlined_call_operand.hbm [shape: bf16[9,128,128], index: 1, kind: input, shape index: {}]
  %s2 = inlined_call_operand.vmem [shape: f32[1,128], index: 2, kind: input, shape index: {}]
  %s3 = inlined_call_operand.hbm [shape: f32[2,16,16,128], index: 3, kind: output, shape index: {0}]
  %s4 = inlined_call_operand.hbm [shape: f32[2,128,128], index: 4, kind: output, shape index: {1}]
  %5 = xla_tuple %s3, %s4
  %s6 = sld [smem:[#allocation0]]
  $region61: #{tpu_custom_call.1} parent=0
    _
  %s8 = ssub.s32 1, %s6
  %s9 = scalar_select 0, %s8, %s6
  $region1: #{tpu_custom_call.1} parent=0
    #allocation3 [shape = 'u8[262144]{0}', space=vmem, size = 0x40000, scoped, tag = 'input window, operand 0']
    #allocation4 [shape = 's32[2]{0}', space=sflag, size = 0x8, scoped, tag = 'scoped memory for tpu_custom_call.1']
    #allocation5 [shape = 's32[2]{0}', space=sflag, size = 0x8, scoped, tag = 'scoped memory for tpu_custom_call.1']
    #allocation6 [shape = 'u8[294912]{0}', space=vmem, size = 0x48000, scoped, tag = 'input window, operand 1, single buffered']
    #allocation7 [shape = 's32[1]{0}', space=sflag, size = 0x4, scoped, tag = 'scoped memory for tpu_custom_call.1']
    #allocation8 [shape = 'u8[262144]{0}', space=vmem, size = 0x40000, scoped, tag = 'output window, operand 0']
    #allocation9 [shape = 'u8[131072]{0}', space=vmem, size = 0x20000, scoped, tag = 'output window, operand 1']
    #allocation10 [shape = 's32[2]{0}', space=sflag, size = 0x8, scoped, tag = 'scoped memory for tpu_custom_call.1']
    %10 = vsyncpa [#allocation4], 0
    %s11 = scalar_lea.sflag [#allocation4], 1
    %12 = vsyncpa %s11, 0
    %13 = vsyncpa [#allocation7], 0
    %14 = vsyncpa [#allocation5], 0
    %s15 = scalar_lea.sflag [#allocation5], 1
    %16 = vsyncpa %s15, 0
    %17 = vsyncpa [#allocation10], 0
    %s18 = scalar_lea.sflag [#allocation10], 1
    %19 = vsyncpa %s18, 0
    loop: start=0, step=1, limit=4
    $region2: #{tpu_custom_call.1} parent=1 // loop_pre_header
      _
    $region3: #{tpu_custom_call.1} parent=1 // loop_header
      %s21 = sphi 0, %s25
      %p22 = scmp.ge.s32.totalorder %s21, 4
      %s31 = sphi 0, %s33
      %s34 = sphi 0, %s31
      %s35 = sphi 0, %s34
      %s51 = sphi 0, %s35
      %s55 = sphi 0, %s55
      %s57 = sphi 0, %s55
      %s58 = sphi 0, %s57
      %s72 = sphi 0, %s58
      %s76 = sphi 0, %s76
      %s78 = sphi 0, %s76
      %s79 = sphi 0, %s78
      %s93 = sphi 0, %s79
      %s99 = sphi 0, %s101
      %s102 = sphi 0, %s99
      %s103 = sphi 0, %s102
      %s119 = sphi 0, %s103
      %s125 = sphi 0, %s127
      %s128 = sphi 0, %s125
      %s129 = sphi 0, %s128
      %s145 = sphi 0, %s129
    $region4: #{tpu_custom_call.1} parent=1 // loop_header_branch
      %24 = sbr.rel (%p22) target = $region8
    $region5: #{tpu_custom_call.1} parent=1 // loop_body
      %s26 = ssub.s32 %s21, 1
      %s27 = ssub.s32 %s21, 2
      %s28 = sadd.s32 %s21, 1
      %s29 = ssub.s32 %s21, %s28
      %p30 = scmp.eq.s32.totalorder %s29, 0
      %s32 = sadd.s32 %s31, 1
      %s33 = scalar_select %p30, %s31, %s32
      %p36 = pneg %p30
      %p37 = scmp.eq.s32.totalorder %s21, 1
      %p38 = por %p36, %p37
      %p39 = scmp.ne.s32.totalorder %s31, %s34
      %p40 = scmp.eq.s32.totalorder %s21, 0
      %p41 = por %p39, %p40
      %p42 = scmp.ne.s32.totalorder %s31, %s34
      %p43 = scmp.eq.s32.totalorder %s26, 1
      %p44 = por %p42, %p43
      %p45 = scmp.ne.s32.totalorder %s34, %s35
      %p46 = scmp.eq.s32.totalorder %s26, 0
      %p47 = por %p45, %p46
      %p48 = scmp.ne.s32.totalorder %s34, %s35
      %p49 = scmp.eq.s32.totalorder %s27, 1
      %p50 = por %p48, %p49
      %p52 = scmp.ne.s32.totalorder %s35, %s51
      %p53 = scmp.eq.s32.totalorder %s27, 0
      %p54 = por %p52, %p53
      %s56 = sadd.s32 %s55, 1
      %p59 = scmp.eq.s32.totalorder %s21, 1
      %p60 = scmp.ne.s32.totalorder %s55, %s57
      %p61 = scmp.eq.s32.totalorder %s21, 0
      %p62 = por %p60, %p61
      %p63 = scmp.ne.s32.totalorder %s55, %s57
      %p64 = scmp.eq.s32.totalorder %s26, 1
      %p65 = por %p63, %p64
      %p66 = scmp.ne.s32.totalorder %s57, %s58
      %p67 = scmp.eq.s32.totalorder %s26, 0
      %p68 = por %p66, %p67
      %p69 = scmp.ne.s32.totalorder %s57, %s58
      %p70 = scmp.eq.s32.totalorder %s27, 1
      %p71 = por %p69, %p70
      %p73 = scmp.ne.s32.totalorder %s58, %s72
      %p74 = scmp.eq.s32.totalorder %s27, 0
      %p75 = por %p73, %p74
      %s77 = sadd.s32 %s76, 1
      %p80 = scmp.eq.s32.totalorder %s21, 1
      %p81 = scmp.ne.s32.totalorder %s76, %s78
      %p82 = scmp.eq.s32.totalorder %s21, 0
      %p83 = por %p81, %p82
      %p84 = scmp.ne.s32.totalorder %s76, %s78
      %p85 = scmp.eq.s32.totalorder %s26, 1
      %p86 = por %p84, %p85
      %p87 = scmp.ne.s32.totalorder %s78, %s79
      %p88 = scmp.eq.s32.totalorder %s26, 0
      %p89 = por %p87, %p88
      %p90 = scmp.ne.s32.totalorder %s78, %s79
      %p91 = scmp.eq.s32.totalorder %s27, 1
      %p92 = por %p90, %p91
      %p94 = scmp.ne.s32.totalorder %s79, %s93
      %p95 = scmp.eq.s32.totalorder %s27, 0
      %p96 = por %p94, %p95
      %s97 = ssub.s32 %s21, %s28
      %p98 = scmp.eq.s32.totalorder %s97, 0
      %s100 = sadd.s32 %s99, 1
      %s101 = scalar_select %p98, %s99, %s100
      %p104 = pneg %p98
      %p105 = scmp.eq.s32.totalorder %s21, 1
      %p106 = por %p104, %p105
      %p107 = scmp.ne.s32.totalorder %s99, %s102
      %p108 = scmp.eq.s32.totalorder %s21, 0
      %p109 = por %p107, %p108
      %p110 = scmp.ne.s32.totalorder %s99, %s102
      %p111 = scmp.eq.s32.totalorder %s26, 1
      %p112 = por %p110, %p111
      %p113 = scmp.ne.s32.totalorder %s102, %s103
      %p114 = scmp.eq.s32.totalorder %s26, 0
      %p115 = por %p113, %p114
      %p116 = scmp.ne.s32.totalorder %s102, %s103
      %p117 = scmp.eq.s32.totalorder %s27, 1
      %p118 = por %p116, %p117
      %p120 = scmp.ne.s32.totalorder %s103, %s119
      %p121 = scmp.eq.s32.totalorder %s27, 0
      %p122 = por %p120, %p121
      %s123 = ssub.s32 %s21, %s28
      %p124 = scmp.eq.s32.totalorder %s123, 0
      %s126 = sadd.s32 %s125, 1
      %s127 = scalar_select %p124, %s125, %s126
      %p130 = pneg %p124
      %p131 = scmp.eq.s32.totalorder %s21, 1
      %p132 = por %p130, %p131
      %p133 = scmp.ne.s32.totalorder %s125, %s128
      %p134 = scmp.eq.s32.totalorder %s21, 0
      %p135 = por %p133, %p134
      %p136 = scmp.ne.s32.totalorder %s125, %s128
      %p137 = scmp.eq.s32.totalorder %s26, 1
      %p138 = por %p136, %p137
      %p139 = scmp.ne.s32.totalorder %s128, %s129
      %p140 = scmp.eq.s32.totalorder %s26, 0
      %p141 = por %p139, %p140
      %p142 = scmp.ne.s32.totalorder %s128, %s129
      %p143 = scmp.eq.s32.totalorder %s27, 1
      %p144 = por %p142, %p143
      %p146 = scmp.ne.s32.totalorder %s129, %s145
      %p147 = scmp.eq.s32.totalorder %s27, 0
      %p148 = por %p146, %p147
      %p149 = scmp.le.s32.totalorder 1, %s21
      %p150 = scmp.lt.s32.totalorder %s21, 3
      %p151 = pnand %p149, %p150
      %p152 = pneg %p151
      // Predicated region
      $region9: #{tpu_custom_call.1} parent=5 // pred_check
        _
      $region10: #{tpu_custom_call.1} parent=5 // pred_check_branch
        %154 = sbr.rel (%p151) target = $region12
      $region11: #{tpu_custom_call.1} parent=5 // pred_region
        %s155 = ssub.s32 %s21, 1
        // Predicated region
        $region13: #{tpu_custom_call.1} parent=11 // pred_check
          %p156 = pneg %p68
        $region14: #{tpu_custom_call.1} parent=11 // pred_check_branch
          %158 = sbr.rel (%p156) target = $region16
        $region15: #{tpu_custom_call.1} parent=11 // pred_region
          %s160 = ssub.s32 9216, 9216
          %161 = vsyncadd [#allocation7], %s160
          %s162 = sshll.u32 [#allocation6], 4
          %s163 = int_to_ptr.vmem [resolvable:$true] %s162
          %168 = dma.hbm_to_vmem [thread:$0]  %s1, 9216, %s163, [#allocation7], 64, 64, 4
        $region16: #{tpu_custom_call.1} parent=11 // pred_fallthru
          _
        // Predicated region
        $region17: #{tpu_custom_call.1} parent=11 // pred_check
          %p169 = pneg %p89
        $region18: #{tpu_custom_call.1} parent=11 // pred_check_branch
          %171 = sbr.rel (%p169) target = $region20
        $region19: #{tpu_custom_call.1} parent=11 // pred_region
          _
        $region20: #{tpu_custom_call.1} parent=11 // pred_fallthru
          _
      $region12: #{tpu_custom_call.1} parent=5 // pred_fallthru
        _
      %p172 = scmp.lt.s32.totalorder %s21, 2
      // Predicated region
      $region21: #{tpu_custom_call.1} parent=5 // pred_check
        %p173 = pneg %p172
      $region22: #{tpu_custom_call.1} parent=5 // pred_check_branch
        %175 = sbr.rel (%p173) target = $region24
      $region23: #{tpu_custom_call.1} parent=5 // pred_region
        // Predicated region
        $region25: #{tpu_custom_call.1} parent=23 // pred_check
          %p176 = pneg %p41
        $region26: #{tpu_custom_call.1} parent=23 // pred_check_branch
          %178 = sbr.rel (%p176) target = $region28
        $region27: #{tpu_custom_call.1} parent=23 // pred_region
          %s179 = sand.u32 %s31, 1
          %s180 = scalar_lea.sflag [#allocation4], %s179
          %s181 = sand.u32 %s31, 1
          %s182 = smul.addr %s181, 256
          %s183 = scalar_lea.vmem [#allocation3], %s182
          %s185 = ssub.s32 4096, 4096
          %186 = vsyncadd %s180, %s185
          %s187 = smul.addr %s21, 32
          %s188 = smul.addr %s187, 128
          %s189 = scalar_lea.hbm %s0, %s188
          %s190 = sshll.u32 %s183, 4
          %s191 = int_to_ptr.vmem [resolvable:$true] %s190
          %196 = dma.hbm_to_vmem [thread:$0]  %s189, 4096, %s191, %s180, 128, 128, 8
        $region28: #{tpu_custom_call.1} parent=23 // pred_fallthru
          _
      $region24: #{tpu_custom_call.1} parent=5 // pred_fallthru
        _
      %p197 = scmp.le.s32.totalorder 1, %s21
      %p198 = scmp.lt.s32.totalorder %s21, 3
      %p199 = pnand %p197, %p198
      %p200 = pneg %p199
      // Predicated region
      $region29: #{tpu_custom_call.1} parent=5 // pred_check
        _
      $region30: #{tpu_custom_call.1} parent=5 // pred_check_branch
        %202 = sbr.rel (%p199) target = $region32
      $region31: #{tpu_custom_call.1} parent=5 // pred_region
        %s203 = ssub.s32 %s21, 1
        %s204 = sand.u32 %s34, 1
        %s205 = scalar_lea.sflag [#allocation4], %s204
        %s206 = sand.u32 %s34, 1
        %s207 = smul.addr %s206, 256
        %s208 = scalar_lea.vmem [#allocation3], %s207
        // Predicated region
        $region33: #{tpu_custom_call.1} parent=31 // pred_check
          %p209 = pneg %p47
        $region34: #{tpu_custom_call.1} parent=31 // pred_check_branch
          %211 = sbr.rel (%p209) target = $region36
        $region35: #{tpu_custom_call.1} parent=31 // pred_region
          %212 = dma.done %s205, 4096
        $region36: #{tpu_custom_call.1} parent=31 // pred_fallthru
          _
        // Predicated region
        $region37: #{tpu_custom_call.1} parent=31 // pred_check
          %p213 = pneg %p68
        $region38: #{tpu_custom_call.1} parent=31 // pred_check_branch
          %215 = sbr.rel (%p213) target = $region40
        $region39: #{tpu_custom_call.1} parent=31 // pred_region
          %216 = dma.done [#allocation7], 9216
        $region40: #{tpu_custom_call.1} parent=31 // pred_fallthru
          _
        %s217 = sand.u32 %s34, 1
        %s218 = scalar_lea.sflag [#allocation4], %s217
        %s219 = sand.u32 %s34, 1
        %s220 = smul.addr %s219, 256
        %s221 = scalar_lea.vmem [#allocation3], %s220
        %p222 = pneg %p47
        %p223 = pneg %p44
        %p224 = pneg %p68
        %p225 = pneg %p65
        %p226 = pneg %p89
        %p227 = pneg %p86
        %p228 = pneg %p115
        %p229 = pneg %p112
        %s230 = sand.u32 %s102, 1
        %s231 = scalar_lea.sflag [#allocation5], %s230
        %s232 = sand.u32 %s102, 1
        %s233 = smul.addr %s232, 256
        %s234 = scalar_lea.vmem [#allocation8], %s233
        %p235 = pneg %p141
        %p236 = pneg %p138
        %s237 = sand.u32 %s128, 1
        %s238 = scalar_lea.sflag [#allocation10], %s237
        %s239 = sand.u32 %s128, 1
        %s240 = smul.addr %s239, 128
        %s241 = scalar_lea.vmem [#allocation9], %s240
        %243 = vst [vmem:[#allocation2] sm:$0xff] 0.0
        %244 = vst [vmem:[#allocation2 + $0x8] sm:$0xff] 0.0
        %245 = vst [vmem:[#allocation2 + $0x10] sm:$0x3] 0.0
        %246 = vst [vmem:[#allocation2 + $0x18] sm:$0xff] 0.0
        %247 = vst [vmem:[#allocation2 + $0x20] sm:$0xff] 0.0
        %248 = vst [vmem:[#allocation2 + $0x28] sm:$0x3] 0.0
        %249 = vst [vmem:[#allocation2 + $0x30] sm:$0xff] 0.0
        %250 = vst [vmem:[#allocation2 + $0x38] sm:$0xff] 0.0
        %251 = vst [vmem:[#allocation2 + $0x40] sm:$0x3] 0.0
        %252 = vst [vmem:[#allocation2 + $0x48] sm:$0xff] 0.0
        %253 = vst [vmem:[#allocation2 + $0x50] sm:$0xff] 0.0
        %254 = vst [vmem:[#allocation2 + $0x58] sm:$0x3] 0.0
        %255 = vst [vmem:[#allocation2 + $0x60] sm:$0xff] 0.0
        %256 = vst [vmem:[#allocation2 + $0x68] sm:$0xff] 0.0
        %257 = vst [vmem:[#allocation2 + $0x70] sm:$0x3] 0.0
        %258 = vst [vmem:[#allocation2 + $0x78] sm:$0xff] 0.0
        %259 = vst [vmem:[#allocation2 + $0x80] sm:$0xff] 0.0
        %260 = vst [vmem:[#allocation2 + $0x88] sm:$0x3] 0.0
        %261 = vst [vmem:[#allocation2 + $0x90] sm:$0xff] 0.0
        %262 = vst [vmem:[#allocation2 + $0x98] sm:$0xff] 0.0
        %263 = vst [vmem:[#allocation2 + $0xa0] sm:$0x3] 0.0
        %264 = vst [vmem:[#allocation2 + $0xa8] sm:$0xff] 0.0
        %265 = vst [vmem:[#allocation2 + $0xb0] sm:$0xff] 0.0
        %266 = vst [vmem:[#allocation2 + $0xb8] sm:$0x3] 0.0
        %267 = vst [vmem:[#allocation2 + $0xc0] sm:$0xff] 0.0
        %268 = vst [vmem:[#allocation2 + $0xc8] sm:$0xff] 0.0
        %269 = vst [vmem:[#allocation2 + $0xd0] sm:$0x3] 0.0
        %270 = vst [vmem:[#allocation2 + $0xd8] sm:$0xff] 0.0
        %271 = vst [vmem:[#allocation2 + $0xe0] sm:$0xff] 0.0
        %272 = vst [vmem:[#allocation2 + $0xe8] sm:$0x3] 0.0
        %273 = vst [vmem:[#allocation2 + $0xf0] sm:$0xff] 0.0
        %274 = vst [vmem:[#allocation2 + $0xf8] sm:$0xff] 0.0
        %275 = vst [vmem:[#allocation2 + $0x100] sm:$0x3] 0.0
        %276 = vst [vmem:[#allocation2 + $0x108] sm:$0xff] 0.0
        %277 = vst [vmem:[#allocation2 + $0x110] sm:$0xff] 0.0
        %278 = vst [vmem:[#allocation2 + $0x118] sm:$0x3] 0.0
        %279 = vst [vmem:[#allocation2 + $0x120] sm:$0xff] 0.0
        %280 = vst [vmem:[#allocation2 + $0x128] sm:$0xff] 0.0
        %281 = vst [vmem:[#allocation2 + $0x130] sm:$0x3] 0.0
        %282 = vst [vmem:[#allocation2 + $0x138] sm:$0xff] 0.0
        %283 = vst [vmem:[#allocation2 + $0x140] sm:$0xff] 0.0
        %284 = vst [vmem:[#allocation2 + $0x148] sm:$0x3] 0.0
        %285 = vst [vmem:[#allocation2 + $0x150] sm:$0xff] 0.0
        %286 = vst [vmem:[#allocation2 + $0x158] sm:$0xff] 0.0
        %287 = vst [vmem:[#allocation2 + $0x160] sm:$0x3] 0.0
        %288 = vst [vmem:[#allocation2 + $0x168] sm:$0xff] 0.0
        %289 = vst [vmem:[#allocation2 + $0x170] sm:$0xff] 0.0
        %290 = vst [vmem:[#allocation2 + $0x178] sm:$0x3] 0.0
        %291 = vst [vmem:[#allocation2 + $0x180] sm:$0xff] 0.0
        %292 = vst [vmem:[#allocation2 + $0x188] sm:$0xff] 0.0
        %293 = vst [vmem:[#allocation2 + $0x190] sm:$0x3] 0.0
        %294 = vst [vmem:[#allocation2 + $0x198] sm:$0xff] 0.0
        %295 = vst [vmem:[#allocation2 + $0x1a0] sm:$0xff] 0.0
        %296 = vst [vmem:[#allocation2 + $0x1a8] sm:$0x3] 0.0
        %v297 = vld [vmem:[%s208] sm:$0xff]
        %v298 = vld [vmem:[%s208 + $0x8] sm:$0xff]
        %v299 = vld [vmem:[%s208 + $0x10] sm:$0xff]
        %v300 = vld [vmem:[%s208 + $0x18] sm:$0xff]
        %v301 = vld [vmem:[%s208 + $0x20] sm:$0xff]
        %v302 = vld [vmem:[%s208 + $0x28] sm:$0xff]
        %v303 = vld [vmem:[%s208 + $0x30] sm:$0xff]
        %v304 = vld [vmem:[%s208 + $0x38] sm:$0xff]
        %v305 = vld [vmem:[%s208 + $0x40] sm:$0xff]
        %v306 = vld [vmem:[%s208 + $0x48] sm:$0xff]
        %v307 = vld [vmem:[%s208 + $0x50] sm:$0xff]
        %v308 = vld [vmem:[%s208 + $0x58] sm:$0xff]
        %v309 = vld [vmem:[%s208 + $0x60] sm:$0xff]
        %v310 = vld [vmem:[%s208 + $0x68] sm:$0xff]
        %v311 = vld [vmem:[%s208 + $0x70] sm:$0xff]
        %v312 = vld [vmem:[%s208 + $0x78] sm:$0xff]
        %v313 = vld [vmem:[%s208 + $0x80] sm:$0xff]
        %v314 = vld [vmem:[%s208 + $0x88] sm:$0xff]
        %v315 = vld [vmem:[%s208 + $0x90] sm:$0xff]
        %v316 = vld [vmem:[%s208 + $0x98] sm:$0xff]
        %v317 = vld [vmem:[%s208 + $0xa0] sm:$0xff]
        %v318 = vld [vmem:[%s208 + $0xa8] sm:$0xff]
        %v319 = vld [vmem:[%s208 + $0xb0] sm:$0xff]
        %v320 = vld [vmem:[%s208 + $0xb8] sm:$0xff]
        %v321 = vld [vmem:[%s208 + $0xc0] sm:$0xff]
        %v322 = vld [vmem:[%s208 + $0xc8] sm:$0xff]
        %v323 = vld [vmem:[%s208 + $0xd0] sm:$0xff]
        %v324 = vld [vmem:[%s208 + $0xd8] sm:$0xff]
        %v325 = vld [vmem:[%s208 + $0xe0] sm:$0xff]
        %v326 = vld [vmem:[%s208 + $0xe8] sm:$0xff]
        %v327 = vld [vmem:[%s208 + $0xf0] sm:$0xff]
        %v328 = vld [vmem:[%s208 + $0xf8] sm:$0xff]
        %s329 = scalar_lea.vmem [#allocation2], 24
        %330 = vst [vmem:[%s329 + $0x1] sm:$0xff] %v297
        %331 = vst [vmem:[%s329 + $0x9] sm:$0xff] %v298
        %332 = vst [vmem:[%s329 + $0x19] sm:$0xff] %v299
        %333 = vst [vmem:[%s329 + $0x21] sm:$0xff] %v300
        %334 = vst [vmem:[%s329 + $0x31] sm:$0xff] %v301
        %335 = vst [vmem:[%s329 + $0x39] sm:$0xff] %v302
        %336 = vst [vmem:[%s329 + $0x49] sm:$0xff] %v303
        %337 = vst [vmem:[%s329 + $0x51] sm:$0xff] %v304
        %338 = vst [vmem:[%s329 + $0x61] sm:$0xff] %v305
        %339 = vst [vmem:[%s329 + $0x69] sm:$0xff] %v306
        %340 = vst [vmem:[%s329 + $0x79] sm:$0xff] %v307
        %341 = vst [vmem:[%s329 + $0x81] sm:$0xff] %v308
        %342 = vst [vmem:[%s329 + $0x91] sm:$0xff] %v309
        %343 = vst [vmem:[%s329 + $0x99] sm:$0xff] %v310
        %344 = vst [vmem:[%s329 + $0xa9] sm:$0xff] %v311
        %345 = vst [vmem:[%s329 + $0xb1] sm:$0xff] %v312
        %346 = vst [vmem:[%s329 + $0xc1] sm:$0xff] %v313
        %347 = vst [vmem:[%s329 + $0xc9] sm:$0xff] %v314
        %348 = vst [vmem:[%s329 + $0xd9] sm:$0xff] %v315
        %349 = vst [vmem:[%s329 + $0xe1] sm:$0xff] %v316
        %350 = vst [vmem:[%s329 + $0xf1] sm:$0xff] %v317
        %351 = vst [vmem:[%s329 + $0xf9] sm:$0xff] %v318
        %352 = vst [vmem:[%s329 + $0x109] sm:$0xff] %v319
        %353 = vst [vmem:[%s329 + $0x111] sm:$0xff] %v320
        %354 = vst [vmem:[%s329 + $0x121] sm:$0xff] %v321
        %355 = vst [vmem:[%s329 + $0x129] sm:$0xff] %v322
        %356 = vst [vmem:[%s329 + $0x139] sm:$0xff] %v323
        %357 = vst [vmem:[%s329 + $0x141] sm:$0xff] %v324
        %358 = vst [vmem:[%s329 + $0x151] sm:$0xff] %v325
        %359 = vst [vmem:[%s329 + $0x159] sm:$0xff] %v326
        %360 = vst [vmem:[%s329 + $0x169] sm:$0xff] %v327
        %361 = vst [vmem:[%s329 + $0x171] sm:$0xff] %v328
        %v362 = vld [vmem:[#allocation2] sm:$0xff]
        %v363 = vld [vmem:[#allocation2 + $0x8] sm:$0xff]
        %v364 = vld [vmem:[#allocation2 + $0x18] sm:$0xff]
        %v365 = vld [vmem:[#allocation2 + $0x20] sm:$0xff]
        %v366 = vld [vmem:[#allocation2 + $0x30] sm:$0xff]
        %v367 = vld [vmem:[#allocation2 + $0x38] sm:$0xff]
        %v368 = vld [vmem:[#allocation2 + $0x48] sm:$0xff]
        %v369 = vld [vmem:[#allocation2 + $0x50] sm:$0xff]
        %v370 = vld [vmem:[#allocation2 + $0x60] sm:$0xff]
        %v371 = vld [vmem:[#allocation2 + $0x68] sm:$0xff]
        %v372 = vld [vmem:[#allocation2 + $0x78] sm:$0xff]
        %v373 = vld [vmem:[#allocation2 + $0x80] sm:$0xff]
        %v374 = vld [vmem:[#allocation2 + $0x90] sm:$0xff]
        %v375 = vld [vmem:[#allocation2 + $0x98] sm:$0xff]
        %v376 = vld [vmem:[#allocation2 + $0xa8] sm:$0xff]
        %v377 = vld [vmem:[#allocation2 + $0xb0] sm:$0xff]
        %v378 = vpack.c.bf16 %v363, %v362
        %v379 = vpack.c.bf16 %v365, %v364
        %v380 = vpack.c.bf16 %v367, %v366
        %v381 = vpack.c.bf16 %v369, %v368
        %v382 = vpack.c.bf16 %v371, %v370
        %v383 = vpack.c.bf16 %v373, %v372
        %v384 = vpack.c.bf16 %v375, %v374
        %v385 = vpack.c.bf16 %v377, %v376
        %v386 = vld [vmem:[#allocation6] sm:$0xf]
        %v387 = vld [vmem:[#allocation6 + $0x4] sm:$0xf]
        %v388 = vld [vmem:[#allocation6 + $0x8] sm:$0xf]
        %v389 = vld [vmem:[#allocation6 + $0xc] sm:$0xf]
        %v390 = vld [vmem:[#allocation6 + $0x10] sm:$0xf]
        %v391 = vld [vmem:[#allocation6 + $0x14] sm:$0xf]
        %v392 = vld [vmem:[#allocation6 + $0x18] sm:$0xf]
        %v393 = vld [vmem:[#allocation6 + $0x1c] sm:$0xf]
        %v394 = vld [vmem:[#allocation6 + $0x20] sm:$0xf]
        %v395 = vld [vmem:[#allocation6 + $0x24] sm:$0xf]
        %v396 = vld [vmem:[#allocation6 + $0x28] sm:$0xf]
        %v397 = vld [vmem:[#allocation6 + $0x2c] sm:$0xf]
        %v398 = vld [vmem:[#allocation6 + $0x30] sm:$0xf]
        %v399 = vld [vmem:[#allocation6 + $0x34] sm:$0xf]
        %v400 = vld [vmem:[#allocation6 + $0x38] sm:$0xf]
        %v401 = vld [vmem:[#allocation6 + $0x3c] sm:$0xf]
        %v402 = vld [vmem:[#allocation2 + $0x1] sm:$0xff]
        %v403 = vld [vmem:[#allocation2 + $0x9] sm:$0xff]
        %v404 = vld [vmem:[#allocation2 + $0x19] sm:$0xff]
        %v405 = vld [vmem:[#allocation2 + $0x21] sm:$0xff]
        %v406 = vld [vmem:[#allocation2 + $0x31] sm:$0xff]
        %v407 = vld [vmem:[#allocation2 + $0x39] sm:$0xff]
        %v408 = vld [vmem:[#allocation2 + $0x49] sm:$0xff]
        %v409 = vld [vmem:[#allocation2 + $0x51] sm:$0xff]
        %v410 = vld [vmem:[#allocation2 + $0x61] sm:$0xff]
        %v411 = vld [vmem:[#allocation2 + $0x69] sm:$0xff]
        %v412 = vld [vmem:[#allocation2 + $0x79] sm:$0xff]
        %v413 = vld [vmem:[#allocation2 + $0x81] sm:$0xff]
        %v414 = vld [vmem:[#allocation2 + $0x91] sm:$0xff]
        %v415 = vld [vmem:[#allocation2 + $0x99] sm:$0xff]
        %v416 = vld [vmem:[#allocation2 + $0xa9] sm:$0xff]
        %v417 = vld [vmem:[#allocation2 + $0xb1] sm:$0xff]
        %v418 = vpack.c.bf16 %v403, %v402
        %v419 = vpack.c.bf16 %v405, %v404
        %v420 = vpack.c.bf16 %v407, %v406
        %v421 = vpack.c.bf16 %v409, %v408
        %v422 = vpack.c.bf16 %v411, %v410
        %v423 = vpack.c.bf16 %v413, %v412
        %v424 = vpack.c.bf16 %v415, %v414
        %v425 = vpack.c.bf16 %v417, %v416
        %s426 = scalar_lea.vmem [#allocation6], 64
        %v427 = vld [vmem:[%s426] sm:$0xf]
        %v428 = vld [vmem:[%s426 + $0x4] sm:$0xf]
        %v429 = vld [vmem:[%s426 + $0x8] sm:$0xf]
        %v430 = vld [vmem:[%s426 + $0xc] sm:$0xf]
        %v431 = vld [vmem:[%s426 + $0x10] sm:$0xf]
        %v432 = vld [vmem:[%s426 + $0x14] sm:$0xf]
        %v433 = vld [vmem:[%s426 + $0x18] sm:$0xf]
        %v434 = vld [vmem:[%s426 + $0x1c] sm:$0xf]
        %v435 = vld [vmem:[%s426 + $0x20] sm:$0xf]
        %v436 = vld [vmem:[%s426 + $0x24] sm:$0xf]
        %v437 = vld [vmem:[%s426 + $0x28] sm:$0xf]
        %v438 = vld [vmem:[%s426 + $0x2c] sm:$0xf]
        %v439 = vld [vmem:[%s426 + $0x30] sm:$0xf]
        %v440 = vld [vmem:[%s426 + $0x34] sm:$0xf]
        %v441 = vld [vmem:[%s426 + $0x38] sm:$0xf]
        %v442 = vld [vmem:[%s426 + $0x3c] sm:$0xf]
        %v459 = vunpack.c.l.b16 %v427
        %v460 = vunpack.c.l.b16 %v428
        %v461 = vunpack.c.l.b16 %v429
        %v462 = vunpack.c.l.b16 %v430
        %v463 = vunpack.c.l.b16 %v431
        %v464 = vunpack.c.l.b16 %v432
        %v465 = vunpack.c.l.b16 %v433
        %v466 = vunpack.c.l.b16 %v434
        %v467 = vunpack.c.l.b16 %v435
        %v468 = vunpack.c.l.b16 %v436
        %v469 = vunpack.c.l.b16 %v437
        %v470 = vunpack.c.l.b16 %v438
        %v471 = vunpack.c.l.b16 %v439
        %v472 = vunpack.c.l.b16 %v440
        %v473 = vunpack.c.l.b16 %v441
        %v474 = vunpack.c.l.b16 %v442
        %v475 = vpack.c.b16 %v460, %v459
        %v476 = vpack.c.b16 %v462, %v461
        %v477 = vpack.c.b16 %v464, %v463
        %v478 = vpack.c.b16 %v466, %v465
        %v479 = vpack.c.b16 %v468, %v467
        %v480 = vpack.c.b16 %v470, %v469
        %v481 = vpack.c.b16 %v472, %v471
        %v482 = vpack.c.b16 %v474, %v473
        %491 = vmatprep.subr.bf16.mxu0 0
        %492 = vmatpush1.bf16.msra.mxu0 %v482
        %493 = vmatprep.subr.bf16.mxu0 0
        %494 = vmatpush1.bf16.msra.mxu0 %v481
        %495 = vmatprep.subr.bf16.mxu0 0
        %496 = vmatpush1.bf16.msra.mxu0 %v480
        %497 = vmatprep.subr.bf16.mxu0 0
        %498 = vmatpush1.bf16.msra.mxu0 %v479
        %499 = vmatprep.subr.bf16.mxu0 0
        %500 = vmatpush1.bf16.msra.mxu0 %v478
        %501 = vmatprep.subr.bf16.mxu0 0
        %502 = vmatpush1.bf16.msra.mxu0 %v477
        %503 = vmatprep.subr.bf16.mxu0 0
        %504 = vmatpush1.bf16.msra.mxu0 %v476
        %505 = vmatprep.subr.bf16.mxu0 0
        %506 = vmatpush1.bf16.msra.mxu0 %v475
        %507 = vmatprep.subr.bf16.mxu0 0
        %508 = vmatpush2.bf16.msra.mxu0 0
        %509 = vmatprep.subr.bf16.mxu0 0
        %510 = vmatpush2.bf16.msra.mxu0 0
        %511 = vmatprep.subr.bf16.mxu0 0
        %512 = vmatpush2.bf16.msra.mxu0 0
        %513 = vmatprep.subr.bf16.mxu0 0
        %514 = vmatpush2.bf16.msra.mxu0 0
        %515 = vmatprep.subr.bf16.mxu0 0
        %516 = vmatpush2.bf16.msra.mxu0 0
        %517 = vmatprep.subr.bf16.mxu0 0
        %518 = vmatpush2.bf16.msra.mxu0 0
        %519 = vmatprep.subr.bf16.mxu0 0
        %520 = vmatpush2.bf16.msra.mxu0 0
        %521 = vmatprep.subr.bf16.mxu0 0
        %522 = vmatpush2.bf16.msra.mxu0 0
        %523 = vmatprep.mubr.bf16.mxu0 0
        %524 = vmatmul.mubr.bf16.gmra.mxu0 %v418
        %v525 = vpop.f32.mrf.mxu0
        %v526 = vadd.f32 0.0, %v525
        %v527 = vpop.f32.mrf.mxu0
        %v528 = vpop.f32.mrf.mxu0
        %v529 = vadd.f32 0.0, %v528
        %v530 = vpop.f32.mrf.mxu0
        %531 = vmatprep.mubr.bf16.mxu0 0
        %532 = vmatmul.mubr.bf16.gmra.mxu0 %v419
        %v533 = vpop.f32.mrf.mxu0
        %v534 = vadd.f32 0.0, %v533
        %v535 = vpop.f32.mrf.mxu0
        %v536 = vpop.f32.mrf.mxu0
        %v537 = vadd.f32 0.0, %v536
        %v538 = vpop.f32.mrf.mxu0
        %539 = vmatprep.mubr.bf16.mxu0 0
        %540 = vmatmul.mubr.bf16.gmra.mxu0 %v420
        %v541 = vpop.f32.mrf.mxu0
        %v542 = vadd.f32 0.0, %v541
        %v543 = vpop.f32.mrf.mxu0
        %v544 = vpop.f32.mrf.mxu0
        %v545 = vadd.f32 0.0, %v544
        %v546 = vpop.f32.mrf.mxu0
        %547 = vmatprep.mubr.bf16.mxu0 0
        %548 = vmatmul.mubr.bf16.gmra.mxu0 %v421
        %v549 = vpop.f32.mrf.mxu0
        %v550 = vadd.f32 0.0, %v549
        %v551 = vpop.f32.mrf.mxu0
        %v552 = vpop.f32.mrf.mxu0
        %v553 = vadd.f32 0.0, %v552
        %v554 = vpop.f32.mrf.mxu0
        %555 = vmatprep.mubr.bf16.mxu0 0
        %556 = vmatmul.mubr.bf16.gmra.mxu0 %v422
        %v557 = vpop.f32.mrf.mxu0
        %v558 = vadd.f32 0.0, %v557
        %v559 = vpop.f32.mrf.mxu0
        %v560 = vpop.f32.mrf.mxu0
        %v561 = vadd.f32 0.0, %v560
        %v562 = vpop.f32.mrf.mxu0
        %563 = vmatprep.mubr.bf16.mxu0 0
        %564 = vmatmul.mubr.bf16.gmra.mxu0 %v423
        %v565 = vpop.f32.mrf.mxu0
        %v566 = vadd.f32 0.0, %v565
        %v567 = vpop.f32.mrf.mxu0
        %v568 = vpop.f32.mrf.mxu0
        %v569 = vadd.f32 0.0, %v568
        %v570 = vpop.f32.mrf.mxu0
        %571 = vmatprep.mubr.bf16.mxu0 0
        %572 = vmatmul.mubr.bf16.gmra.mxu0 %v424
        %v573 = vpop.f32.mrf.mxu0
        %v574 = vadd.f32 0.0, %v573
        %v575 = vpop.f32.mrf.mxu0
        %v576 = vpop.f32.mrf.mxu0
        %v577 = vadd.f32 0.0, %v576
        %v578 = vpop.f32.mrf.mxu0
        %579 = vmatprep.mubr.bf16.mxu0 0
        %580 = vmatmul.mubr.bf16.gmra.mxu0 %v425
        %v581 = vpop.f32.mrf.mxu0
        %v582 = vadd.f32 0.0, %v581
        %v583 = vpop.f32.mrf.mxu0
        %v584 = vpop.f32.mrf.mxu0
        %v585 = vadd.f32 0.0, %v584
        %v586 = vpop.f32.mrf.mxu0
        %587 = vdwg.mxu0
        %v604 = vunpack.c.l.b16 %v386
        %v605 = vunpack.c.l.b16 %v387
        %v606 = vunpack.c.l.b16 %v388
        %v607 = vunpack.c.l.b16 %v389
        %v608 = vunpack.c.l.b16 %v390
        %v609 = vunpack.c.l.b16 %v391
        %v610 = vunpack.c.l.b16 %v392
        %v611 = vunpack.c.l.b16 %v393
        %v612 = vunpack.c.l.b16 %v394
        %v613 = vunpack.c.l.b16 %v395
        %v614 = vunpack.c.l.b16 %v396
        %v615 = vunpack.c.l.b16 %v397
        %v616 = vunpack.c.l.b16 %v398
        %v617 = vunpack.c.l.b16 %v399
        %v618 = vunpack.c.l.b16 %v400
        %v619 = vunpack.c.l.b16 %v401
        %v620 = vpack.c.b16 %v605, %v604
        %v621 = vpack.c.b16 %v607, %v606
        %v622 = vpack.c.b16 %v609, %v608
        %v623 = vpack.c.b16 %v611, %v610
        %v624 = vpack.c.b16 %v613, %v612
        %v625 = vpack.c.b16 %v615, %v614
        %v626 = vpack.c.b16 %v617, %v616
        %v627 = vpack.c.b16 %v619, %v618
        %636 = vmatprep.subr.bf16.mxu0 0
        %637 = vmatpush1.bf16.msra.mxu0 %v627
        %638 = vmatprep.subr.bf16.mxu0 0
        %639 = vmatpush1.bf16.msra.mxu0 %v626
        %640 = vmatprep.subr.bf16.mxu0 0
        %641 = vmatpush1.bf16.msra.mxu0 %v625
        %642 = vmatprep.subr.bf16.mxu0 0
        %643 = vmatpush1.bf16.msra.mxu0 %v624
        %644 = vmatprep.subr.bf16.mxu0 0
        %645 = vmatpush1.bf16.msra.mxu0 %v623
        %646 = vmatprep.subr.bf16.mxu0 0
        %647 = vmatpush1.bf16.msra.mxu0 %v622
        %648 = vmatprep.subr.bf16.mxu0 0
        %649 = vmatpush1.bf16.msra.mxu0 %v621
        %650 = vmatprep.subr.bf16.mxu0 0
        %651 = vmatpush1.bf16.msra.mxu0 %v620
        %652 = vmatprep.subr.bf16.mxu0 0
        %653 = vmatpush2.bf16.msra.mxu0 0
        %654 = vmatprep.subr.bf16.mxu0 0
        %655 = vmatpush2.bf16.msra.mxu0 0
        %656 = vmatprep.subr.bf16.mxu0 0
        %657 = vmatpush2.bf16.msra.mxu0 0
        %658 = vmatprep.subr.bf16.mxu0 0
        %659 = vmatpush2.bf16.msra.mxu0 0
        %660 = vmatprep.subr.bf16.mxu0 0
        %661 = vmatpush2.bf16.msra.mxu0 0
        %662 = vmatprep.subr.bf16.mxu0 0
        %663 = vmatpush2.bf16.msra.mxu0 0
        %664 = vmatprep.subr.bf16.mxu0 0
        %665 = vmatpush2.bf16.msra.mxu0 0
        %666 = vmatprep.subr.bf16.mxu0 0
        %667 = vmatpush2.bf16.msra.mxu0 0
        %668 = vmatprep.mubr.bf16.mxu0 0
        %669 = vmatmul.mubr.bf16.gmra.mxu0 %v378
        %v670 = vpop.f32.mrf.mxu0
        %v671 = vadd.f32 %v526, %v670
        %v672 = vpop.f32.mrf.mxu0
        %v673 = vpop.f32.mrf.mxu0
        %v674 = vadd.f32 %v529, %v673
        %v675 = vpop.f32.mrf.mxu0
        %676 = vmatprep.mubr.bf16.mxu0 0
        %677 = vmatmul.mubr.bf16.gmra.mxu0 %v379
        %v678 = vpop.f32.mrf.mxu0
        %v679 = vadd.f32 %v534, %v678
        %v680 = vpop.f32.mrf.mxu0
        %v681 = vpop.f32.mrf.mxu0
        %v682 = vadd.f32 %v537, %v681
        %v683 = vpop.f32.mrf.mxu0
        %684 = vmatprep.mubr.bf16.mxu0 0
        %685 = vmatmul.mubr.bf16.gmra.mxu0 %v380
        %v686 = vpop.f32.mrf.mxu0
        %v687 = vadd.f32 %v542, %v686
        %v688 = vpop.f32.mrf.mxu0
        %v689 = vpop.f32.mrf.mxu0
        %v690 = vadd.f32 %v545, %v689
        %v691 = vpop.f32.mrf.mxu0
        %692 = vmatprep.mubr.bf16.mxu0 0
        %693 = vmatmul.mubr.bf16.gmra.mxu0 %v381
        %v694 = vpop.f32.mrf.mxu0
        %v695 = vadd.f32 %v550, %v694
        %v696 = vpop.f32.mrf.mxu0
        %v697 = vpop.f32.mrf.mxu0
        %v698 = vadd.f32 %v553, %v697
        %v699 = vpop.f32.mrf.mxu0
        %700 = vmatprep.mubr.bf16.mxu0 0
        %701 = vmatmul.mubr.bf16.gmra.mxu0 %v382
        %v702 = vpop.f32.mrf.mxu0
        %v703 = vadd.f32 %v558, %v702
        %v704 = vpop.f32.mrf.mxu0
        %v705 = vpop.f32.mrf.mxu0
        %v706 = vadd.f32 %v561, %v705
        %v707 = vpop.f32.mrf.mxu0
        %708 = vmatprep.mubr.bf16.mxu0 0
        %709 = vmatmul.mubr.bf16.gmra.mxu0 %v383
        %v710 = vpop.f32.mrf.mxu0
        %v711 = vadd.f32 %v566, %v710
        %v712 = vpop.f32.mrf.mxu0
        %v713 = vpop.f32.mrf.mxu0
        %v714 = vadd.f32 %v569, %v713
        %v715 = vpop.f32.mrf.mxu0
        %716 = vmatprep.mubr.bf16.mxu0 0
        %717 = vmatmul.mubr.bf16.gmra.mxu0 %v384
        %v718 = vpop.f32.mrf.mxu0
        %v719 = vadd.f32 %v574, %v718
        %v720 = vpop.f32.mrf.mxu0
        %v721 = vpop.f32.mrf.mxu0
        %v722 = vadd.f32 %v577, %v721
        %v723 = vpop.f32.mrf.mxu0
        %724 = vmatprep.mubr.bf16.mxu0 0
        %725 = vmatmul.mubr.bf16.gmra.mxu0 %v385
        %v726 = vpop.f32.mrf.mxu0
        %v727 = vadd.f32 %v582, %v726
        %v728 = vpop.f32.mrf.mxu0
        %v729 = vpop.f32.mrf.mxu0
        %v730 = vadd.f32 %v585, %v729
        %v731 = vpop.f32.mrf.mxu0
        %732 = vdwg.mxu0
        %v733 = vld [vmem:[#allocation2 + $0x2] sm:$0xff]
        %v734 = vld [vmem:[#allocation2 + $0xa] sm:$0xff]
        %v735 = vld [vmem:[#allocation2 + $0x1a] sm:$0xff]
        %v736 = vld [vmem:[#allocation2 + $0x22] sm:$0xff]
        %v737 = vld [vmem:[#allocation2 + $0x32] sm:$0xff]
        %v738 = vld [vmem:[#allocation2 + $0x3a] sm:$0xff]
        %v739 = vld [vmem:[#allocation2 + $0x4a] sm:$0xff]
        %v740 = vld [vmem:[#allocation2 + $0x52] sm:$0xff]
        %v741 = vld [vmem:[#allocation2 + $0x62] sm:$0xff]
        %v742 = vld [vmem:[#allocation2 + $0x6a] sm:$0xff]
        %v743 = vld [vmem:[#allocation2 + $0x7a] sm:$0xff]
        %v744 = vld [vmem:[#allocation2 + $0x82] sm:$0xff]
        %v745 = vld [vmem:[#allocation2 + $0x92] sm:$0xff]
        %v746 = vld [vmem:[#allocation2 + $0x9a] sm:$0xff]
        %v747 = vld [vmem:[#allocation2 + $0xaa] sm:$0xff]
        %v748 = vld [vmem:[#allocation2 + $0xb2] sm:$0xff]
        %v749 = vpack.c.bf16 %v734, %v733
        %v750 = vpack.c.bf16 %v736, %v735
        %v751 = vpack.c.bf16 %v738, %v737
        %v752 = vpack.c.bf16 %v740, %v739
        %v753 = vpack.c.bf16 %v742, %v741
        %v754 = vpack.c.bf16 %v744, %v743
        %v755 = vpack.c.bf16 %v746, %v745
        %v756 = vpack.c.bf16 %v748, %v747
        %s757 = scalar_lea.vmem [#allocation6], 128
        %v758 = vld [vmem:[%s757] sm:$0xf]
        %v759 = vld [vmem:[%s757 + $0x4] sm:$0xf]
        %v760 = vld [vmem:[%s757 + $0x8] sm:$0xf]
        %v761 = vld [vmem:[%s757 + $0xc] sm:$0xf]
        %v762 = vld [vmem:[%s757 + $0x10] sm:$0xf]
        %v763 = vld [vmem:[%s757 + $0x14] sm:$0xf]
        %v764 = vld [vmem:[%s757 + $0x18] sm:$0xf]
        %v765 = vld [vmem:[%s757 + $0x1c] sm:$0xf]
        %v766 = vld [vmem:[%s757 + $0x20] sm:$0xf]
        %v767 = vld [vmem:[%s757 + $0x24] sm:$0xf]
        %v768 = vld [vmem:[%s757 + $0x28] sm:$0xf]
        %v769 = vld [vmem:[%s757 + $0x2c] sm:$0xf]
        %v770 = vld [vmem:[%s757 + $0x30] sm:$0xf]
        %v771 = vld [vmem:[%s757 + $0x34] sm:$0xf]
        %v772 = vld [vmem:[%s757 + $0x38] sm:$0xf]
        %v773 = vld [vmem:[%s757 + $0x3c] sm:$0xf]
        %v790 = vunpack.c.l.b16 %v758
        %v791 = vunpack.c.l.b16 %v759
        %v792 = vunpack.c.l.b16 %v760
        %v793 = vunpack.c.l.b16 %v761
        %v794 = vunpack.c.l.b16 %v762
        %v795 = vunpack.c.l.b16 %v763
        %v796 = vunpack.c.l.b16 %v764
        %v797 = vunpack.c.l.b16 %v765
        %v798 = vunpack.c.l.b16 %v766
        %v799 = vunpack.c.l.b16 %v767
        %v800 = vunpack.c.l.b16 %v768
        %v801 = vunpack.c.l.b16 %v769
        %v802 = vunpack.c.l.b16 %v770
        %v803 = vunpack.c.l.b16 %v771
        %v804 = vunpack.c.l.b16 %v772
        %v805 = vunpack.c.l.b16 %v773
        %v806 = vpack.c.b16 %v791, %v790
        %v807 = vpack.c.b16 %v793, %v792
        %v808 = vpack.c.b16 %v795, %v794
        %v809 = vpack.c.b16 %v797, %v796
        %v810 = vpack.c.b16 %v799, %v798
        %v811 = vpack.c.b16 %v801, %v800
        %v812 = vpack.c.b16 %v803, %v802
        %v813 = vpack.c.b16 %v805, %v804
        %822 = vmatprep.subr.bf16.mxu0 0
        %823 = vmatpush1.bf16.msra.mxu0 %v813
        %824 = vmatprep.subr.bf16.mxu0 0
        %825 = vmatpush1.bf16.msra.mxu0 %v812
        %826 = vmatprep.subr.bf16.mxu0 0
        %827 = vmatpush1.bf16.msra.mxu0 %v811
        %828 = vmatprep.subr.bf16.mxu0 0
        %829 = vmatpush1.bf16.msra.mxu0 %v810
        %830 = vmatprep.subr.bf16.mxu0 0
        %831 = vmatpush1.bf16.msra.mxu0 %v809
        %832 = vmatprep.subr.bf16.mxu0 0
        %833 = vmatpush1.bf16.msra.mxu0 %v808
        %834 = vmatprep.subr.bf16.mxu0 0
        %835 = vmatpush1.bf16.msra.mxu0 %v807
        %836 = vmatprep.subr.bf16.mxu0 0
        %837 = vmatpush1.bf16.msra.mxu0 %v806
        %838 = vmatprep.subr.bf16.mxu0 0
        %839 = vmatpush2.bf16.msra.mxu0 0
        %840 = vmatprep.subr.bf16.mxu0 0
        %841 = vmatpush2.bf16.msra.mxu0 0
        %842 = vmatprep.subr.bf16.mxu0 0
        %843 = vmatpush2.bf16.msra.mxu0 0
        %844 = vmatprep.subr.bf16.mxu0 0
        %845 = vmatpush2.bf16.msra.mxu0 0
        %846 = vmatprep.subr.bf16.mxu0 0
        %847 = vmatpush2.bf16.msra.mxu0 0
        %848 = vmatprep.subr.bf16.mxu0 0
        %849 = vmatpush2.bf16.msra.mxu0 0
        %850 = vmatprep.subr.bf16.mxu0 0
        %851 = vmatpush2.bf16.msra.mxu0 0
        %852 = vmatprep.subr.bf16.mxu0 0
        %853 = vmatpush2.bf16.msra.mxu0 0
        %854 = vmatprep.mubr.bf16.mxu0 0
        %855 = vmatmul.mubr.bf16.gmra.mxu0 %v749
        %v856 = vpop.f32.mrf.mxu0
        %v857 = vadd.f32 0.0, %v856
        %v858 = vpop.f32.mrf.mxu0
        %v859 = vpop.f32.mrf.mxu0
        %v860 = vadd.f32 0.0, %v859
        %v861 = vpop.f32.mrf.mxu0
        %862 = vmatprep.mubr.bf16.mxu0 0
        %863 = vmatmul.mubr.bf16.gmra.mxu0 %v750
        %v864 = vpop.f32.mrf.mxu0
        %v865 = vadd.f32 0.0, %v864
        %v866 = vpop.f32.mrf.mxu0
        %v867 = vpop.f32.mrf.mxu0
        %v868 = vadd.f32 0.0, %v867
        %v869 = vpop.f32.mrf.mxu0
        %870 = vmatprep.mubr.bf16.mxu0 0
        %871 = vmatmul.mubr.bf16.gmra.mxu0 %v751
        %v872 = vpop.f32.mrf.mxu0
        %v873 = vadd.f32 0.0, %v872
        %v874 = vpop.f32.mrf.mxu0
        %v875 = vpop.f32.mrf.mxu0
        %v876 = vadd.f32 0.0, %v875
        %v877 = vpop.f32.mrf.mxu0
        %878 = vmatprep.mubr.bf16.mxu0 0
        %879 = vmatmul.mubr.bf16.gmra.mxu0 %v752
        %v880 = vpop.f32.mrf.mxu0
        %v881 = vadd.f32 0.0, %v880
        %v882 = vpop.f32.mrf.mxu0
        %v883 = vpop.f32.mrf.mxu0
        %v884 = vadd.f32 0.0, %v883
        %v885 = vpop.f32.mrf.mxu0
        %886 = vmatprep.mubr.bf16.mxu0 0
        %887 = vmatmul.mubr.bf16.gmra.mxu0 %v753
        %v888 = vpop.f32.mrf.mxu0
        %v889 = vadd.f32 0.0, %v888
        %v890 = vpop.f32.mrf.mxu0
        %v891 = vpop.f32.mrf.mxu0
        %v892 = vadd.f32 0.0, %v891
        %v893 = vpop.f32.mrf.mxu0
        %894 = vmatprep.mubr.bf16.mxu0 0
        %895 = vmatmul.mubr.bf16.gmra.mxu0 %v754
        %v896 = vpop.f32.mrf.mxu0
        %v897 = vadd.f32 0.0, %v896
        %v898 = vpop.f32.mrf.mxu0
        %v899 = vpop.f32.mrf.mxu0
        %v900 = vadd.f32 0.0, %v899
        %v901 = vpop.f32.mrf.mxu0
        %902 = vmatprep.mubr.bf16.mxu0 0
        %903 = vmatmul.mubr.bf16.gmra.mxu0 %v755
        %v904 = vpop.f32.mrf.mxu0
        %v905 = vadd.f32 0.0, %v904
        %v906 = vpop.f32.mrf.mxu0
        %v907 = vpop.f32.mrf.mxu0
        %v908 = vadd.f32 0.0, %v907
        %v909 = vpop.f32.mrf.mxu0
        %910 = vmatprep.mubr.bf16.mxu0 0
        %911 = vmatmul.mubr.bf16.gmra.mxu0 %v756
        %v912 = vpop.f32.mrf.mxu0
        %v913 = vadd.f32 0.0, %v912
        %v914 = vpop.f32.mrf.mxu0
        %v915 = vpop.f32.mrf.mxu0
        %v916 = vadd.f32 0.0, %v915
        %v917 = vpop.f32.mrf.mxu0
        %918 = vdwg.mxu0
        %v919 = vadd.f32 %v671, %v857
        %v920 = vadd.f32 %v674, %v860
        %v921 = vadd.f32 %v679, %v865
        %v922 = vadd.f32 %v682, %v868
        %v923 = vadd.f32 %v687, %v873
        %v924 = vadd.f32 %v690, %v876
        %v925 = vadd.f32 %v695, %v881
        %v926 = vadd.f32 %v698, %v884
        %v927 = vadd.f32 %v703, %v889
        %v928 = vadd.f32 %v706, %v892
        %v929 = vadd.f32 %v711, %v897
        %v930 = vadd.f32 %v714, %v900
        %v931 = vadd.f32 %v719, %v905
        %v932 = vadd.f32 %v722, %v908
        %v933 = vadd.f32 %v727, %v913
        %v934 = vadd.f32 %v730, %v916
        %v935 = vld [vmem:[%s329] sm:$0xff]
        %v936 = vld [vmem:[%s329 + $0x8] sm:$0xff]
        %v937 = vld [vmem:[%s329 + $0x18] sm:$0xff]
        %v938 = vld [vmem:[%s329 + $0x20] sm:$0xff]
        %v939 = vld [vmem:[%s329 + $0x30] sm:$0xff]
        %v940 = vld [vmem:[%s329 + $0x38] sm:$0xff]
        %v941 = vld [vmem:[%s329 + $0x48] sm:$0xff]
        %v942 = vld [vmem:[%s329 + $0x50] sm:$0xff]
        %v943 = vld [vmem:[%s329 + $0x60] sm:$0xff]
        %v944 = vld [vmem:[%s329 + $0x68] sm:$0xff]
        %v945 = vld [vmem:[%s329 + $0x78] sm:$0xff]
        %v946 = vld [vmem:[%s329 + $0x80] sm:$0xff]
        %v947 = vld [vmem:[%s329 + $0x90] sm:$0xff]
        %v948 = vld [vmem:[%s329 + $0x98] sm:$0xff]
        %v949 = vld [vmem:[%s329 + $0xa8] sm:$0xff]
        %v950 = vld [vmem:[%s329 + $0xb0] sm:$0xff]
        %v951 = vpack.c.bf16 %v936, %v935
        %v952 = vpack.c.bf16 %v938, %v937
        %v953 = vpack.c.bf16 %v940, %v939
        %v954 = vpack.c.bf16 %v942, %v941
        %v955 = vpack.c.bf16 %v944, %v943
        %v956 = vpack.c.bf16 %v946, %v945
        %v957 = vpack.c.bf16 %v948, %v947
        %v958 = vpack.c.bf16 %v950, %v949
        %s959 = scalar_lea.vmem [#allocation6], 192
        %v960 = vld [vmem:[%s959] sm:$0xf]
        %v961 = vld [vmem:[%s959 + $0x4] sm:$0xf]
        %v962 = vld [vmem:[%s959 + $0x8] sm:$0xf]
        %v963 = vld [vmem:[%s959 + $0xc] sm:$0xf]
        %v964 = vld [vmem:[%s959 + $0x10] sm:$0xf]
        %v965 = vld [vmem:[%s959 + $0x14] sm:$0xf]
        %v966 = vld [vmem:[%s959 + $0x18] sm:$0xf]
        %v967 = vld [vmem:[%s959 + $0x1c] sm:$0xf]
        %v968 = vld [vmem:[%s959 + $0x20] sm:$0xf]
        %v969 = vld [vmem:[%s959 + $0x24] sm:$0xf]
        %v970 = vld [vmem:[%s959 + $0x28] sm:$0xf]
        %v971 = vld [vmem:[%s959 + $0x2c] sm:$0xf]
        %v972 = vld [vmem:[%s959 + $0x30] sm:$0xf]
        %v973 = vld [vmem:[%s959 + $0x34] sm:$0xf]
        %v974 = vld [vmem:[%s959 + $0x38] sm:$0xf]
        %v975 = vld [vmem:[%s959 + $0x3c] sm:$0xf]
        %v992 = vunpack.c.l.b16 %v960
        %v993 = vunpack.c.l.b16 %v961
        %v994 = vunpack.c.l.b16 %v962
        %v995 = vunpack.c.l.b16 %v963
        %v996 = vunpack.c.l.b16 %v964
        %v997 = vunpack.c.l.b16 %v965
        %v998 = vunpack.c.l.b16 %v966
        %v999 = vunpack.c.l.b16 %v967
        %v1000 = vunpack.c.l.b16 %v968
        %v1001 = vunpack.c.l.b16 %v969
        %v1002 = vunpack.c.l.b16 %v970
        %v1003 = vunpack.c.l.b16 %v971
        %v1004 = vunpack.c.l.b16 %v972
        %v1005 = vunpack.c.l.b16 %v973
        %v1006 = vunpack.c.l.b16 %v974
        %v1007 = vunpack.c.l.b16 %v975
        %v1008 = vpack.c.b16 %v993, %v992
        %v1009 = vpack.c.b16 %v995, %v994
        %v1010 = vpack.c.b16 %v997, %v996
        %v1011 = vpack.c.b16 %v999, %v998
        %v1012 = vpack.c.b16 %v1001, %v1000
        %v1013 = vpack.c.b16 %v1003, %v1002
        %v1014 = vpack.c.b16 %v1005, %v1004
        %v1015 = vpack.c.b16 %v1007, %v1006
        %1024 = vmatprep.subr.bf16.mxu0 0
        %1025 = vmatpush1.bf16.msra.mxu0 %v1015
        %1026 = vmatprep.subr.bf16.mxu0 0
        %1027 = vmatpush1.bf16.msra.mxu0 %v1014
        %1028 = vmatprep.subr.bf16.mxu0 0
        %1029 = vmatpush1.bf16.msra.mxu0 %v1013
        %1030 = vmatprep.subr.bf16.mxu0 0
        %1031 = vmatpush1.bf16.msra.mxu0 %v1012
        %1032 = vmatprep.subr.bf16.mxu0 0
        %1033 = vmatpush1.bf16.msra.mxu0 %v1011
        %1034 = vmatprep.subr.bf16.mxu0 0
        %1035 = vmatpush1.bf16.msra.mxu0 %v1010
        %1036 = vmatprep.subr.bf16.mxu0 0
        %1037 = vmatpush1.bf16.msra.mxu0 %v1009
        %1038 = vmatprep.subr.bf16.mxu0 0
        %1039 = vmatpush1.bf16.msra.mxu0 %v1008
        %1040 = vmatprep.subr.bf16.mxu0 0
        %1041 = vmatpush2.bf16.msra.mxu0 0
        %1042 = vmatprep.subr.bf16.mxu0 0
        %1043 = vmatpush2.bf16.msra.mxu0 0
        %1044 = vmatprep.subr.bf16.mxu0 0
        %1045 = vmatpush2.bf16.msra.mxu0 0
        %1046 = vmatprep.subr.bf16.mxu0 0
        %1047 = vmatpush2.bf16.msra.mxu0 0
        %1048 = vmatprep.subr.bf16.mxu0 0
        %1049 = vmatpush2.bf16.msra.mxu0 0
        %1050 = vmatprep.subr.bf16.mxu0 0
        %1051 = vmatpush2.bf16.msra.mxu0 0
        %1052 = vmatprep.subr.bf16.mxu0 0
        %1053 = vmatpush2.bf16.msra.mxu0 0
        %1054 = vmatprep.subr.bf16.mxu0 0
        %1055 = vmatpush2.bf16.msra.mxu0 0
        %1056 = vmatprep.mubr.bf16.mxu0 0
        %1057 = vmatmul.mubr.bf16.gmra.mxu0 %v951
        %v1058 = vpop.f32.mrf.mxu0
        %v1059 = vadd.f32 0.0, %v1058
        %v1060 = vpop.f32.mrf.mxu0
        %v1061 = vpop.f32.mrf.mxu0
        %v1062 = vadd.f32 0.0, %v1061
        %v1063 = vpop.f32.mrf.mxu0
        %1064 = vmatprep.mubr.bf16.mxu0 0
        %1065 = vmatmul.mubr.bf16.gmra.mxu0 %v952
        %v1066 = vpop.f32.mrf.mxu0
        %v1067 = vadd.f32 0.0, %v1066
        %v1068 = vpop.f32.mrf.mxu0
        %v1069 = vpop.f32.mrf.mxu0
        %v1070 = vadd.f32 0.0, %v1069
        %v1071 = vpop.f32.mrf.mxu0
        %1072 = vmatprep.mubr.bf16.mxu0 0
        %1073 = vmatmul.mubr.bf16.gmra.mxu0 %v953
        %v1074 = vpop.f32.mrf.mxu0
        %v1075 = vadd.f32 0.0, %v1074
        %v1076 = vpop.f32.mrf.mxu0
        %v1077 = vpop.f32.mrf.mxu0
        %v1078 = vadd.f32 0.0, %v1077
        %v1079 = vpop.f32.mrf.mxu0
        %1080 = vmatprep.mubr.bf16.mxu0 0
        %1081 = vmatmul.mubr.bf16.gmra.mxu0 %v954
        %v1082 = vpop.f32.mrf.mxu0
        %v1083 = vadd.f32 0.0, %v1082
        %v1084 = vpop.f32.mrf.mxu0
        %v1085 = vpop.f32.mrf.mxu0
        %v1086 = vadd.f32 0.0, %v1085
        %v1087 = vpop.f32.mrf.mxu0
        %1088 = vmatprep.mubr.bf16.mxu0 0
        %1089 = vmatmul.mubr.bf16.gmra.mxu0 %v955
        %v1090 = vpop.f32.mrf.mxu0
        %v1091 = vadd.f32 0.0, %v1090
        %v1092 = vpop.f32.mrf.mxu0
        %v1093 = vpop.f32.mrf.mxu0
        %v1094 = vadd.f32 0.0, %v1093
        %v1095 = vpop.f32.mrf.mxu0
        %1096 = vmatprep.mubr.bf16.mxu0 0
        %1097 = vmatmul.mubr.bf16.gmra.mxu0 %v956
        %v1098 = vpop.f32.mrf.mxu0
        %v1099 = vadd.f32 0.0, %v1098
        %v1100 = vpop.f32.mrf.mxu0
        %v1101 = vpop.f32.mrf.mxu0
        %v1102 = vadd.f32 0.0, %v1101
        %v1103 = vpop.f32.mrf.mxu0
        %1104 = vmatprep.mubr.bf16.mxu0 0
        %1105 = vmatmul.mubr.bf16.gmra.mxu0 %v957
        %v1106 = vpop.f32.mrf.mxu0
        %v1107 = vadd.f32 0.0, %v1106
        %v1108 = vpop.f32.mrf.mxu0
        %v1109 = vpop.f32.mrf.mxu0
        %v1110 = vadd.f32 0.0, %v1109
        %v1111 = vpop.f32.mrf.mxu0
        %1112 = vmatprep.mubr.bf16.mxu0 0
        %1113 = vmatmul.mubr.bf16.gmra.mxu0 %v958
        %v1114 = vpop.f32.mrf.mxu0
        %v1115 = vadd.f32 0.0, %v1114
        %v1116 = vpop.f32.mrf.mxu0
        %v1117 = vpop.f32.mrf.mxu0
        %v1118 = vadd.f32 0.0, %v1117
        %v1119 = vpop.f32.mrf.mxu0
        %1120 = vdwg.mxu0
        %v1121 = vadd.f32 %v919, %v1059
        %v1122 = vadd.f32 %v920, %v1062
        %v1123 = vadd.f32 %v921, %v1067
        %v1124 = vadd.f32 %v922, %v1070
        %v1125 = vadd.f32 %v923, %v1075
        %v1126 = vadd.f32 %v924, %v1078
        %v1127 = vadd.f32 %v925, %v1083
        %v1128 = vadd.f32 %v926, %v1086
        %v1129 = vadd.f32 %v927, %v1091
        %v1130 = vadd.f32 %v928, %v1094
        %v1131 = vadd.f32 %v929, %v1099
        %v1132 = vadd.f32 %v930, %v1102
        %v1133 = vadd.f32 %v931, %v1107
        %v1134 = vadd.f32 %v932, %v1110
        %v1135 = vadd.f32 %v933, %v1115
        %v1136 = vadd.f32 %v934, %v1118
        %v1137 = vld [vmem:[%s329 + $0x1] sm:$0xff]
        %v1138 = vld [vmem:[%s329 + $0x9] sm:$0xff]
        %v1139 = vld [vmem:[%s329 + $0x19] sm:$0xff]
        %v1140 = vld [vmem:[%s329 + $0x21] sm:$0xff]
        %v1141 = vld [vmem:[%s329 + $0x31] sm:$0xff]
        %v1142 = vld [vmem:[%s329 + $0x39] sm:$0xff]
        %v1143 = vld [vmem:[%s329 + $0x49] sm:$0xff]
        %v1144 = vld [vmem:[%s329 + $0x51] sm:$0xff]
        %v1145 = vld [vmem:[%s329 + $0x61] sm:$0xff]
        %v1146 = vld [vmem:[%s329 + $0x69] sm:$0xff]
        %v1147 = vld [vmem:[%s329 + $0x79] sm:$0xff]
        %v1148 = vld [vmem:[%s329 + $0x81] sm:$0xff]
        %v1149 = vld [vmem:[%s329 + $0x91] sm:$0xff]
        %v1150 = vld [vmem:[%s329 + $0x99] sm:$0xff]
        %v1151 = vld [vmem:[%s329 + $0xa9] sm:$0xff]
        %v1152 = vld [vmem:[%s329 + $0xb1] sm:$0xff]
        %v1153 = vpack.c.bf16 %v1138, %v1137
        %v1154 = vpack.c.bf16 %v1140, %v1139
        %v1155 = vpack.c.bf16 %v1142, %v1141
        %v1156 = vpack.c.bf16 %v1144, %v1143
        %v1157 = vpack.c.bf16 %v1146, %v1145
        %v1158 = vpack.c.bf16 %v1148, %v1147
        %v1159 = vpack.c.bf16 %v1150, %v1149
        %v1160 = vpack.c.bf16 %v1152, %v1151
        %s1161 = scalar_lea.vmem [#allocation6], 256
        %v1162 = vld [vmem:[%s1161] sm:$0xf]
        %v1163 = vld [vmem:[%s1161 + $0x4] sm:$0xf]
        %v1164 = vld [vmem:[%s1161 + $0x8] sm:$0xf]
        %v1165 = vld [vmem:[%s1161 + $0xc] sm:$0xf]
        %v1166 = vld [vmem:[%s1161 + $0x10] sm:$0xf]
        %v1167 = vld [vmem:[%s1161 + $0x14] sm:$0xf]
        %v1168 = vld [vmem:[%s1161 + $0x18] sm:$0xf]
        %v1169 = vld [vmem:[%s1161 + $0x1c] sm:$0xf]
        %v1170 = vld [vmem:[%s1161 + $0x20] sm:$0xf]
        %v1171 = vld [vmem:[%s1161 + $0x24] sm:$0xf]
        %v1172 = vld [vmem:[%s1161 + $0x28] sm:$0xf]
        %v1173 = vld [vmem:[%s1161 + $0x2c] sm:$0xf]
        %v1174 = vld [vmem:[%s1161 + $0x30] sm:$0xf]
        %v1175 = vld [vmem:[%s1161 + $0x34] sm:$0xf]
        %v1176 = vld [vmem:[%s1161 + $0x38] sm:$0xf]
        %v1177 = vld [vmem:[%s1161 + $0x3c] sm:$0xf]
        %v1194 = vunpack.c.l.b16 %v1162
        %v1195 = vunpack.c.l.b16 %v1163
        %v1196 = vunpack.c.l.b16 %v1164
        %v1197 = vunpack.c.l.b16 %v1165
        %v1198 = vunpack.c.l.b16 %v1166
        %v1199 = vunpack.c.l.b16 %v1167
        %v1200 = vunpack.c.l.b16 %v1168
        %v1201 = vunpack.c.l.b16 %v1169
        %v1202 = vunpack.c.l.b16 %v1170
        %v1203 = vunpack.c.l.b16 %v1171
        %v1204 = vunpack.c.l.b16 %v1172
        %v1205 = vunpack.c.l.b16 %v1173
        %v1206 = vunpack.c.l.b16 %v1174
        %v1207 = vunpack.c.l.b16 %v1175
        %v1208 = vunpack.c.l.b16 %v1176
        %v1209 = vunpack.c.l.b16 %v1177
        %v1210 = vpack.c.b16 %v1195, %v1194
        %v1211 = vpack.c.b16 %v1197, %v1196
        %v1212 = vpack.c.b16 %v1199, %v1198
        %v1213 = vpack.c.b16 %v1201, %v1200
        %v1214 = vpack.c.b16 %v1203, %v1202
        %v1215 = vpack.c.b16 %v1205, %v1204
        %v1216 = vpack.c.b16 %v1207, %v1206
        %v1217 = vpack.c.b16 %v1209, %v1208
        %1226 = vmatprep.subr.bf16.mxu0 0
        %1227 = vmatpush1.bf16.msra.mxu0 %v1217
        %1228 = vmatprep.subr.bf16.mxu0 0
        %1229 = vmatpush1.bf16.msra.mxu0 %v1216
        %1230 = vmatprep.subr.bf16.mxu0 0
        %1231 = vmatpush1.bf16.msra.mxu0 %v1215
        %1232 = vmatprep.subr.bf16.mxu0 0
        %1233 = vmatpush1.bf16.msra.mxu0 %v1214
        %1234 = vmatprep.subr.bf16.mxu0 0
        %1235 = vmatpush1.bf16.msra.mxu0 %v1213
        %1236 = vmatprep.subr.bf16.mxu0 0
        %1237 = vmatpush1.bf16.msra.mxu0 %v1212
        %1238 = vmatprep.subr.bf16.mxu0 0
        %1239 = vmatpush1.bf16.msra.mxu0 %v1211
        %1240 = vmatprep.subr.bf16.mxu0 0
        %1241 = vmatpush1.bf16.msra.mxu0 %v1210
        %1242 = vmatprep.subr.bf16.mxu0 0
        %1243 = vmatpush2.bf16.msra.mxu0 0
        %1244 = vmatprep.subr.bf16.mxu0 0
        %1245 = vmatpush2.bf16.msra.mxu0 0
        %1246 = vmatprep.subr.bf16.mxu0 0
        %1247 = vmatpush2.bf16.msra.mxu0 0
        %1248 = vmatprep.subr.bf16.mxu0 0
        %1249 = vmatpush2.bf16.msra.mxu0 0
        %1250 = vmatprep.subr.bf16.mxu0 0
        %1251 = vmatpush2.bf16.msra.mxu0 0
        %1252 = vmatprep.subr.bf16.mxu0 0
        %1253 = vmatpush2.bf16.msra.mxu0 0
        %1254 = vmatprep.subr.bf16.mxu0 0
        %1255 = vmatpush2.bf16.msra.mxu0 0
        %1256 = vmatprep.subr.bf16.mxu0 0
        %1257 = vmatpush2.bf16.msra.mxu0 0
        %1258 = vmatprep.mubr.bf16.mxu0 0
        %1259 = vmatmul.mubr.bf16.gmra.mxu0 %v1153
        %v1260 = vpop.f32.mrf.mxu0
        %v1261 = vadd.f32 0.0, %v1260
        %v1262 = vpop.f32.mrf.mxu0
        %v1263 = vpop.f32.mrf.mxu0
        %v1264 = vadd.f32 0.0, %v1263
        %v1265 = vpop.f32.mrf.mxu0
        %1266 = vmatprep.mubr.bf16.mxu0 0
        %1267 = vmatmul.mubr.bf16.gmra.mxu0 %v1154
        %v1268 = vpop.f32.mrf.mxu0
        %v1269 = vadd.f32 0.0, %v1268
        %v1270 = vpop.f32.mrf.mxu0
        %v1271 = vpop.f32.mrf.mxu0
        %v1272 = vadd.f32 0.0, %v1271
        %v1273 = vpop.f32.mrf.mxu0
        %1274 = vmatprep.mubr.bf16.mxu0 0
        %1275 = vmatmul.mubr.bf16.gmra.mxu0 %v1155
        %v1276 = vpop.f32.mrf.mxu0
        %v1277 = vadd.f32 0.0, %v1276
        %v1278 = vpop.f32.mrf.mxu0
        %v1279 = vpop.f32.mrf.mxu0
        %v1280 = vadd.f32 0.0, %v1279
        %v1281 = vpop.f32.mrf.mxu0
        %1282 = vmatprep.mubr.bf16.mxu0 0
        %1283 = vmatmul.mubr.bf16.gmra.mxu0 %v1156
        %v1284 = vpop.f32.mrf.mxu0
        %v1285 = vadd.f32 0.0, %v1284
        %v1286 = vpop.f32.mrf.mxu0
        %v1287 = vpop.f32.mrf.mxu0
        %v1288 = vadd.f32 0.0, %v1287
        %v1289 = vpop.f32.mrf.mxu0
        %1290 = vmatprep.mubr.bf16.mxu0 0
        %1291 = vmatmul.mubr.bf16.gmra.mxu0 %v1157
        %v1292 = vpop.f32.mrf.mxu0
        %v1293 = vadd.f32 0.0, %v1292
        %v1294 = vpop.f32.mrf.mxu0
        %v1295 = vpop.f32.mrf.mxu0
        %v1296 = vadd.f32 0.0, %v1295
        %v1297 = vpop.f32.mrf.mxu0
        %1298 = vmatprep.mubr.bf16.mxu0 0
        %1299 = vmatmul.mubr.bf16.gmra.mxu0 %v1158
        %v1300 = vpop.f32.mrf.mxu0
        %v1301 = vadd.f32 0.0, %v1300
        %v1302 = vpop.f32.mrf.mxu0
        %v1303 = vpop.f32.mrf.mxu0
        %v1304 = vadd.f32 0.0, %v1303
        %v1305 = vpop.f32.mrf.mxu0
        %1306 = vmatprep.mubr.bf16.mxu0 0
        %1307 = vmatmul.mubr.bf16.gmra.mxu0 %v1159
        %v1308 = vpop.f32.mrf.mxu0
        %v1309 = vadd.f32 0.0, %v1308
        %v1310 = vpop.f32.mrf.mxu0
        %v1311 = vpop.f32.mrf.mxu0
        %v1312 = vadd.f32 0.0, %v1311
        %v1313 = vpop.f32.mrf.mxu0
        %1314 = vmatprep.mubr.bf16.mxu0 0
        %1315 = vmatmul.mubr.bf16.gmra.mxu0 %v1160
        %v1316 = vpop.f32.mrf.mxu0
        %v1317 = vadd.f32 0.0, %v1316
        %v1318 = vpop.f32.mrf.mxu0
        %v1319 = vpop.f32.mrf.mxu0
        %v1320 = vadd.f32 0.0, %v1319
        %v1321 = vpop.f32.mrf.mxu0
        %1322 = vdwg.mxu0
        %v1323 = vadd.f32 %v1121, %v1261
        %v1324 = vadd.f32 %v1122, %v1264
        %v1325 = vadd.f32 %v1123, %v1269
        %v1326 = vadd.f32 %v1124, %v1272
        %v1327 = vadd.f32 %v1125, %v1277
        %v1328 = vadd.f32 %v1126, %v1280
        %v1329 = vadd.f32 %v1127, %v1285
        %v1330 = vadd.f32 %v1128, %v1288
        %v1331 = vadd.f32 %v1129, %v1293
        %v1332 = vadd.f32 %v1130, %v1296
        %v1333 = vadd.f32 %v1131, %v1301
        %v1334 = vadd.f32 %v1132, %v1304
        %v1335 = vadd.f32 %v1133, %v1309
        %v1336 = vadd.f32 %v1134, %v1312
        %v1337 = vadd.f32 %v1135, %v1317
        %v1338 = vadd.f32 %v1136, %v1320
        %v1339 = vld [vmem:[%s329 + $0x2] sm:$0xff]
        %v1340 = vld [vmem:[%s329 + $0xa] sm:$0xff]
        %v1341 = vld [vmem:[%s329 + $0x1a] sm:$0xff]
        %v1342 = vld [vmem:[%s329 + $0x22] sm:$0xff]
        %v1343 = vld [vmem:[%s329 + $0x32] sm:$0xff]
        %v1344 = vld [vmem:[%s329 + $0x3a] sm:$0xff]
        %v1345 = vld [vmem:[%s329 + $0x4a] sm:$0xff]
        %v1346 = vld [vmem:[%s329 + $0x52] sm:$0xff]
        %v1347 = vld [vmem:[%s329 + $0x62] sm:$0xff]
        %v1348 = vld [vmem:[%s329 + $0x6a] sm:$0xff]
        %v1349 = vld [vmem:[%s329 + $0x7a] sm:$0xff]
        %v1350 = vld [vmem:[%s329 + $0x82] sm:$0xff]
        %v1351 = vld [vmem:[%s329 + $0x92] sm:$0xff]
        %v1352 = vld [vmem:[%s329 + $0x9a] sm:$0xff]
        %v1353 = vld [vmem:[%s329 + $0xaa] sm:$0xff]
        %v1354 = vld [vmem:[%s329 + $0xb2] sm:$0xff]
        %v1355 = vpack.c.bf16 %v1340, %v1339
        %v1356 = vpack.c.bf16 %v1342, %v1341
        %v1357 = vpack.c.bf16 %v1344, %v1343
        %v1358 = vpack.c.bf16 %v1346, %v1345
        %v1359 = vpack.c.bf16 %v1348, %v1347
        %v1360 = vpack.c.bf16 %v1350, %v1349
        %v1361 = vpack.c.bf16 %v1352, %v1351
        %v1362 = vpack.c.bf16 %v1354, %v1353
        %s1363 = scalar_lea.vmem [#allocation6], 320
        %v1364 = vld [vmem:[%s1363] sm:$0xf]
        %v1365 = vld [vmem:[%s1363 + $0x4] sm:$0xf]
        %v1366 = vld [vmem:[%s1363 + $0x8] sm:$0xf]
        %v1367 = vld [vmem:[%s1363 + $0xc] sm:$0xf]
        %v1368 = vld [vmem:[%s1363 + $0x10] sm:$0xf]
        %v1369 = vld [vmem:[%s1363 + $0x14] sm:$0xf]
        %v1370 = vld [vmem:[%s1363 + $0x18] sm:$0xf]
        %v1371 = vld [vmem:[%s1363 + $0x1c] sm:$0xf]
        %v1372 = vld [vmem:[%s1363 + $0x20] sm:$0xf]
        %v1373 = vld [vmem:[%s1363 + $0x24] sm:$0xf]
        %v1374 = vld [vmem:[%s1363 + $0x28] sm:$0xf]
        %v1375 = vld [vmem:[%s1363 + $0x2c] sm:$0xf]
        %v1376 = vld [vmem:[%s1363 + $0x30] sm:$0xf]
        %v1377 = vld [vmem:[%s1363 + $0x34] sm:$0xf]
        %v1378 = vld [vmem:[%s1363 + $0x38] sm:$0xf]
        %v1379 = vld [vmem:[%s1363 + $0x3c] sm:$0xf]
        %v1396 = vunpack.c.l.b16 %v1364
        %v1397 = vunpack.c.l.b16 %v1365
        %v1398 = vunpack.c.l.b16 %v1366
        %v1399 = vunpack.c.l.b16 %v1367
        %v1400 = vunpack.c.l.b16 %v1368
        %v1401 = vunpack.c.l.b16 %v1369
        %v1402 = vunpack.c.l.b16 %v1370
        %v1403 = vunpack.c.l.b16 %v1371
        %v1404 = vunpack.c.l.b16 %v1372
        %v1405 = vunpack.c.l.b16 %v1373
        %v1406 = vunpack.c.l.b16 %v1374
        %v1407 = vunpack.c.l.b16 %v1375
        %v1408 = vunpack.c.l.b16 %v1376
        %v1409 = vunpack.c.l.b16 %v1377
        %v1410 = vunpack.c.l.b16 %v1378
        %v1411 = vunpack.c.l.b16 %v1379
        %v1412 = vpack.c.b16 %v1397, %v1396
        %v1413 = vpack.c.b16 %v1399, %v1398
        %v1414 = vpack.c.b16 %v1401, %v1400
        %v1415 = vpack.c.b16 %v1403, %v1402
        %v1416 = vpack.c.b16 %v1405, %v1404
        %v1417 = vpack.c.b16 %v1407, %v1406
        %v1418 = vpack.c.b16 %v1409, %v1408
        %v1419 = vpack.c.b16 %v1411, %v1410
        %1428 = vmatprep.subr.bf16.mxu0 0
        %1429 = vmatpush1.bf16.msra.mxu0 %v1419
        %1430 = vmatprep.subr.bf16.mxu0 0
        %1431 = vmatpush1.bf16.msra.mxu0 %v1418
        %1432 = vmatprep.subr.bf16.mxu0 0
        %1433 = vmatpush1.bf16.msra.mxu0 %v1417
        %1434 = vmatprep.subr.bf16.mxu0 0
        %1435 = vmatpush1.bf16.msra.mxu0 %v1416
        %1436 = vmatprep.subr.bf16.mxu0 0
        %1437 = vmatpush1.bf16.msra.mxu0 %v1415
        %1438 = vmatprep.subr.bf16.mxu0 0
        %1439 = vmatpush1.bf16.msra.mxu0 %v1414
        %1440 = vmatprep.subr.bf16.mxu0 0
        %1441 = vmatpush1.bf16.msra.mxu0 %v1413
        %1442 = vmatprep.subr.bf16.mxu0 0
        %1443 = vmatpush1.bf16.msra.mxu0 %v1412
        %1444 = vmatprep.subr.bf16.mxu0 0
        %1445 = vmatpush2.bf16.msra.mxu0 0
        %1446 = vmatprep.subr.bf16.mxu0 0
        %1447 = vmatpush2.bf16.msra.mxu0 0
        %1448 = vmatprep.subr.bf16.mxu0 0
        %1449 = vmatpush2.bf16.msra.mxu0 0
        %1450 = vmatprep.subr.bf16.mxu0 0
        %1451 = vmatpush2.bf16.msra.mxu0 0
        %1452 = vmatprep.subr.bf16.mxu0 0
        %1453 = vmatpush2.bf16.msra.mxu0 0
        %1454 = vmatprep.subr.bf16.mxu0 0
        %1455 = vmatpush2.bf16.msra.mxu0 0
        %1456 = vmatprep.subr.bf16.mxu0 0
        %1457 = vmatpush2.bf16.msra.mxu0 0
        %1458 = vmatprep.subr.bf16.mxu0 0
        %1459 = vmatpush2.bf16.msra.mxu0 0
        %1460 = vmatprep.mubr.bf16.mxu0 0
        %1461 = vmatmul.mubr.bf16.gmra.mxu0 %v1355
        %v1462 = vpop.f32.mrf.mxu0
        %v1463 = vadd.f32 0.0, %v1462
        %v1464 = vpop.f32.mrf.mxu0
        %v1465 = vpop.f32.mrf.mxu0
        %v1466 = vadd.f32 0.0, %v1465
        %v1467 = vpop.f32.mrf.mxu0
        %1468 = vmatprep.mubr.bf16.mxu0 0
        %1469 = vmatmul.mubr.bf16.gmra.mxu0 %v1356
        %v1470 = vpop.f32.mrf.mxu0
        %v1471 = vadd.f32 0.0, %v1470
        %v1472 = vpop.f32.mrf.mxu0
        %v1473 = vpop.f32.mrf.mxu0
        %v1474 = vadd.f32 0.0, %v1473
        %v1475 = vpop.f32.mrf.mxu0
        %1476 = vmatprep.mubr.bf16.mxu0 0
        %1477 = vmatmul.mubr.bf16.gmra.mxu0 %v1357
        %v1478 = vpop.f32.mrf.mxu0
        %v1479 = vadd.f32 0.0, %v1478
        %v1480 = vpop.f32.mrf.mxu0
        %v1481 = vpop.f32.mrf.mxu0
        %v1482 = vadd.f32 0.0, %v1481
        %v1483 = vpop.f32.mrf.mxu0
        %1484 = vmatprep.mubr.bf16.mxu0 0
        %1485 = vmatmul.mubr.bf16.gmra.mxu0 %v1358
        %v1486 = vpop.f32.mrf.mxu0
        %v1487 = vadd.f32 0.0, %v1486
        %v1488 = vpop.f32.mrf.mxu0
        %v1489 = vpop.f32.mrf.mxu0
        %v1490 = vadd.f32 0.0, %v1489
        %v1491 = vpop.f32.mrf.mxu0
        %1492 = vmatprep.mubr.bf16.mxu0 0
        %1493 = vmatmul.mubr.bf16.gmra.mxu0 %v1359
        %v1494 = vpop.f32.mrf.mxu0
        %v1495 = vadd.f32 0.0, %v1494
        %v1496 = vpop.f32.mrf.mxu0
        %v1497 = vpop.f32.mrf.mxu0
        %v1498 = vadd.f32 0.0, %v1497
        %v1499 = vpop.f32.mrf.mxu0
        %1500 = vmatprep.mubr.bf16.mxu0 0
        %1501 = vmatmul.mubr.bf16.gmra.mxu0 %v1360
        %v1502 = vpop.f32.mrf.mxu0
        %v1503 = vadd.f32 0.0, %v1502
        %v1504 = vpop.f32.mrf.mxu0
        %v1505 = vpop.f32.mrf.mxu0
        %v1506 = vadd.f32 0.0, %v1505
        %v1507 = vpop.f32.mrf.mxu0
        %1508 = vmatprep.mubr.bf16.mxu0 0
        %1509 = vmatmul.mubr.bf16.gmra.mxu0 %v1361
        %v1510 = vpop.f32.mrf.mxu0
        %v1511 = vadd.f32 0.0, %v1510
        %v1512 = vpop.f32.mrf.mxu0
        %v1513 = vpop.f32.mrf.mxu0
        %v1514 = vadd.f32 0.0, %v1513
        %v1515 = vpop.f32.mrf.mxu0
        %1516 = vmatprep.mubr.bf16.mxu0 0
        %1517 = vmatmul.mubr.bf16.gmra.mxu0 %v1362
        %v1518 = vpop.f32.mrf.mxu0
        %v1519 = vadd.f32 0.0, %v1518
        %v1520 = vpop.f32.mrf.mxu0
        %v1521 = vpop.f32.mrf.mxu0
        %v1522 = vadd.f32 0.0, %v1521
        %v1523 = vpop.f32.mrf.mxu0
        %1524 = vdwg.mxu0
        %v1525 = vadd.f32 %v1323, %v1463
        %v1526 = vadd.f32 %v1324, %v1466
        %v1527 = vadd.f32 %v1325, %v1471
        %v1528 = vadd.f32 %v1326, %v1474
        %v1529 = vadd.f32 %v1327, %v1479
        %v1530 = vadd.f32 %v1328, %v1482
        %v1531 = vadd.f32 %v1329, %v1487
        %v1532 = vadd.f32 %v1330, %v1490
        %v1533 = vadd.f32 %v1331, %v1495
        %v1534 = vadd.f32 %v1332, %v1498
        %v1535 = vadd.f32 %v1333, %v1503
        %v1536 = vadd.f32 %v1334, %v1506
        %v1537 = vadd.f32 %v1335, %v1511
        %v1538 = vadd.f32 %v1336, %v1514
        %v1539 = vadd.f32 %v1337, %v1519
        %v1540 = vadd.f32 %v1338, %v1522
        %s1541 = scalar_lea.vmem [#allocation2], 48
        %v1542 = vld [vmem:[%s1541] sm:$0xff]
        %v1543 = vld [vmem:[%s1541 + $0x8] sm:$0xff]
        %v1544 = vld [vmem:[%s1541 + $0x18] sm:$0xff]
        %v1545 = vld [vmem:[%s1541 + $0x20] sm:$0xff]
        %v1546 = vld [vmem:[%s1541 + $0x30] sm:$0xff]
        %v1547 = vld [vmem:[%s1541 + $0x38] sm:$0xff]
        %v1548 = vld [vmem:[%s1541 + $0x48] sm:$0xff]
        %v1549 = vld [vmem:[%s1541 + $0x50] sm:$0xff]
        %v1550 = vld [vmem:[%s1541 + $0x60] sm:$0xff]
        %v1551 = vld [vmem:[%s1541 + $0x68] sm:$0xff]
        %v1552 = vld [vmem:[%s1541 + $0x78] sm:$0xff]
        %v1553 = vld [vmem:[%s1541 + $0x80] sm:$0xff]
        %v1554 = vld [vmem:[%s1541 + $0x90] sm:$0xff]
        %v1555 = vld [vmem:[%s1541 + $0x98] sm:$0xff]
        %v1556 = vld [vmem:[%s1541 + $0xa8] sm:$0xff]
        %v1557 = vld [vmem:[%s1541 + $0xb0] sm:$0xff]
        %v1558 = vpack.c.bf16 %v1543, %v1542
        %v1559 = vpack.c.bf16 %v1545, %v1544
        %v1560 = vpack.c.bf16 %v1547, %v1546
        %v1561 = vpack.c.bf16 %v1549, %v1548
        %v1562 = vpack.c.bf16 %v1551, %v1550
        %v1563 = vpack.c.bf16 %v1553, %v1552
        %v1564 = vpack.c.bf16 %v1555, %v1554
        %v1565 = vpack.c.bf16 %v1557, %v1556
        %s1566 = scalar_lea.vmem [#allocation6], 384
        %v1567 = vld [vmem:[%s1566] sm:$0xf]
        %v1568 = vld [vmem:[%s1566 + $0x4] sm:$0xf]
        %v1569 = vld [vmem:[%s1566 + $0x8] sm:$0xf]
        %v1570 = vld [vmem:[%s1566 + $0xc] sm:$0xf]
        %v1571 = vld [vmem:[%s1566 + $0x10] sm:$0xf]
        %v1572 = vld [vmem:[%s1566 + $0x14] sm:$0xf]
        %v1573 = vld [vmem:[%s1566 + $0x18] sm:$0xf]
        %v1574 = vld [vmem:[%s1566 + $0x1c] sm:$0xf]
        %v1575 = vld [vmem:[%s1566 + $0x20] sm:$0xf]
        %v1576 = vld [vmem:[%s1566 + $0x24] sm:$0xf]
        %v1577 = vld [vmem:[%s1566 + $0x28] sm:$0xf]
        %v1578 = vld [vmem:[%s1566 + $0x2c] sm:$0xf]
        %v1579 = vld [vmem:[%s1566 + $0x30] sm:$0xf]
        %v1580 = vld [vmem:[%s1566 + $0x34] sm:$0xf]
        %v1581 = vld [vmem:[%s1566 + $0x38] sm:$0xf]
        %v1582 = vld [vmem:[%s1566 + $0x3c] sm:$0xf]
        %v1599 = vunpack.c.l.b16 %v1567
        %v1600 = vunpack.c.l.b16 %v1568
        %v1601 = vunpack.c.l.b16 %v1569
        %v1602 = vunpack.c.l.b16 %v1570
        %v1603 = vunpack.c.l.b16 %v1571
        %v1604 = vunpack.c.l.b16 %v1572
        %v1605 = vunpack.c.l.b16 %v1573
        %v1606 = vunpack.c.l.b16 %v1574
        %v1607 = vunpack.c.l.b16 %v1575
        %v1608 = vunpack.c.l.b16 %v1576
        %v1609 = vunpack.c.l.b16 %v1577
        %v1610 = vunpack.c.l.b16 %v1578
        %v1611 = vunpack.c.l.b16 %v1579
        %v1612 = vunpack.c.l.b16 %v1580
        %v1613 = vunpack.c.l.b16 %v1581
        %v1614 = vunpack.c.l.b16 %v1582
        %v1615 = vpack.c.b16 %v1600, %v1599
        %v1616 = vpack.c.b16 %v1602, %v1601
        %v1617 = vpack.c.b16 %v1604, %v1603
        %v1618 = vpack.c.b16 %v1606, %v1605
        %v1619 = vpack.c.b16 %v1608, %v1607
        %v1620 = vpack.c.b16 %v1610, %v1609
        %v1621 = vpack.c.b16 %v1612, %v1611
        %v1622 = vpack.c.b16 %v1614, %v1613
        %1631 = vmatprep.subr.bf16.mxu0 0
        %1632 = vmatpush1.bf16.msra.mxu0 %v1622
        %1633 = vmatprep.subr.bf16.mxu0 0
        %1634 = vmatpush1.bf16.msra.mxu0 %v1621
        %1635 = vmatprep.subr.bf16.mxu0 0
        %1636 = vmatpush1.bf16.msra.mxu0 %v1620
        %1637 = vmatprep.subr.bf16.mxu0 0
        %1638 = vmatpush1.bf16.msra.mxu0 %v1619
        %1639 = vmatprep.subr.bf16.mxu0 0
        %1640 = vmatpush1.bf16.msra.mxu0 %v1618
        %1641 = vmatprep.subr.bf16.mxu0 0
        %1642 = vmatpush1.bf16.msra.mxu0 %v1617
        %1643 = vmatprep.subr.bf16.mxu0 0
        %1644 = vmatpush1.bf16.msra.mxu0 %v1616
        %1645 = vmatprep.subr.bf16.mxu0 0
        %1646 = vmatpush1.bf16.msra.mxu0 %v1615
        %1647 = vmatprep.subr.bf16.mxu0 0
        %1648 = vmatpush2.bf16.msra.mxu0 0
        %1649 = vmatprep.subr.bf16.mxu0 0
        %1650 = vmatpush2.bf16.msra.mxu0 0
        %1651 = vmatprep.subr.bf16.mxu0 0
        %1652 = vmatpush2.bf16.msra.mxu0 0
        %1653 = vmatprep.subr.bf16.mxu0 0
        %1654 = vmatpush2.bf16.msra.mxu0 0
        %1655 = vmatprep.subr.bf16.mxu0 0
        %1656 = vmatpush2.bf16.msra.mxu0 0
        %1657 = vmatprep.subr.bf16.mxu0 0
        %1658 = vmatpush2.bf16.msra.mxu0 0
        %1659 = vmatprep.subr.bf16.mxu0 0
        %1660 = vmatpush2.bf16.msra.mxu0 0
        %1661 = vmatprep.subr.bf16.mxu0 0
        %1662 = vmatpush2.bf16.msra.mxu0 0
        %1663 = vmatprep.mubr.bf16.mxu0 0
        %1664 = vmatmul.mubr.bf16.gmra.mxu0 %v1558
        %v1665 = vpop.f32.mrf.mxu0
        %v1666 = vadd.f32 0.0, %v1665
        %v1667 = vpop.f32.mrf.mxu0
        %v1668 = vpop.f32.mrf.mxu0
        %v1669 = vadd.f32 0.0, %v1668
        %v1670 = vpop.f32.mrf.mxu0
        %1671 = vmatprep.mubr.bf16.mxu0 0
        %1672 = vmatmul.mubr.bf16.gmra.mxu0 %v1559
        %v1673 = vpop.f32.mrf.mxu0
        %v1674 = vadd.f32 0.0, %v1673
        %v1675 = vpop.f32.mrf.mxu0
        %v1676 = vpop.f32.mrf.mxu0
        %v1677 = vadd.f32 0.0, %v1676
        %v1678 = vpop.f32.mrf.mxu0
        %1679 = vmatprep.mubr.bf16.mxu0 0
        %1680 = vmatmul.mubr.bf16.gmra.mxu0 %v1560
        %v1681 = vpop.f32.mrf.mxu0
        %v1682 = vadd.f32 0.0, %v1681
        %v1683 = vpop.f32.mrf.mxu0
        %v1684 = vpop.f32.mrf.mxu0
        %v1685 = vadd.f32 0.0, %v1684
        %v1686 = vpop.f32.mrf.mxu0
        %1687 = vmatprep.mubr.bf16.mxu0 0
        %1688 = vmatmul.mubr.bf16.gmra.mxu0 %v1561
        %v1689 = vpop.f32.mrf.mxu0
        %v1690 = vadd.f32 0.0, %v1689
        %v1691 = vpop.f32.mrf.mxu0
        %v1692 = vpop.f32.mrf.mxu0
        %v1693 = vadd.f32 0.0, %v1692
        %v1694 = vpop.f32.mrf.mxu0
        %1695 = vmatprep.mubr.bf16.mxu0 0
        %1696 = vmatmul.mubr.bf16.gmra.mxu0 %v1562
        %v1697 = vpop.f32.mrf.mxu0
        %v1698 = vadd.f32 0.0, %v1697
        %v1699 = vpop.f32.mrf.mxu0
        %v1700 = vpop.f32.mrf.mxu0
        %v1701 = vadd.f32 0.0, %v1700
        %v1702 = vpop.f32.mrf.mxu0
        %1703 = vmatprep.mubr.bf16.mxu0 0
        %1704 = vmatmul.mubr.bf16.gmra.mxu0 %v1563
        %v1705 = vpop.f32.mrf.mxu0
        %v1706 = vadd.f32 0.0, %v1705
        %v1707 = vpop.f32.mrf.mxu0
        %v1708 = vpop.f32.mrf.mxu0
        %v1709 = vadd.f32 0.0, %v1708
        %v1710 = vpop.f32.mrf.mxu0
        %1711 = vmatprep.mubr.bf16.mxu0 0
        %1712 = vmatmul.mubr.bf16.gmra.mxu0 %v1564
        %v1713 = vpop.f32.mrf.mxu0
        %v1714 = vadd.f32 0.0, %v1713
        %v1715 = vpop.f32.mrf.mxu0
        %v1716 = vpop.f32.mrf.mxu0
        %v1717 = vadd.f32 0.0, %v1716
        %v1718 = vpop.f32.mrf.mxu0
        %1719 = vmatprep.mubr.bf16.mxu0 0
        %1720 = vmatmul.mubr.bf16.gmra.mxu0 %v1565
        %v1721 = vpop.f32.mrf.mxu0
        %v1722 = vadd.f32 0.0, %v1721
        %v1723 = vpop.f32.mrf.mxu0
        %v1724 = vpop.f32.mrf.mxu0
        %v1725 = vadd.f32 0.0, %v1724
        %v1726 = vpop.f32.mrf.mxu0
        %1727 = vdwg.mxu0
        %v1728 = vadd.f32 %v1525, %v1666
        %v1729 = vadd.f32 %v1526, %v1669
        %v1730 = vadd.f32 %v1527, %v1674
        %v1731 = vadd.f32 %v1528, %v1677
        %v1732 = vadd.f32 %v1529, %v1682
        %v1733 = vadd.f32 %v1530, %v1685
        %v1734 = vadd.f32 %v1531, %v1690
        %v1735 = vadd.f32 %v1532, %v1693
        %v1736 = vadd.f32 %v1533, %v1698
        %v1737 = vadd.f32 %v1534, %v1701
        %v1738 = vadd.f32 %v1535, %v1706
        %v1739 = vadd.f32 %v1536, %v1709
        %v1740 = vadd.f32 %v1537, %v1714
        %v1741 = vadd.f32 %v1538, %v1717
        %v1742 = vadd.f32 %v1539, %v1722
        %v1743 = vadd.f32 %v1540, %v1725
        %v1744 = vld [vmem:[%s1541 + $0x1] sm:$0xff]
        %v1745 = vld [vmem:[%s1541 + $0x9] sm:$0xff]
        %v1746 = vld [vmem:[%s1541 + $0x19] sm:$0xff]
        %v1747 = vld [vmem:[%s1541 + $0x21] sm:$0xff]
        %v1748 = vld [vmem:[%s1541 + $0x31] sm:$0xff]
        %v1749 = vld [vmem:[%s1541 + $0x39] sm:$0xff]
        %v1750 = vld [vmem:[%s1541 + $0x49] sm:$0xff]
        %v1751 = vld [vmem:[%s1541 + $0x51] sm:$0xff]
        %v1752 = vld [vmem:[%s1541 + $0x61] sm:$0xff]
        %v1753 = vld [vmem:[%s1541 + $0x69] sm:$0xff]
        %v1754 = vld [vmem:[%s1541 + $0x79] sm:$0xff]
        %v1755 = vld [vmem:[%s1541 + $0x81] sm:$0xff]
        %v1756 = vld [vmem:[%s1541 + $0x91] sm:$0xff]
        %v1757 = vld [vmem:[%s1541 + $0x99] sm:$0xff]
        %v1758 = vld [vmem:[%s1541 + $0xa9] sm:$0xff]
        %v1759 = vld [vmem:[%s1541 + $0xb1] sm:$0xff]
        %v1760 = vpack.c.bf16 %v1745, %v1744
        %v1761 = vpack.c.bf16 %v1747, %v1746
        %v1762 = vpack.c.bf16 %v1749, %v1748
        %v1763 = vpack.c.bf16 %v1751, %v1750
        %v1764 = vpack.c.bf16 %v1753, %v1752
        %v1765 = vpack.c.bf16 %v1755, %v1754
        %v1766 = vpack.c.bf16 %v1757, %v1756
        %v1767 = vpack.c.bf16 %v1759, %v1758
        %s1768 = scalar_lea.vmem [#allocation6], 448
        %v1769 = vld [vmem:[%s1768] sm:$0xf]
        %v1770 = vld [vmem:[%s1768 + $0x4] sm:$0xf]
        %v1771 = vld [vmem:[%s1768 + $0x8] sm:$0xf]
        %v1772 = vld [vmem:[%s1768 + $0xc] sm:$0xf]
        %v1773 = vld [vmem:[%s1768 + $0x10] sm:$0xf]
        %v1774 = vld [vmem:[%s1768 + $0x14] sm:$0xf]
        %v1775 = vld [vmem:[%s1768 + $0x18] sm:$0xf]
        %v1776 = vld [vmem:[%s1768 + $0x1c] sm:$0xf]
        %v1777 = vld [vmem:[%s1768 + $0x20] sm:$0xf]
        %v1778 = vld [vmem:[%s1768 + $0x24] sm:$0xf]
        %v1779 = vld [vmem:[%s1768 + $0x28] sm:$0xf]
        %v1780 = vld [vmem:[%s1768 + $0x2c] sm:$0xf]
        %v1781 = vld [vmem:[%s1768 + $0x30] sm:$0xf]
        %v1782 = vld [vmem:[%s1768 + $0x34] sm:$0xf]
        %v1783 = vld [vmem:[%s1768 + $0x38] sm:$0xf]
        %v1784 = vld [vmem:[%s1768 + $0x3c] sm:$0xf]
        %v1801 = vunpack.c.l.b16 %v1769
        %v1802 = vunpack.c.l.b16 %v1770
        %v1803 = vunpack.c.l.b16 %v1771
        %v1804 = vunpack.c.l.b16 %v1772
        %v1805 = vunpack.c.l.b16 %v1773
        %v1806 = vunpack.c.l.b16 %v1774
        %v1807 = vunpack.c.l.b16 %v1775
        %v1808 = vunpack.c.l.b16 %v1776
        %v1809 = vunpack.c.l.b16 %v1777
        %v1810 = vunpack.c.l.b16 %v1778
        %v1811 = vunpack.c.l.b16 %v1779
        %v1812 = vunpack.c.l.b16 %v1780
        %v1813 = vunpack.c.l.b16 %v1781
        %v1814 = vunpack.c.l.b16 %v1782
        %v1815 = vunpack.c.l.b16 %v1783
        %v1816 = vunpack.c.l.b16 %v1784
        %v1817 = vpack.c.b16 %v1802, %v1801
        %v1818 = vpack.c.b16 %v1804, %v1803
        %v1819 = vpack.c.b16 %v1806, %v1805
        %v1820 = vpack.c.b16 %v1808, %v1807
        %v1821 = vpack.c.b16 %v1810, %v1809
        %v1822 = vpack.c.b16 %v1812, %v1811
        %v1823 = vpack.c.b16 %v1814, %v1813
        %v1824 = vpack.c.b16 %v1816, %v1815
        %1833 = vmatprep.subr.bf16.mxu0 0
        %1834 = vmatpush1.bf16.msra.mxu0 %v1824
        %1835 = vmatprep.subr.bf16.mxu0 0
        %1836 = vmatpush1.bf16.msra.mxu0 %v1823
        %1837 = vmatprep.subr.bf16.mxu0 0
        %1838 = vmatpush1.bf16.msra.mxu0 %v1822
        %1839 = vmatprep.subr.bf16.mxu0 0
        %1840 = vmatpush1.bf16.msra.mxu0 %v1821
        %1841 = vmatprep.subr.bf16.mxu0 0
        %1842 = vmatpush1.bf16.msra.mxu0 %v1820
        %1843 = vmatprep.subr.bf16.mxu0 0
        %1844 = vmatpush1.bf16.msra.mxu0 %v1819
        %1845 = vmatprep.subr.bf16.mxu0 0
        %1846 = vmatpush1.bf16.msra.mxu0 %v1818
        %1847 = vmatprep.subr.bf16.mxu0 0
        %1848 = vmatpush1.bf16.msra.mxu0 %v1817
        %1849 = vmatprep.subr.bf16.mxu0 0
        %1850 = vmatpush2.bf16.msra.mxu0 0
        %1851 = vmatprep.subr.bf16.mxu0 0
        %1852 = vmatpush2.bf16.msra.mxu0 0
        %1853 = vmatprep.subr.bf16.mxu0 0
        %1854 = vmatpush2.bf16.msra.mxu0 0
        %1855 = vmatprep.subr.bf16.mxu0 0
        %1856 = vmatpush2.bf16.msra.mxu0 0
        %1857 = vmatprep.subr.bf16.mxu0 0
        %1858 = vmatpush2.bf16.msra.mxu0 0
        %1859 = vmatprep.subr.bf16.mxu0 0
        %1860 = vmatpush2.bf16.msra.mxu0 0
        %1861 = vmatprep.subr.bf16.mxu0 0
        %1862 = vmatpush2.bf16.msra.mxu0 0
        %1863 = vmatprep.subr.bf16.mxu0 0
        %1864 = vmatpush2.bf16.msra.mxu0 0
        %1865 = vmatprep.mubr.bf16.mxu0 0
        %1866 = vmatmul.mubr.bf16.gmra.mxu0 %v1760
        %v1867 = vpop.f32.mrf.mxu0
        %v1868 = vadd.f32 0.0, %v1867
        %v1869 = vpop.f32.mrf.mxu0
        %v1870 = vpop.f32.mrf.mxu0
        %v1871 = vadd.f32 0.0, %v1870
        %v1872 = vpop.f32.mrf.mxu0
        %1873 = vmatprep.mubr.bf16.mxu0 0
        %1874 = vmatmul.mubr.bf16.gmra.mxu0 %v1761
        %v1875 = vpop.f32.mrf.mxu0
        %v1876 = vadd.f32 0.0, %v1875
        %v1877 = vpop.f32.mrf.mxu0
        %v1878 = vpop.f32.mrf.mxu0
        %v1879 = vadd.f32 0.0, %v1878
        %v1880 = vpop.f32.mrf.mxu0
        %1881 = vmatprep.mubr.bf16.mxu0 0
        %1882 = vmatmul.mubr.bf16.gmra.mxu0 %v1762
        %v1883 = vpop.f32.mrf.mxu0
        %v1884 = vadd.f32 0.0, %v1883
        %v1885 = vpop.f32.mrf.mxu0
        %v1886 = vpop.f32.mrf.mxu0
        %v1887 = vadd.f32 0.0, %v1886
        %v1888 = vpop.f32.mrf.mxu0
        %1889 = vmatprep.mubr.bf16.mxu0 0
        %1890 = vmatmul.mubr.bf16.gmra.mxu0 %v1763
        %v1891 = vpop.f32.mrf.mxu0
        %v1892 = vadd.f32 0.0, %v1891
        %v1893 = vpop.f32.mrf.mxu0
        %v1894 = vpop.f32.mrf.mxu0
        %v1895 = vadd.f32 0.0, %v1894
        %v1896 = vpop.f32.mrf.mxu0
        %1897 = vmatprep.mubr.bf16.mxu0 0
        %1898 = vmatmul.mubr.bf16.gmra.mxu0 %v1764
        %v1899 = vpop.f32.mrf.mxu0
        %v1900 = vadd.f32 0.0, %v1899
        %v1901 = vpop.f32.mrf.mxu0
        %v1902 = vpop.f32.mrf.mxu0
        %v1903 = vadd.f32 0.0, %v1902
        %v1904 = vpop.f32.mrf.mxu0
        %1905 = vmatprep.mubr.bf16.mxu0 0
        %1906 = vmatmul.mubr.bf16.gmra.mxu0 %v1765
        %v1907 = vpop.f32.mrf.mxu0
        %v1908 = vadd.f32 0.0, %v1907
        %v1909 = vpop.f32.mrf.mxu0
        %v1910 = vpop.f32.mrf.mxu0
        %v1911 = vadd.f32 0.0, %v1910
        %v1912 = vpop.f32.mrf.mxu0
        %1913 = vmatprep.mubr.bf16.mxu0 0
        %1914 = vmatmul.mubr.bf16.gmra.mxu0 %v1766
        %v1915 = vpop.f32.mrf.mxu0
        %v1916 = vadd.f32 0.0, %v1915
        %v1917 = vpop.f32.mrf.mxu0
        %v1918 = vpop.f32.mrf.mxu0
        %v1919 = vadd.f32 0.0, %v1918
        %v1920 = vpop.f32.mrf.mxu0
        %1921 = vmatprep.mubr.bf16.mxu0 0
        %1922 = vmatmul.mubr.bf16.gmra.mxu0 %v1767
        %v1923 = vpop.f32.mrf.mxu0
        %v1924 = vadd.f32 0.0, %v1923
        %v1925 = vpop.f32.mrf.mxu0
        %v1926 = vpop.f32.mrf.mxu0
        %v1927 = vadd.f32 0.0, %v1926
        %v1928 = vpop.f32.mrf.mxu0
        %1929 = vdwg.mxu0
        %v1930 = vadd.f32 %v1728, %v1868
        %v1931 = vadd.f32 %v1729, %v1871
        %v1932 = vadd.f32 %v1730, %v1876
        %v1933 = vadd.f32 %v1731, %v1879
        %v1934 = vadd.f32 %v1732, %v1884
        %v1935 = vadd.f32 %v1733, %v1887
        %v1936 = vadd.f32 %v1734, %v1892
        %v1937 = vadd.f32 %v1735, %v1895
        %v1938 = vadd.f32 %v1736, %v1900
        %v1939 = vadd.f32 %v1737, %v1903
        %v1940 = vadd.f32 %v1738, %v1908
        %v1941 = vadd.f32 %v1739, %v1911
        %v1942 = vadd.f32 %v1740, %v1916
        %v1943 = vadd.f32 %v1741, %v1919
        %v1944 = vadd.f32 %v1742, %v1924
        %v1945 = vadd.f32 %v1743, %v1927
        %v1946 = vld [vmem:[%s1541 + $0x2] sm:$0xff]
        %v1947 = vld [vmem:[%s1541 + $0xa] sm:$0xff]
        %v1948 = vld [vmem:[%s1541 + $0x1a] sm:$0xff]
        %v1949 = vld [vmem:[%s1541 + $0x22] sm:$0xff]
        %v1950 = vld [vmem:[%s1541 + $0x32] sm:$0xff]
        %v1951 = vld [vmem:[%s1541 + $0x3a] sm:$0xff]
        %v1952 = vld [vmem:[%s1541 + $0x4a] sm:$0xff]
        %v1953 = vld [vmem:[%s1541 + $0x52] sm:$0xff]
        %v1954 = vld [vmem:[%s1541 + $0x62] sm:$0xff]
        %v1955 = vld [vmem:[%s1541 + $0x6a] sm:$0xff]
        %v1956 = vld [vmem:[%s1541 + $0x7a] sm:$0xff]
        %v1957 = vld [vmem:[%s1541 + $0x82] sm:$0xff]
        %v1958 = vld [vmem:[%s1541 + $0x92] sm:$0xff]
        %v1959 = vld [vmem:[%s1541 + $0x9a] sm:$0xff]
        %v1960 = vld [vmem:[%s1541 + $0xaa] sm:$0xff]
        %v1961 = vld [vmem:[%s1541 + $0xb2] sm:$0xff]
        %v1962 = vpack.c.bf16 %v1947, %v1946
        %v1963 = vpack.c.bf16 %v1949, %v1948
        %v1964 = vpack.c.bf16 %v1951, %v1950
        %v1965 = vpack.c.bf16 %v1953, %v1952
        %v1966 = vpack.c.bf16 %v1955, %v1954
        %v1967 = vpack.c.bf16 %v1957, %v1956
        %v1968 = vpack.c.bf16 %v1959, %v1958
        %v1969 = vpack.c.bf16 %v1961, %v1960
        %s1970 = scalar_lea.vmem [#allocation6], 512
        %v1971 = vld [vmem:[%s1970] sm:$0xf]
        %v1972 = vld [vmem:[%s1970 + $0x4] sm:$0xf]
        %v1973 = vld [vmem:[%s1970 + $0x8] sm:$0xf]
        %v1974 = vld [vmem:[%s1970 + $0xc] sm:$0xf]
        %v1975 = vld [vmem:[%s1970 + $0x10] sm:$0xf]
        %v1976 = vld [vmem:[%s1970 + $0x14] sm:$0xf]
        %v1977 = vld [vmem:[%s1970 + $0x18] sm:$0xf]
        %v1978 = vld [vmem:[%s1970 + $0x1c] sm:$0xf]
        %v1979 = vld [vmem:[%s1970 + $0x20] sm:$0xf]
        %v1980 = vld [vmem:[%s1970 + $0x24] sm:$0xf]
        %v1981 = vld [vmem:[%s1970 + $0x28] sm:$0xf]
        %v1982 = vld [vmem:[%s1970 + $0x2c] sm:$0xf]
        %v1983 = vld [vmem:[%s1970 + $0x30] sm:$0xf]
        %v1984 = vld [vmem:[%s1970 + $0x34] sm:$0xf]
        %v1985 = vld [vmem:[%s1970 + $0x38] sm:$0xf]
        %v1986 = vld [vmem:[%s1970 + $0x3c] sm:$0xf]
        %v2003 = vunpack.c.l.b16 %v1971
        %v2004 = vunpack.c.l.b16 %v1972
        %v2005 = vunpack.c.l.b16 %v1973
        %v2006 = vunpack.c.l.b16 %v1974
        %v2007 = vunpack.c.l.b16 %v1975
        %v2008 = vunpack.c.l.b16 %v1976
        %v2009 = vunpack.c.l.b16 %v1977
        %v2010 = vunpack.c.l.b16 %v1978
        %v2011 = vunpack.c.l.b16 %v1979
        %v2012 = vunpack.c.l.b16 %v1980
        %v2013 = vunpack.c.l.b16 %v1981
        %v2014 = vunpack.c.l.b16 %v1982
        %v2015 = vunpack.c.l.b16 %v1983
        %v2016 = vunpack.c.l.b16 %v1984
        %v2017 = vunpack.c.l.b16 %v1985
        %v2018 = vunpack.c.l.b16 %v1986
        %v2019 = vpack.c.b16 %v2004, %v2003
        %v2020 = vpack.c.b16 %v2006, %v2005
        %v2021 = vpack.c.b16 %v2008, %v2007
        %v2022 = vpack.c.b16 %v2010, %v2009
        %v2023 = vpack.c.b16 %v2012, %v2011
        %v2024 = vpack.c.b16 %v2014, %v2013
        %v2025 = vpack.c.b16 %v2016, %v2015
        %v2026 = vpack.c.b16 %v2018, %v2017
        %2035 = vmatprep.subr.bf16.mxu0 0
        %2036 = vmatpush1.bf16.msra.mxu0 %v2026
        %2037 = vmatprep.subr.bf16.mxu0 0
        %2038 = vmatpush1.bf16.msra.mxu0 %v2025
        %2039 = vmatprep.subr.bf16.mxu0 0
        %2040 = vmatpush1.bf16.msra.mxu0 %v2024
        %2041 = vmatprep.subr.bf16.mxu0 0
        %2042 = vmatpush1.bf16.msra.mxu0 %v2023
        %2043 = vmatprep.subr.bf16.mxu0 0
        %2044 = vmatpush1.bf16.msra.mxu0 %v2022
        %2045 = vmatprep.subr.bf16.mxu0 0
        %2046 = vmatpush1.bf16.msra.mxu0 %v2021
        %2047 = vmatprep.subr.bf16.mxu0 0
        %2048 = vmatpush1.bf16.msra.mxu0 %v2020
        %2049 = vmatprep.subr.bf16.mxu0 0
        %2050 = vmatpush1.bf16.msra.mxu0 %v2019
        %2051 = vmatprep.subr.bf16.mxu0 0
        %2052 = vmatpush2.bf16.msra.mxu0 0
        %2053 = vmatprep.subr.bf16.mxu0 0
        %2054 = vmatpush2.bf16.msra.mxu0 0
        %2055 = vmatprep.subr.bf16.mxu0 0
        %2056 = vmatpush2.bf16.msra.mxu0 0
        %2057 = vmatprep.subr.bf16.mxu0 0
        %2058 = vmatpush2.bf16.msra.mxu0 0
        %2059 = vmatprep.subr.bf16.mxu0 0
        %2060 = vmatpush2.bf16.msra.mxu0 0
        %2061 = vmatprep.subr.bf16.mxu0 0
        %2062 = vmatpush2.bf16.msra.mxu0 0
        %2063 = vmatprep.subr.bf16.mxu0 0
        %2064 = vmatpush2.bf16.msra.mxu0 0
        %2065 = vmatprep.subr.bf16.mxu0 0
        %2066 = vmatpush2.bf16.msra.mxu0 0
        %2067 = vmatprep.mubr.bf16.mxu0 0
        %2068 = vmatmul.mubr.bf16.gmra.mxu0 %v1962
        %v2069 = vpop.f32.mrf.mxu0
        %v2070 = vadd.f32 0.0, %v2069
        %v2071 = vpop.f32.mrf.mxu0
        %v2072 = vpop.f32.mrf.mxu0
        %v2073 = vadd.f32 0.0, %v2072
        %v2074 = vpop.f32.mrf.mxu0
        %2075 = vmatprep.mubr.bf16.mxu0 0
        %2076 = vmatmul.mubr.bf16.gmra.mxu0 %v1963
        %v2077 = vpop.f32.mrf.mxu0
        %v2078 = vadd.f32 0.0, %v2077
        %v2079 = vpop.f32.mrf.mxu0
        %v2080 = vpop.f32.mrf.mxu0
        %v2081 = vadd.f32 0.0, %v2080
        %v2082 = vpop.f32.mrf.mxu0
        %2083 = vmatprep.mubr.bf16.mxu0 0
        %2084 = vmatmul.mubr.bf16.gmra.mxu0 %v1964
        %v2085 = vpop.f32.mrf.mxu0
        %v2086 = vadd.f32 0.0, %v2085
        %v2087 = vpop.f32.mrf.mxu0
        %v2088 = vpop.f32.mrf.mxu0
        %v2089 = vadd.f32 0.0, %v2088
        %v2090 = vpop.f32.mrf.mxu0
        %2091 = vmatprep.mubr.bf16.mxu0 0
        %2092 = vmatmul.mubr.bf16.gmra.mxu0 %v1965
        %v2093 = vpop.f32.mrf.mxu0
        %v2094 = vadd.f32 0.0, %v2093
        %v2095 = vpop.f32.mrf.mxu0
        %v2096 = vpop.f32.mrf.mxu0
        %v2097 = vadd.f32 0.0, %v2096
        %v2098 = vpop.f32.mrf.mxu0
        %2099 = vmatprep.mubr.bf16.mxu0 0
        %2100 = vmatmul.mubr.bf16.gmra.mxu0 %v1966
        %v2101 = vpop.f32.mrf.mxu0
        %v2102 = vadd.f32 0.0, %v2101
        %v2103 = vpop.f32.mrf.mxu0
        %v2104 = vpop.f32.mrf.mxu0
        %v2105 = vadd.f32 0.0, %v2104
        %v2106 = vpop.f32.mrf.mxu0
        %2107 = vmatprep.mubr.bf16.mxu0 0
        %2108 = vmatmul.mubr.bf16.gmra.mxu0 %v1967
        %v2109 = vpop.f32.mrf.mxu0
        %v2110 = vadd.f32 0.0, %v2109
        %v2111 = vpop.f32.mrf.mxu0
        %v2112 = vpop.f32.mrf.mxu0
        %v2113 = vadd.f32 0.0, %v2112
        %v2114 = vpop.f32.mrf.mxu0
        %2115 = vmatprep.mubr.bf16.mxu0 0
        %2116 = vmatmul.mubr.bf16.gmra.mxu0 %v1968
        %v2117 = vpop.f32.mrf.mxu0
        %v2118 = vadd.f32 0.0, %v2117
        %v2119 = vpop.f32.mrf.mxu0
        %v2120 = vpop.f32.mrf.mxu0
        %v2121 = vadd.f32 0.0, %v2120
        %v2122 = vpop.f32.mrf.mxu0
        %2123 = vmatprep.mubr.bf16.mxu0 0
        %2124 = vmatmul.mubr.bf16.gmra.mxu0 %v1969
        %v2125 = vpop.f32.mrf.mxu0
        %v2126 = vadd.f32 0.0, %v2125
        %v2127 = vpop.f32.mrf.mxu0
        %v2128 = vpop.f32.mrf.mxu0
        %v2129 = vadd.f32 0.0, %v2128
        %v2130 = vpop.f32.mrf.mxu0
        %2131 = vdwg.mxu0
        %v2132 = vadd.f32 %v1930, %v2070
        %v2133 = vadd.f32 %v1931, %v2073
        %v2134 = vadd.f32 %v1932, %v2078
        %v2135 = vadd.f32 %v1933, %v2081
        %v2136 = vadd.f32 %v1934, %v2086
        %v2137 = vadd.f32 %v1935, %v2089
        %v2138 = vadd.f32 %v1936, %v2094
        %v2139 = vadd.f32 %v1937, %v2097
        %v2140 = vadd.f32 %v1938, %v2102
        %v2141 = vadd.f32 %v1939, %v2105
        %v2142 = vadd.f32 %v1940, %v2110
        %v2143 = vadd.f32 %v1941, %v2113
        %v2144 = vadd.f32 %v1942, %v2118
        %v2145 = vadd.f32 %v1943, %v2121
        %v2146 = vadd.f32 %v1944, %v2126
        %v2147 = vadd.f32 %v1945, %v2129
        %v2148 = vld [vmem:[%s2] sm:$0x1]
        %v2150 = vlaneseq
        %v2151 = vshrl.u32 %v2150, 7
        %v2152 = vsub.s32 0, %v2151
        %v2153 = vrot.slane %v2148, %v2152
        %v2155 = vadd.f32 %v2132, %v2153
        %v2156 = vadd.f32 %v2133, %v2153
        %v2157 = vadd.f32 %v2134, %v2153
        %v2158 = vadd.f32 %v2135, %v2153
        %v2159 = vadd.f32 %v2136, %v2153
        %v2160 = vadd.f32 %v2137, %v2153
        %v2161 = vadd.f32 %v2138, %v2153
        %v2162 = vadd.f32 %v2139, %v2153
        %v2163 = vadd.f32 %v2140, %v2153
        %v2164 = vadd.f32 %v2141, %v2153
        %v2165 = vadd.f32 %v2142, %v2153
        %v2166 = vadd.f32 %v2143, %v2153
        %v2167 = vadd.f32 %v2144, %v2153
        %v2168 = vadd.f32 %v2145, %v2153
        %v2169 = vadd.f32 %v2146, %v2153
        %v2170 = vadd.f32 %v2147, %v2153
        %v2171 = vmax.f32 %v2155, 0.0
        %v2172 = vmax.f32 %v2156, 0.0
        %v2173 = vmax.f32 %v2157, 0.0
        %v2174 = vmax.f32 %v2158, 0.0
        %v2175 = vmax.f32 %v2159, 0.0
        %v2176 = vmax.f32 %v2160, 0.0
        %v2177 = vmax.f32 %v2161, 0.0
        %v2178 = vmax.f32 %v2162, 0.0
        %v2179 = vmax.f32 %v2163, 0.0
        %v2180 = vmax.f32 %v2164, 0.0
        %v2181 = vmax.f32 %v2165, 0.0
        %v2182 = vmax.f32 %v2166, 0.0
        %v2183 = vmax.f32 %v2167, 0.0
        %v2184 = vmax.f32 %v2168, 0.0
        %v2185 = vmax.f32 %v2169, 0.0
        %v2186 = vmax.f32 %v2170, 0.0
        %2187 = vst [vmem:[%s234] sm:$0xff] %v2171
        %2188 = vst [vmem:[%s234 + $0x8] sm:$0xff] %v2172
        %2189 = vst [vmem:[%s234 + $0x10] sm:$0xff] %v2173
        %2190 = vst [vmem:[%s234 + $0x18] sm:$0xff] %v2174
        %2191 = vst [vmem:[%s234 + $0x20] sm:$0xff] %v2175
        %2192 = vst [vmem:[%s234 + $0x28] sm:$0xff] %v2176
        %2193 = vst [vmem:[%s234 + $0x30] sm:$0xff] %v2177
        %2194 = vst [vmem:[%s234 + $0x38] sm:$0xff] %v2178
        %2195 = vst [vmem:[%s234 + $0x40] sm:$0xff] %v2179
        %2196 = vst [vmem:[%s234 + $0x48] sm:$0xff] %v2180
        %2197 = vst [vmem:[%s234 + $0x50] sm:$0xff] %v2181
        %2198 = vst [vmem:[%s234 + $0x58] sm:$0xff] %v2182
        %2199 = vst [vmem:[%s234 + $0x60] sm:$0xff] %v2183
        %2200 = vst [vmem:[%s234 + $0x68] sm:$0xff] %v2184
        %2201 = vst [vmem:[%s234 + $0x70] sm:$0xff] %v2185
        %2202 = vst [vmem:[%s234 + $0x78] sm:$0xff] %v2186
        %2203 = vxpose.xlu0.b32.start [1/16] %v2171, 128
        %2204 = vxpose.xlu0.b32.cont [2/16] %v2172, 128
        %2205 = vxpose.xlu0.b32.cont [3/16] %v2173, 128
        %2206 = vxpose.xlu0.b32.cont [4/16] %v2174, 128
        %2207 = vxpose.xlu0.b32.cont [5/16] %v2175, 128
        %2208 = vxpose.xlu0.b32.cont [6/16] %v2176, 128
        %2209 = vxpose.xlu0.b32.cont [7/16] %v2177, 128
        %2210 = vxpose.xlu0.b32.cont [8/16] %v2178, 128
        %2211 = vxpose.xlu0.b32.cont [9/16] %v2179, 128
        %2212 = vxpose.xlu0.b32.cont [10/16] %v2180, 128
        %2213 = vxpose.xlu0.b32.cont [11/16] %v2181, 128
        %2214 = vxpose.xlu0.b32.cont [12/16] %v2182, 128
        %2215 = vxpose.xlu0.b32.cont [13/16] %v2183, 128
        %2216 = vxpose.xlu0.b32.cont [14/16] %v2184, 128
        %2217 = vxpose.xlu0.b32.cont [15/16] %v2185, 128
        %2218 = vxpose.xlu0.b32.end [16/16] %v2186, 128
        %v2219 = vpop.trf.xlu0
        %v2220 = vpop.trf.xlu0
        %v2221 = vpop.trf.xlu0
        %v2222 = vpop.trf.xlu0
        %v2223 = vpop.trf.xlu0
        %v2224 = vpop.trf.xlu0
        %v2225 = vpop.trf.xlu0
        %v2226 = vpop.trf.xlu0
        %v2227 = vpop.trf.xlu0
        %v2228 = vpop.trf.xlu0
        %v2229 = vpop.trf.xlu0
        %v2230 = vpop.trf.xlu0
        %v2231 = vpop.trf.xlu0
        %v2232 = vpop.trf.xlu0
        %v2233 = vpop.trf.xlu0
        %v2234 = vpop.trf.xlu0
        %v2235 = vpack.c.bf16 %v2220, %v2219
        %v2236 = vpack.c.bf16 %v2222, %v2221
        %v2237 = vpack.c.bf16 %v2224, %v2223
        %v2238 = vpack.c.bf16 %v2226, %v2225
        %v2239 = vpack.c.bf16 %v2228, %v2227
        %v2240 = vpack.c.bf16 %v2230, %v2229
        %v2241 = vpack.c.bf16 %v2232, %v2231
        %v2242 = vpack.c.bf16 %v2234, %v2233
        %v2243 = vpack.c.bf16 %v2172, %v2171
        %v2244 = vpack.c.bf16 %v2174, %v2173
        %v2245 = vpack.c.bf16 %v2176, %v2175
        %v2246 = vpack.c.bf16 %v2178, %v2177
        %v2247 = vpack.c.bf16 %v2180, %v2179
        %v2248 = vpack.c.bf16 %v2182, %v2181
        %v2249 = vpack.c.bf16 %v2184, %v2183
        %v2250 = vpack.c.bf16 %v2186, %v2185
        %s2251 = scalar_lea.vmem [#allocation2], 192
        %v2252 = vld [vmem:[%s2251] sm:$0xff]
        %v2253 = vld [vmem:[%s2251 + $0x8] sm:$0xff]
        %v2254 = vld [vmem:[%s2251 + $0x18] sm:$0xff]
        %v2255 = vld [vmem:[%s2251 + $0x20] sm:$0xff]
        %v2256 = vld [vmem:[%s2251 + $0x30] sm:$0xff]
        %v2257 = vld [vmem:[%s2251 + $0x38] sm:$0xff]
        %v2258 = vld [vmem:[%s2251 + $0x48] sm:$0xff]
        %v2259 = vld [vmem:[%s2251 + $0x50] sm:$0xff]
        %v2260 = vld [vmem:[%s2251 + $0x60] sm:$0xff]
        %v2261 = vld [vmem:[%s2251 + $0x68] sm:$0xff]
        %v2262 = vld [vmem:[%s2251 + $0x78] sm:$0xff]
        %v2263 = vld [vmem:[%s2251 + $0x80] sm:$0xff]
        %v2264 = vld [vmem:[%s2251 + $0x90] sm:$0xff]
        %v2265 = vld [vmem:[%s2251 + $0x98] sm:$0xff]
        %v2266 = vld [vmem:[%s2251 + $0xa8] sm:$0xff]
        %v2267 = vld [vmem:[%s2251 + $0xb0] sm:$0xff]
        %v2268 = vpack.c.bf16 %v2253, %v2252
        %v2269 = vpack.c.bf16 %v2255, %v2254
        %v2270 = vpack.c.bf16 %v2257, %v2256
        %v2271 = vpack.c.bf16 %v2259, %v2258
        %v2272 = vpack.c.bf16 %v2261, %v2260
        %v2273 = vpack.c.bf16 %v2263, %v2262
        %v2274 = vpack.c.bf16 %v2265, %v2264
        %v2275 = vpack.c.bf16 %v2267, %v2266
        %v2276 = vld [vmem:[#allocation6] sm:$0xf]
        %v2277 = vld [vmem:[#allocation6 + $0x4] sm:$0xf]
        %v2278 = vld [vmem:[#allocation6 + $0x8] sm:$0xf]
        %v2279 = vld [vmem:[#allocation6 + $0xc] sm:$0xf]
        %v2280 = vld [vmem:[#allocation6 + $0x10] sm:$0xf]
        %v2281 = vld [vmem:[#allocation6 + $0x14] sm:$0xf]
        %v2282 = vld [vmem:[#allocation6 + $0x18] sm:$0xf]
        %v2283 = vld [vmem:[#allocation6 + $0x1c] sm:$0xf]
        %v2284 = vld [vmem:[#allocation6 + $0x20] sm:$0xf]
        %v2285 = vld [vmem:[#allocation6 + $0x24] sm:$0xf]
        %v2286 = vld [vmem:[#allocation6 + $0x28] sm:$0xf]
        %v2287 = vld [vmem:[#allocation6 + $0x2c] sm:$0xf]
        %v2288 = vld [vmem:[#allocation6 + $0x30] sm:$0xf]
        %v2289 = vld [vmem:[#allocation6 + $0x34] sm:$0xf]
        %v2290 = vld [vmem:[#allocation6 + $0x38] sm:$0xf]
        %v2291 = vld [vmem:[#allocation6 + $0x3c] sm:$0xf]
        %v2292 = vld [vmem:[%s2251 + $0x1] sm:$0xff]
        %v2293 = vld [vmem:[%s2251 + $0x9] sm:$0xff]
        %v2294 = vld [vmem:[%s2251 + $0x19] sm:$0xff]
        %v2295 = vld [vmem:[%s2251 + $0x21] sm:$0xff]
        %v2296 = vld [vmem:[%s2251 + $0x31] sm:$0xff]
        %v2297 = vld [vmem:[%s2251 + $0x39] sm:$0xff]
        %v2298 = vld [vmem:[%s2251 + $0x49] sm:$0xff]
        %v2299 = vld [vmem:[%s2251 + $0x51] sm:$0xff]
        %v2300 = vld [vmem:[%s2251 + $0x61] sm:$0xff]
        %v2301 = vld [vmem:[%s2251 + $0x69] sm:$0xff]
        %v2302 = vld [vmem:[%s2251 + $0x79] sm:$0xff]
        %v2303 = vld [vmem:[%s2251 + $0x81] sm:$0xff]
        %v2304 = vld [vmem:[%s2251 + $0x91] sm:$0xff]
        %v2305 = vld [vmem:[%s2251 + $0x99] sm:$0xff]
        %v2306 = vld [vmem:[%s2251 + $0xa9] sm:$0xff]
        %v2307 = vld [vmem:[%s2251 + $0xb1] sm:$0xff]
        %v2308 = vpack.c.bf16 %v2293, %v2292
        %v2309 = vpack.c.bf16 %v2295, %v2294
        %v2310 = vpack.c.bf16 %v2297, %v2296
        %v2311 = vpack.c.bf16 %v2299, %v2298
        %v2312 = vpack.c.bf16 %v2301, %v2300
        %v2313 = vpack.c.bf16 %v2303, %v2302
        %v2314 = vpack.c.bf16 %v2305, %v2304
        %v2315 = vpack.c.bf16 %v2307, %v2306
        %v2316 = vld [vmem:[%s426] sm:$0xf]
        %v2317 = vld [vmem:[%s426 + $0x4] sm:$0xf]
        %v2318 = vld [vmem:[%s426 + $0x8] sm:$0xf]
        %v2319 = vld [vmem:[%s426 + $0xc] sm:$0xf]
        %v2320 = vld [vmem:[%s426 + $0x10] sm:$0xf]
        %v2321 = vld [vmem:[%s426 + $0x14] sm:$0xf]
        %v2322 = vld [vmem:[%s426 + $0x18] sm:$0xf]
        %v2323 = vld [vmem:[%s426 + $0x1c] sm:$0xf]
        %v2324 = vld [vmem:[%s426 + $0x20] sm:$0xf]
        %v2325 = vld [vmem:[%s426 + $0x24] sm:$0xf]
        %v2326 = vld [vmem:[%s426 + $0x28] sm:$0xf]
        %v2327 = vld [vmem:[%s426 + $0x2c] sm:$0xf]
        %v2328 = vld [vmem:[%s426 + $0x30] sm:$0xf]
        %v2329 = vld [vmem:[%s426 + $0x34] sm:$0xf]
        %v2330 = vld [vmem:[%s426 + $0x38] sm:$0xf]
        %v2331 = vld [vmem:[%s426 + $0x3c] sm:$0xf]
        %v2348 = vunpack.c.l.b16 %v2316
        %v2349 = vunpack.c.l.b16 %v2317
        %v2350 = vunpack.c.l.b16 %v2318
        %v2351 = vunpack.c.l.b16 %v2319
        %v2352 = vunpack.c.l.b16 %v2320
        %v2353 = vunpack.c.l.b16 %v2321
        %v2354 = vunpack.c.l.b16 %v2322
        %v2355 = vunpack.c.l.b16 %v2323
        %v2356 = vunpack.c.l.b16 %v2324
        %v2357 = vunpack.c.l.b16 %v2325
        %v2358 = vunpack.c.l.b16 %v2326
        %v2359 = vunpack.c.l.b16 %v2327
        %v2360 = vunpack.c.l.b16 %v2328
        %v2361 = vunpack.c.l.b16 %v2329
        %v2362 = vunpack.c.l.b16 %v2330
        %v2363 = vunpack.c.l.b16 %v2331
        %v2364 = vpack.c.b16 %v2349, %v2348
        %v2365 = vpack.c.b16 %v2351, %v2350
        %v2366 = vpack.c.b16 %v2353, %v2352
        %v2367 = vpack.c.b16 %v2355, %v2354
        %v2368 = vpack.c.b16 %v2357, %v2356
        %v2369 = vpack.c.b16 %v2359, %v2358
        %v2370 = vpack.c.b16 %v2361, %v2360
        %v2371 = vpack.c.b16 %v2363, %v2362
        %2380 = vmatprep.subr.bf16.mxu0 0
        %2381 = vmatpush1.bf16.msra.mxu0 %v2371
        %2382 = vmatprep.subr.bf16.mxu0 0
        %2383 = vmatpush1.bf16.msra.mxu0 %v2370
        %2384 = vmatprep.subr.bf16.mxu0 0
        %2385 = vmatpush1.bf16.msra.mxu0 %v2369
        %2386 = vmatprep.subr.bf16.mxu0 0
        %2387 = vmatpush1.bf16.msra.mxu0 %v2368
        %2388 = vmatprep.subr.bf16.mxu0 0
        %2389 = vmatpush1.bf16.msra.mxu0 %v2367
        %2390 = vmatprep.subr.bf16.mxu0 0
        %2391 = vmatpush1.bf16.msra.mxu0 %v2366
        %2392 = vmatprep.subr.bf16.mxu0 0
        %2393 = vmatpush1.bf16.msra.mxu0 %v2365
        %2394 = vmatprep.subr.bf16.mxu0 0
        %2395 = vmatpush1.bf16.msra.mxu0 %v2364
        %2396 = vmatprep.subr.bf16.mxu0 0
        %2397 = vmatpush2.bf16.msra.mxu0 0
        %2398 = vmatprep.subr.bf16.mxu0 0
        %2399 = vmatpush2.bf16.msra.mxu0 0
        %2400 = vmatprep.subr.bf16.mxu0 0
        %2401 = vmatpush2.bf16.msra.mxu0 0
        %2402 = vmatprep.subr.bf16.mxu0 0
        %2403 = vmatpush2.bf16.msra.mxu0 0
        %2404 = vmatprep.subr.bf16.mxu0 0
        %2405 = vmatpush2.bf16.msra.mxu0 0
        %2406 = vmatprep.subr.bf16.mxu0 0
        %2407 = vmatpush2.bf16.msra.mxu0 0
        %2408 = vmatprep.subr.bf16.mxu0 0
        %2409 = vmatpush2.bf16.msra.mxu0 0
        %2410 = vmatprep.subr.bf16.mxu0 0
        %2411 = vmatpush2.bf16.msra.mxu0 0
        %2412 = vmatprep.mubr.bf16.mxu0 0
        %2413 = vmatmul.mubr.bf16.gmra.mxu0 %v2308
        %v2414 = vpop.f32.mrf.mxu0
        %v2415 = vadd.f32 0.0, %v2414
        %v2416 = vpop.f32.mrf.mxu0
        %v2417 = vpop.f32.mrf.mxu0
        %v2418 = vadd.f32 0.0, %v2417
        %v2419 = vpop.f32.mrf.mxu0
        %2420 = vmatprep.mubr.bf16.mxu0 0
        %2421 = vmatmul.mubr.bf16.gmra.mxu0 %v2309
        %v2422 = vpop.f32.mrf.mxu0
        %v2423 = vadd.f32 0.0, %v2422
        %v2424 = vpop.f32.mrf.mxu0
        %v2425 = vpop.f32.mrf.mxu0
        %v2426 = vadd.f32 0.0, %v2425
        %v2427 = vpop.f32.mrf.mxu0
        %2428 = vmatprep.mubr.bf16.mxu0 0
        %2429 = vmatmul.mubr.bf16.gmra.mxu0 %v2310
        %v2430 = vpop.f32.mrf.mxu0
        %v2431 = vadd.f32 0.0, %v2430
        %v2432 = vpop.f32.mrf.mxu0
        %v2433 = vpop.f32.mrf.mxu0
        %v2434 = vadd.f32 0.0, %v2433
        %v2435 = vpop.f32.mrf.mxu0
        %2436 = vmatprep.mubr.bf16.mxu0 0
        %2437 = vmatmul.mubr.bf16.gmra.mxu0 %v2311
        %v2438 = vpop.f32.mrf.mxu0
        %v2439 = vadd.f32 0.0, %v2438
        %v2440 = vpop.f32.mrf.mxu0
        %v2441 = vpop.f32.mrf.mxu0
        %v2442 = vadd.f32 0.0, %v2441
        %v2443 = vpop.f32.mrf.mxu0
        %2444 = vmatprep.mubr.bf16.mxu0 0
        %2445 = vmatmul.mubr.bf16.gmra.mxu0 %v2312
        %v2446 = vpop.f32.mrf.mxu0
        %v2447 = vadd.f32 0.0, %v2446
        %v2448 = vpop.f32.mrf.mxu0
        %v2449 = vpop.f32.mrf.mxu0
        %v2450 = vadd.f32 0.0, %v2449
        %v2451 = vpop.f32.mrf.mxu0
        %2452 = vmatprep.mubr.bf16.mxu0 0
        %2453 = vmatmul.mubr.bf16.gmra.mxu0 %v2313
        %v2454 = vpop.f32.mrf.mxu0
        %v2455 = vadd.f32 0.0, %v2454
        %v2456 = vpop.f32.mrf.mxu0
        %v2457 = vpop.f32.mrf.mxu0
        %v2458 = vadd.f32 0.0, %v2457
        %v2459 = vpop.f32.mrf.mxu0
        %2460 = vmatprep.mubr.bf16.mxu0 0
        %2461 = vmatmul.mubr.bf16.gmra.mxu0 %v2314
        %v2462 = vpop.f32.mrf.mxu0
        %v2463 = vadd.f32 0.0, %v2462
        %v2464 = vpop.f32.mrf.mxu0
        %v2465 = vpop.f32.mrf.mxu0
        %v2466 = vadd.f32 0.0, %v2465
        %v2467 = vpop.f32.mrf.mxu0
        %2468 = vmatprep.mubr.bf16.mxu0 0
        %2469 = vmatmul.mubr.bf16.gmra.mxu0 %v2315
        %v2470 = vpop.f32.mrf.mxu0
        %v2471 = vadd.f32 0.0, %v2470
        %v2472 = vpop.f32.mrf.mxu0
        %v2473 = vpop.f32.mrf.mxu0
        %v2474 = vadd.f32 0.0, %v2473
        %v2475 = vpop.f32.mrf.mxu0
        %2476 = vdwg.mxu0
        %v2493 = vunpack.c.l.b16 %v2276
        %v2494 = vunpack.c.l.b16 %v2277
        %v2495 = vunpack.c.l.b16 %v2278
        %v2496 = vunpack.c.l.b16 %v2279
        %v2497 = vunpack.c.l.b16 %v2280
        %v2498 = vunpack.c.l.b16 %v2281
        %v2499 = vunpack.c.l.b16 %v2282
        %v2500 = vunpack.c.l.b16 %v2283
        %v2501 = vunpack.c.l.b16 %v2284
        %v2502 = vunpack.c.l.b16 %v2285
        %v2503 = vunpack.c.l.b16 %v2286
        %v2504 = vunpack.c.l.b16 %v2287
        %v2505 = vunpack.c.l.b16 %v2288
        %v2506 = vunpack.c.l.b16 %v2289
        %v2507 = vunpack.c.l.b16 %v2290
        %v2508 = vunpack.c.l.b16 %v2291
        %v2509 = vpack.c.b16 %v2494, %v2493
        %v2510 = vpack.c.b16 %v2496, %v2495
        %v2511 = vpack.c.b16 %v2498, %v2497
        %v2512 = vpack.c.b16 %v2500, %v2499
        %v2513 = vpack.c.b16 %v2502, %v2501
        %v2514 = vpack.c.b16 %v2504, %v2503
        %v2515 = vpack.c.b16 %v2506, %v2505
        %v2516 = vpack.c.b16 %v2508, %v2507
        %2525 = vmatprep.subr.bf16.mxu0 0
        %2526 = vmatpush1.bf16.msra.mxu0 %v2516
        %2527 = vmatprep.subr.bf16.mxu0 0
        %2528 = vmatpush1.bf16.msra.mxu0 %v2515
        %2529 = vmatprep.subr.bf16.mxu0 0
        %2530 = vmatpush1.bf16.msra.mxu0 %v2514
        %2531 = vmatprep.subr.bf16.mxu0 0
        %2532 = vmatpush1.bf16.msra.mxu0 %v2513
        %2533 = vmatprep.subr.bf16.mxu0 0
        %2534 = vmatpush1.bf16.msra.mxu0 %v2512
        %2535 = vmatprep.subr.bf16.mxu0 0
        %2536 = vmatpush1.bf16.msra.mxu0 %v2511
        %2537 = vmatprep.subr.bf16.mxu0 0
        %2538 = vmatpush1.bf16.msra.mxu0 %v2510
        %2539 = vmatprep.subr.bf16.mxu0 0
        %2540 = vmatpush1.bf16.msra.mxu0 %v2509
        %2541 = vmatprep.subr.bf16.mxu0 0
        %2542 = vmatpush2.bf16.msra.mxu0 0
        %2543 = vmatprep.subr.bf16.mxu0 0
        %2544 = vmatpush2.bf16.msra.mxu0 0
        %2545 = vmatprep.subr.bf16.mxu0 0
        %2546 = vmatpush2.bf16.msra.mxu0 0
        %2547 = vmatprep.subr.bf16.mxu0 0
        %2548 = vmatpush2.bf16.msra.mxu0 0
        %2549 = vmatprep.subr.bf16.mxu0 0
        %2550 = vmatpush2.bf16.msra.mxu0 0
        %2551 = vmatprep.subr.bf16.mxu0 0
        %2552 = vmatpush2.bf16.msra.mxu0 0
        %2553 = vmatprep.subr.bf16.mxu0 0
        %2554 = vmatpush2.bf16.msra.mxu0 0
        %2555 = vmatprep.subr.bf16.mxu0 0
        %2556 = vmatpush2.bf16.msra.mxu0 0
        %2557 = vmatprep.mubr.bf16.mxu0 0
        %2558 = vmatmul.mubr.bf16.gmra.mxu0 %v2268
        %v2559 = vpop.f32.mrf.mxu0
        %v2560 = vadd.f32 %v2415, %v2559
        %v2561 = vpop.f32.mrf.mxu0
        %v2562 = vpop.f32.mrf.mxu0
        %v2563 = vadd.f32 %v2418, %v2562
        %v2564 = vpop.f32.mrf.mxu0
        %2565 = vmatprep.mubr.bf16.mxu0 0
        %2566 = vmatmul.mubr.bf16.gmra.mxu0 %v2269
        %v2567 = vpop.f32.mrf.mxu0
        %v2568 = vadd.f32 %v2423, %v2567
        %v2569 = vpop.f32.mrf.mxu0
        %v2570 = vpop.f32.mrf.mxu0
        %v2571 = vadd.f32 %v2426, %v2570
        %v2572 = vpop.f32.mrf.mxu0
        %2573 = vmatprep.mubr.bf16.mxu0 0
        %2574 = vmatmul.mubr.bf16.gmra.mxu0 %v2270
        %v2575 = vpop.f32.mrf.mxu0
        %v2576 = vadd.f32 %v2431, %v2575
        %v2577 = vpop.f32.mrf.mxu0
        %v2578 = vpop.f32.mrf.mxu0
        %v2579 = vadd.f32 %v2434, %v2578
        %v2580 = vpop.f32.mrf.mxu0
        %2581 = vmatprep.mubr.bf16.mxu0 0
        %2582 = vmatmul.mubr.bf16.gmra.mxu0 %v2271
        %v2583 = vpop.f32.mrf.mxu0
        %v2584 = vadd.f32 %v2439, %v2583
        %v2585 = vpop.f32.mrf.mxu0
        %v2586 = vpop.f32.mrf.mxu0
        %v2587 = vadd.f32 %v2442, %v2586
        %v2588 = vpop.f32.mrf.mxu0
        %2589 = vmatprep.mubr.bf16.mxu0 0
        %2590 = vmatmul.mubr.bf16.gmra.mxu0 %v2272
        %v2591 = vpop.f32.mrf.mxu0
        %v2592 = vadd.f32 %v2447, %v2591
        %v2593 = vpop.f32.mrf.mxu0
        %v2594 = vpop.f32.mrf.mxu0
        %v2595 = vadd.f32 %v2450, %v2594
        %v2596 = vpop.f32.mrf.mxu0
        %2597 = vmatprep.mubr.bf16.mxu0 0
        %2598 = vmatmul.mubr.bf16.gmra.mxu0 %v2273
        %v2599 = vpop.f32.mrf.mxu0
        %v2600 = vadd.f32 %v2455, %v2599
        %v2601 = vpop.f32.mrf.mxu0
        %v2602 = vpop.f32.mrf.mxu0
        %v2603 = vadd.f32 %v2458, %v2602
        %v2604 = vpop.f32.mrf.mxu0
        %2605 = vmatprep.mubr.bf16.mxu0 0
        %2606 = vmatmul.mubr.bf16.gmra.mxu0 %v2274
        %v2607 = vpop.f32.mrf.mxu0
        %v2608 = vadd.f32 %v2463, %v2607
        %v2609 = vpop.f32.mrf.mxu0
        %v2610 = vpop.f32.mrf.mxu0
        %v2611 = vadd.f32 %v2466, %v2610
        %v2612 = vpop.f32.mrf.mxu0
        %2613 = vmatprep.mubr.bf16.mxu0 0
        %2614 = vmatmul.mubr.bf16.gmra.mxu0 %v2275
        %v2615 = vpop.f32.mrf.mxu0
        %v2616 = vadd.f32 %v2471, %v2615
        %v2617 = vpop.f32.mrf.mxu0
        %v2618 = vpop.f32.mrf.mxu0
        %v2619 = vadd.f32 %v2474, %v2618
        %v2620 = vpop.f32.mrf.mxu0
        %2621 = vdwg.mxu0
        %v2622 = vld [vmem:[%s2251 + $0x2] sm:$0xff]
        %v2623 = vld [vmem:[%s2251 + $0xa] sm:$0xff]
        %v2624 = vld [vmem:[%s2251 + $0x1a] sm:$0xff]
        %v2625 = vld [vmem:[%s2251 + $0x22] sm:$0xff]
        %v2626 = vld [vmem:[%s2251 + $0x32] sm:$0xff]
        %v2627 = vld [vmem:[%s2251 + $0x3a] sm:$0xff]
        %v2628 = vld [vmem:[%s2251 + $0x4a] sm:$0xff]
        %v2629 = vld [vmem:[%s2251 + $0x52] sm:$0xff]
        %v2630 = vld [vmem:[%s2251 + $0x62] sm:$0xff]
        %v2631 = vld [vmem:[%s2251 + $0x6a] sm:$0xff]
        %v2632 = vld [vmem:[%s2251 + $0x7a] sm:$0xff]
        %v2633 = vld [vmem:[%s2251 + $0x82] sm:$0xff]
        %v2634 = vld [vmem:[%s2251 + $0x92] sm:$0xff]
        %v2635 = vld [vmem:[%s2251 + $0x9a] sm:$0xff]
        %v2636 = vld [vmem:[%s2251 + $0xaa] sm:$0xff]
        %v2637 = vld [vmem:[%s2251 + $0xb2] sm:$0xff]
        %v2638 = vpack.c.bf16 %v2623, %v2622
        %v2639 = vpack.c.bf16 %v2625, %v2624
        %v2640 = vpack.c.bf16 %v2627, %v2626
        %v2641 = vpack.c.bf16 %v2629, %v2628
        %v2642 = vpack.c.bf16 %v2631, %v2630
        %v2643 = vpack.c.bf16 %v2633, %v2632
        %v2644 = vpack.c.bf16 %v2635, %v2634
        %v2645 = vpack.c.bf16 %v2637, %v2636
        %v2646 = vld [vmem:[%s757] sm:$0xf]
        %v2647 = vld [vmem:[%s757 + $0x4] sm:$0xf]
        %v2648 = vld [vmem:[%s757 + $0x8] sm:$0xf]
        %v2649 = vld [vmem:[%s757 + $0xc] sm:$0xf]
        %v2650 = vld [vmem:[%s757 + $0x10] sm:$0xf]
        %v2651 = vld [vmem:[%s757 + $0x14] sm:$0xf]
        %v2652 = vld [vmem:[%s757 + $0x18] sm:$0xf]
        %v2653 = vld [vmem:[%s757 + $0x1c] sm:$0xf]
        %v2654 = vld [vmem:[%s757 + $0x20] sm:$0xf]
        %v2655 = vld [vmem:[%s757 + $0x24] sm:$0xf]
        %v2656 = vld [vmem:[%s757 + $0x28] sm:$0xf]
        %v2657 = vld [vmem:[%s757 + $0x2c] sm:$0xf]
        %v2658 = vld [vmem:[%s757 + $0x30] sm:$0xf]
        %v2659 = vld [vmem:[%s757 + $0x34] sm:$0xf]
        %v2660 = vld [vmem:[%s757 + $0x38] sm:$0xf]
        %v2661 = vld [vmem:[%s757 + $0x3c] sm:$0xf]
        %v2678 = vunpack.c.l.b16 %v2646
        %v2679 = vunpack.c.l.b16 %v2647
        %v2680 = vunpack.c.l.b16 %v2648
        %v2681 = vunpack.c.l.b16 %v2649
        %v2682 = vunpack.c.l.b16 %v2650
        %v2683 = vunpack.c.l.b16 %v2651
        %v2684 = vunpack.c.l.b16 %v2652
        %v2685 = vunpack.c.l.b16 %v2653
        %v2686 = vunpack.c.l.b16 %v2654
        %v2687 = vunpack.c.l.b16 %v2655
        %v2688 = vunpack.c.l.b16 %v2656
        %v2689 = vunpack.c.l.b16 %v2657
        %v2690 = vunpack.c.l.b16 %v2658
        %v2691 = vunpack.c.l.b16 %v2659
        %v2692 = vunpack.c.l.b16 %v2660
        %v2693 = vunpack.c.l.b16 %v2661
        %v2694 = vpack.c.b16 %v2679, %v2678
        %v2695 = vpack.c.b16 %v2681, %v2680
        %v2696 = vpack.c.b16 %v2683, %v2682
        %v2697 = vpack.c.b16 %v2685, %v2684
        %v2698 = vpack.c.b16 %v2687, %v2686
        %v2699 = vpack.c.b16 %v2689, %v2688
        %v2700 = vpack.c.b16 %v2691, %v2690
        %v2701 = vpack.c.b16 %v2693, %v2692
        %2710 = vmatprep.subr.bf16.mxu0 0
        %2711 = vmatpush1.bf16.msra.mxu0 %v2701
        %2712 = vmatprep.subr.bf16.mxu0 0
        %2713 = vmatpush1.bf16.msra.mxu0 %v2700
        %2714 = vmatprep.subr.bf16.mxu0 0
        %2715 = vmatpush1.bf16.msra.mxu0 %v2699
        %2716 = vmatprep.subr.bf16.mxu0 0
        %2717 = vmatpush1.bf16.msra.mxu0 %v2698
        %2718 = vmatprep.subr.bf16.mxu0 0
        %2719 = vmatpush1.bf16.msra.mxu0 %v2697
        %2720 = vmatprep.subr.bf16.mxu0 0
        %2721 = vmatpush1.bf16.msra.mxu0 %v2696
        %2722 = vmatprep.subr.bf16.mxu0 0
        %2723 = vmatpush1.bf16.msra.mxu0 %v2695
        %2724 = vmatprep.subr.bf16.mxu0 0
        %2725 = vmatpush1.bf16.msra.mxu0 %v2694
        %2726 = vmatprep.subr.bf16.mxu0 0
        %2727 = vmatpush2.bf16.msra.mxu0 0
        %2728 = vmatprep.subr.bf16.mxu0 0
        %2729 = vmatpush2.bf16.msra.mxu0 0
        %2730 = vmatprep.subr.bf16.mxu0 0
        %2731 = vmatpush2.bf16.msra.mxu0 0
        %2732 = vmatprep.subr.bf16.mxu0 0
        %2733 = vmatpush2.bf16.msra.mxu0 0
        %2734 = vmatprep.subr.bf16.mxu0 0
        %2735 = vmatpush2.bf16.msra.mxu0 0
        %2736 = vmatprep.subr.bf16.mxu0 0
        %2737 = vmatpush2.bf16.msra.mxu0 0
        %2738 = vmatprep.subr.bf16.mxu0 0
        %2739 = vmatpush2.bf16.msra.mxu0 0
        %2740 = vmatprep.subr.bf16.mxu0 0
        %2741 = vmatpush2.bf16.msra.mxu0 0
        %2742 = vmatprep.mubr.bf16.mxu0 0
        %2743 = vmatmul.mubr.bf16.gmra.mxu0 %v2638
        %v2744 = vpop.f32.mrf.mxu0
        %v2745 = vadd.f32 0.0, %v2744
        %v2746 = vpop.f32.mrf.mxu0
        %v2747 = vpop.f32.mrf.mxu0
        %v2748 = vadd.f32 0.0, %v2747
        %v2749 = vpop.f32.mrf.mxu0
        %2750 = vmatprep.mubr.bf16.mxu0 0
        %2751 = vmatmul.mubr.bf16.gmra.mxu0 %v2639
        %v2752 = vpop.f32.mrf.mxu0
        %v2753 = vadd.f32 0.0, %v2752
        %v2754 = vpop.f32.mrf.mxu0
        %v2755 = vpop.f32.mrf.mxu0
        %v2756 = vadd.f32 0.0, %v2755
        %v2757 = vpop.f32.mrf.mxu0
        %2758 = vmatprep.mubr.bf16.mxu0 0
        %2759 = vmatmul.mubr.bf16.gmra.mxu0 %v2640
        %v2760 = vpop.f32.mrf.mxu0
        %v2761 = vadd.f32 0.0, %v2760
        %v2762 = vpop.f32.mrf.mxu0
        %v2763 = vpop.f32.mrf.mxu0
        %v2764 = vadd.f32 0.0, %v2763
        %v2765 = vpop.f32.mrf.mxu0
        %2766 = vmatprep.mubr.bf16.mxu0 0
        %2767 = vmatmul.mubr.bf16.gmra.mxu0 %v2641
        %v2768 = vpop.f32.mrf.mxu0
        %v2769 = vadd.f32 0.0, %v2768
        %v2770 = vpop.f32.mrf.mxu0
        %v2771 = vpop.f32.mrf.mxu0
        %v2772 = vadd.f32 0.0, %v2771
        %v2773 = vpop.f32.mrf.mxu0
        %2774 = vmatprep.mubr.bf16.mxu0 0
        %2775 = vmatmul.mubr.bf16.gmra.mxu0 %v2642
        %v2776 = vpop.f32.mrf.mxu0
        %v2777 = vadd.f32 0.0, %v2776
        %v2778 = vpop.f32.mrf.mxu0
        %v2779 = vpop.f32.mrf.mxu0
        %v2780 = vadd.f32 0.0, %v2779
        %v2781 = vpop.f32.mrf.mxu0
        %2782 = vmatprep.mubr.bf16.mxu0 0
        %2783 = vmatmul.mubr.bf16.gmra.mxu0 %v2643
        %v2784 = vpop.f32.mrf.mxu0
        %v2785 = vadd.f32 0.0, %v2784
        %v2786 = vpop.f32.mrf.mxu0
        %v2787 = vpop.f32.mrf.mxu0
        %v2788 = vadd.f32 0.0, %v2787
        %v2789 = vpop.f32.mrf.mxu0
        %2790 = vmatprep.mubr.bf16.mxu0 0
        %2791 = vmatmul.mubr.bf16.gmra.mxu0 %v2644
        %v2792 = vpop.f32.mrf.mxu0
        %v2793 = vadd.f32 0.0, %v2792
        %v2794 = vpop.f32.mrf.mxu0
        %v2795 = vpop.f32.mrf.mxu0
        %v2796 = vadd.f32 0.0, %v2795
        %v2797 = vpop.f32.mrf.mxu0
        %2798 = vmatprep.mubr.bf16.mxu0 0
        %2799 = vmatmul.mubr.bf16.gmra.mxu0 %v2645
        %v2800 = vpop.f32.mrf.mxu0
        %v2801 = vadd.f32 0.0, %v2800
        %v2802 = vpop.f32.mrf.mxu0
        %v2803 = vpop.f32.mrf.mxu0
        %v2804 = vadd.f32 0.0, %v2803
        %v2805 = vpop.f32.mrf.mxu0
        %2806 = vdwg.mxu0
        %v2807 = vadd.f32 %v2560, %v2745
        %v2808 = vadd.f32 %v2563, %v2748
        %v2809 = vadd.f32 %v2568, %v2753
        %v2810 = vadd.f32 %v2571, %v2756
        %v2811 = vadd.f32 %v2576, %v2761
        %v2812 = vadd.f32 %v2579, %v2764
        %v2813 = vadd.f32 %v2584, %v2769
        %v2814 = vadd.f32 %v2587, %v2772
        %v2815 = vadd.f32 %v2592, %v2777
        %v2816 = vadd.f32 %v2595, %v2780
        %v2817 = vadd.f32 %v2600, %v2785
        %v2818 = vadd.f32 %v2603, %v2788
        %v2819 = vadd.f32 %v2608, %v2793
        %v2820 = vadd.f32 %v2611, %v2796
        %v2821 = vadd.f32 %v2616, %v2801
        %v2822 = vadd.f32 %v2619, %v2804
        %s2823 = scalar_lea.vmem [#allocation2], 216
        %v2824 = vld [vmem:[%s2823] sm:$0xff]
        %v2825 = vld [vmem:[%s2823 + $0x8] sm:$0xff]
        %v2826 = vld [vmem:[%s2823 + $0x18] sm:$0xff]
        %v2827 = vld [vmem:[%s2823 + $0x20] sm:$0xff]
        %v2828 = vld [vmem:[%s2823 + $0x30] sm:$0xff]
        %v2829 = vld [vmem:[%s2823 + $0x38] sm:$0xff]
        %v2830 = vld [vmem:[%s2823 + $0x48] sm:$0xff]
        %v2831 = vld [vmem:[%s2823 + $0x50] sm:$0xff]
        %v2832 = vld [vmem:[%s2823 + $0x60] sm:$0xff]
        %v2833 = vld [vmem:[%s2823 + $0x68] sm:$0xff]
        %v2834 = vld [vmem:[%s2823 + $0x78] sm:$0xff]
        %v2835 = vld [vmem:[%s2823 + $0x80] sm:$0xff]
        %v2836 = vld [vmem:[%s2823 + $0x90] sm:$0xff]
        %v2837 = vld [vmem:[%s2823 + $0x98] sm:$0xff]
        %v2838 = vld [vmem:[%s2823 + $0xa8] sm:$0xff]
        %v2839 = vld [vmem:[%s2823 + $0xb0] sm:$0xff]
        %v2840 = vpack.c.bf16 %v2825, %v2824
        %v2841 = vpack.c.bf16 %v2827, %v2826
        %v2842 = vpack.c.bf16 %v2829, %v2828
        %v2843 = vpack.c.bf16 %v2831, %v2830
        %v2844 = vpack.c.bf16 %v2833, %v2832
        %v2845 = vpack.c.bf16 %v2835, %v2834
        %v2846 = vpack.c.bf16 %v2837, %v2836
        %v2847 = vpack.c.bf16 %v2839, %v2838
        %v2848 = vld [vmem:[%s959] sm:$0xf]
        %v2849 = vld [vmem:[%s959 + $0x4] sm:$0xf]
        %v2850 = vld [vmem:[%s959 + $0x8] sm:$0xf]
        %v2851 = vld [vmem:[%s959 + $0xc] sm:$0xf]
        %v2852 = vld [vmem:[%s959 + $0x10] sm:$0xf]
        %v2853 = vld [vmem:[%s959 + $0x14] sm:$0xf]
        %v2854 = vld [vmem:[%s959 + $0x18] sm:$0xf]
        %v2855 = vld [vmem:[%s959 + $0x1c] sm:$0xf]
        %v2856 = vld [vmem:[%s959 + $0x20] sm:$0xf]
        %v2857 = vld [vmem:[%s959 + $0x24] sm:$0xf]
        %v2858 = vld [vmem:[%s959 + $0x28] sm:$0xf]
        %v2859 = vld [vmem:[%s959 + $0x2c] sm:$0xf]
        %v2860 = vld [vmem:[%s959 + $0x30] sm:$0xf]
        %v2861 = vld [vmem:[%s959 + $0x34] sm:$0xf]
        %v2862 = vld [vmem:[%s959 + $0x38] sm:$0xf]
        %v2863 = vld [vmem:[%s959 + $0x3c] sm:$0xf]
        %v2880 = vunpack.c.l.b16 %v2848
        %v2881 = vunpack.c.l.b16 %v2849
        %v2882 = vunpack.c.l.b16 %v2850
        %v2883 = vunpack.c.l.b16 %v2851
        %v2884 = vunpack.c.l.b16 %v2852
        %v2885 = vunpack.c.l.b16 %v2853
        %v2886 = vunpack.c.l.b16 %v2854
        %v2887 = vunpack.c.l.b16 %v2855
        %v2888 = vunpack.c.l.b16 %v2856
        %v2889 = vunpack.c.l.b16 %v2857
        %v2890 = vunpack.c.l.b16 %v2858
        %v2891 = vunpack.c.l.b16 %v2859
        %v2892 = vunpack.c.l.b16 %v2860
        %v2893 = vunpack.c.l.b16 %v2861
        %v2894 = vunpack.c.l.b16 %v2862
        %v2895 = vunpack.c.l.b16 %v2863
        %v2896 = vpack.c.b16 %v2881, %v2880
        %v2897 = vpack.c.b16 %v2883, %v2882
        %v2898 = vpack.c.b16 %v2885, %v2884
        %v2899 = vpack.c.b16 %v2887, %v2886
        %v2900 = vpack.c.b16 %v2889, %v2888
        %v2901 = vpack.c.b16 %v2891, %v2890
        %v2902 = vpack.c.b16 %v2893, %v2892
        %v2903 = vpack.c.b16 %v2895, %v2894
        %2912 = vmatprep.subr.bf16.mxu0 0
        %2913 = vmatpush1.bf16.msra.mxu0 %v2903
        %2914 = vmatprep.subr.bf16.mxu0 0
        %2915 = vmatpush1.bf16.msra.mxu0 %v2902
        %2916 = vmatprep.subr.bf16.mxu0 0
        %2917 = vmatpush1.bf16.msra.mxu0 %v2901
        %2918 = vmatprep.subr.bf16.mxu0 0
        %2919 = vmatpush1.bf16.msra.mxu0 %v2900
        %2920 = vmatprep.subr.bf16.mxu0 0
        %2921 = vmatpush1.bf16.msra.mxu0 %v2899
        %2922 = vmatprep.subr.bf16.mxu0 0
        %2923 = vmatpush1.bf16.msra.mxu0 %v2898
        %2924 = vmatprep.subr.bf16.mxu0 0
        %2925 = vmatpush1.bf16.msra.mxu0 %v2897
        %2926 = vmatprep.subr.bf16.mxu0 0
        %2927 = vmatpush1.bf16.msra.mxu0 %v2896
        %2928 = vmatprep.subr.bf16.mxu0 0
        %2929 = vmatpush2.bf16.msra.mxu0 0
        %2930 = vmatprep.subr.bf16.mxu0 0
        %2931 = vmatpush2.bf16.msra.mxu0 0
        %2932 = vmatprep.subr.bf16.mxu0 0
        %2933 = vmatpush2.bf16.msra.mxu0 0
        %2934 = vmatprep.subr.bf16.mxu0 0
        %2935 = vmatpush2.bf16.msra.mxu0 0
        %2936 = vmatprep.subr.bf16.mxu0 0
        %2937 = vmatpush2.bf16.msra.mxu0 0
        %2938 = vmatprep.subr.bf16.mxu0 0
        %2939 = vmatpush2.bf16.msra.mxu0 0
        %2940 = vmatprep.subr.bf16.mxu0 0
        %2941 = vmatpush2.bf16.msra.mxu0 0
        %2942 = vmatprep.subr.bf16.mxu0 0
        %2943 = vmatpush2.bf16.msra.mxu0 0
        %2944 = vmatprep.mubr.bf16.mxu0 0
        %2945 = vmatmul.mubr.bf16.gmra.mxu0 %v2840
        %v2946 = vpop.f32.mrf.mxu0
        %v2947 = vadd.f32 0.0, %v2946
        %v2948 = vpop.f32.mrf.mxu0
        %v2949 = vpop.f32.mrf.mxu0
        %v2950 = vadd.f32 0.0, %v2949
        %v2951 = vpop.f32.mrf.mxu0
        %2952 = vmatprep.mubr.bf16.mxu0 0
        %2953 = vmatmul.mubr.bf16.gmra.mxu0 %v2841
        %v2954 = vpop.f32.mrf.mxu0
        %v2955 = vadd.f32 0.0, %v2954
        %v2956 = vpop.f32.mrf.mxu0
        %v2957 = vpop.f32.mrf.mxu0
        %v2958 = vadd.f32 0.0, %v2957
        %v2959 = vpop.f32.mrf.mxu0
        %2960 = vmatprep.mubr.bf16.mxu0 0
        %2961 = vmatmul.mubr.bf16.gmra.mxu0 %v2842
        %v2962 = vpop.f32.mrf.mxu0
        %v2963 = vadd.f32 0.0, %v2962
        %v2964 = vpop.f32.mrf.mxu0
        %v2965 = vpop.f32.mrf.mxu0
        %v2966 = vadd.f32 0.0, %v2965
        %v2967 = vpop.f32.mrf.mxu0
        %2968 = vmatprep.mubr.bf16.mxu0 0
        %2969 = vmatmul.mubr.bf16.gmra.mxu0 %v2843
        %v2970 = vpop.f32.mrf.mxu0
        %v2971 = vadd.f32 0.0, %v2970
        %v2972 = vpop.f32.mrf.mxu0
        %v2973 = vpop.f32.mrf.mxu0
        %v2974 = vadd.f32 0.0, %v2973
        %v2975 = vpop.f32.mrf.mxu0
        %2976 = vmatprep.mubr.bf16.mxu0 0
        %2977 = vmatmul.mubr.bf16.gmra.mxu0 %v2844
        %v2978 = vpop.f32.mrf.mxu0
        %v2979 = vadd.f32 0.0, %v2978
        %v2980 = vpop.f32.mrf.mxu0
        %v2981 = vpop.f32.mrf.mxu0
        %v2982 = vadd.f32 0.0, %v2981
        %v2983 = vpop.f32.mrf.mxu0
        %2984 = vmatprep.mubr.bf16.mxu0 0
        %2985 = vmatmul.mubr.bf16.gmra.mxu0 %v2845
        %v2986 = vpop.f32.mrf.mxu0
        %v2987 = vadd.f32 0.0, %v2986
        %v2988 = vpop.f32.mrf.mxu0
        %v2989 = vpop.f32.mrf.mxu0
        %v2990 = vadd.f32 0.0, %v2989
        %v2991 = vpop.f32.mrf.mxu0
        %2992 = vmatprep.mubr.bf16.mxu0 0
        %2993 = vmatmul.mubr.bf16.gmra.mxu0 %v2846
        %v2994 = vpop.f32.mrf.mxu0
        %v2995 = vadd.f32 0.0, %v2994
        %v2996 = vpop.f32.mrf.mxu0
        %v2997 = vpop.f32.mrf.mxu0
        %v2998 = vadd.f32 0.0, %v2997
        %v2999 = vpop.f32.mrf.mxu0
        %3000 = vmatprep.mubr.bf16.mxu0 0
        %3001 = vmatmul.mubr.bf16.gmra.mxu0 %v2847
        %v3002 = vpop.f32.mrf.mxu0
        %v3003 = vadd.f32 0.0, %v3002
        %v3004 = vpop.f32.mrf.mxu0
        %v3005 = vpop.f32.mrf.mxu0
        %v3006 = vadd.f32 0.0, %v3005
        %v3007 = vpop.f32.mrf.mxu0
        %3008 = vdwg.mxu0
        %v3009 = vadd.f32 %v2807, %v2947
        %v3010 = vadd.f32 %v2808, %v2950
        %v3011 = vadd.f32 %v2809, %v2955
        %v3012 = vadd.f32 %v2810, %v2958
        %v3013 = vadd.f32 %v2811, %v2963
        %v3014 = vadd.f32 %v2812, %v2966
        %v3015 = vadd.f32 %v2813, %v2971
        %v3016 = vadd.f32 %v2814, %v2974
        %v3017 = vadd.f32 %v2815, %v2979
        %v3018 = vadd.f32 %v2816, %v2982
        %v3019 = vadd.f32 %v2817, %v2987
        %v3020 = vadd.f32 %v2818, %v2990
        %v3021 = vadd.f32 %v2819, %v2995
        %v3022 = vadd.f32 %v2820, %v2998
        %v3023 = vadd.f32 %v2821, %v3003
        %v3024 = vadd.f32 %v2822, %v3006
        %v3025 = vld [vmem:[%s2823 + $0x1] sm:$0xff]
        %v3026 = vld [vmem:[%s2823 + $0x9] sm:$0xff]
        %v3027 = vld [vmem:[%s2823 + $0x19] sm:$0xff]
        %v3028 = vld [vmem:[%s2823 + $0x21] sm:$0xff]
        %v3029 = vld [vmem:[%s2823 + $0x31] sm:$0xff]
        %v3030 = vld [vmem:[%s2823 + $0x39] sm:$0xff]
        %v3031 = vld [vmem:[%s2823 + $0x49] sm:$0xff]
        %v3032 = vld [vmem:[%s2823 + $0x51] sm:$0xff]
        %v3033 = vld [vmem:[%s2823 + $0x61] sm:$0xff]
        %v3034 = vld [vmem:[%s2823 + $0x69] sm:$0xff]
        %v3035 = vld [vmem:[%s2823 + $0x79] sm:$0xff]
        %v3036 = vld [vmem:[%s2823 + $0x81] sm:$0xff]
        %v3037 = vld [vmem:[%s2823 + $0x91] sm:$0xff]
        %v3038 = vld [vmem:[%s2823 + $0x99] sm:$0xff]
        %v3039 = vld [vmem:[%s2823 + $0xa9] sm:$0xff]
        %v3040 = vld [vmem:[%s2823 + $0xb1] sm:$0xff]
        %v3041 = vpack.c.bf16 %v3026, %v3025
        %v3042 = vpack.c.bf16 %v3028, %v3027
        %v3043 = vpack.c.bf16 %v3030, %v3029
        %v3044 = vpack.c.bf16 %v3032, %v3031
        %v3045 = vpack.c.bf16 %v3034, %v3033
        %v3046 = vpack.c.bf16 %v3036, %v3035
        %v3047 = vpack.c.bf16 %v3038, %v3037
        %v3048 = vpack.c.bf16 %v3040, %v3039
        %v3049 = vld [vmem:[%s1161] sm:$0xf]
        %v3050 = vld [vmem:[%s1161 + $0x4] sm:$0xf]
        %v3051 = vld [vmem:[%s1161 + $0x8] sm:$0xf]
        %v3052 = vld [vmem:[%s1161 + $0xc] sm:$0xf]
        %v3053 = vld [vmem:[%s1161 + $0x10] sm:$0xf]
        %v3054 = vld [vmem:[%s1161 + $0x14] sm:$0xf]
        %v3055 = vld [vmem:[%s1161 + $0x18] sm:$0xf]
        %v3056 = vld [vmem:[%s1161 + $0x1c] sm:$0xf]
        %v3057 = vld [vmem:[%s1161 + $0x20] sm:$0xf]
        %v3058 = vld [vmem:[%s1161 + $0x24] sm:$0xf]
        %v3059 = vld [vmem:[%s1161 + $0x28] sm:$0xf]
        %v3060 = vld [vmem:[%s1161 + $0x2c] sm:$0xf]
        %v3061 = vld [vmem:[%s1161 + $0x30] sm:$0xf]
        %v3062 = vld [vmem:[%s1161 + $0x34] sm:$0xf]
        %v3063 = vld [vmem:[%s1161 + $0x38] sm:$0xf]
        %v3064 = vld [vmem:[%s1161 + $0x3c] sm:$0xf]
        %v3081 = vunpack.c.l.b16 %v3049
        %v3082 = vunpack.c.l.b16 %v3050
        %v3083 = vunpack.c.l.b16 %v3051
        %v3084 = vunpack.c.l.b16 %v3052
        %v3085 = vunpack.c.l.b16 %v3053
        %v3086 = vunpack.c.l.b16 %v3054
        %v3087 = vunpack.c.l.b16 %v3055
        %v3088 = vunpack.c.l.b16 %v3056
        %v3089 = vunpack.c.l.b16 %v3057
        %v3090 = vunpack.c.l.b16 %v3058
        %v3091 = vunpack.c.l.b16 %v3059
        %v3092 = vunpack.c.l.b16 %v3060
        %v3093 = vunpack.c.l.b16 %v3061
        %v3094 = vunpack.c.l.b16 %v3062
        %v3095 = vunpack.c.l.b16 %v3063
        %v3096 = vunpack.c.l.b16 %v3064
        %v3097 = vpack.c.b16 %v3082, %v3081
        %v3098 = vpack.c.b16 %v3084, %v3083
        %v3099 = vpack.c.b16 %v3086, %v3085
        %v3100 = vpack.c.b16 %v3088, %v3087
        %v3101 = vpack.c.b16 %v3090, %v3089
        %v3102 = vpack.c.b16 %v3092, %v3091
        %v3103 = vpack.c.b16 %v3094, %v3093
        %v3104 = vpack.c.b16 %v3096, %v3095
        %3113 = vmatprep.subr.bf16.mxu0 0
        %3114 = vmatpush1.bf16.msra.mxu0 %v3104
        %3115 = vmatprep.subr.bf16.mxu0 0
        %3116 = vmatpush1.bf16.msra.mxu0 %v3103
        %3117 = vmatprep.subr.bf16.mxu0 0
        %3118 = vmatpush1.bf16.msra.mxu0 %v3102
        %3119 = vmatprep.subr.bf16.mxu0 0
        %3120 = vmatpush1.bf16.msra.mxu0 %v3101
        %3121 = vmatprep.subr.bf16.mxu0 0
        %3122 = vmatpush1.bf16.msra.mxu0 %v3100
        %3123 = vmatprep.subr.bf16.mxu0 0
        %3124 = vmatpush1.bf16.msra.mxu0 %v3099
        %3125 = vmatprep.subr.bf16.mxu0 0
        %3126 = vmatpush1.bf16.msra.mxu0 %v3098
        %3127 = vmatprep.subr.bf16.mxu0 0
        %3128 = vmatpush1.bf16.msra.mxu0 %v3097
        %3129 = vmatprep.subr.bf16.mxu0 0
        %3130 = vmatpush2.bf16.msra.mxu0 0
        %3131 = vmatprep.subr.bf16.mxu0 0
        %3132 = vmatpush2.bf16.msra.mxu0 0
        %3133 = vmatprep.subr.bf16.mxu0 0
        %3134 = vmatpush2.bf16.msra.mxu0 0
        %3135 = vmatprep.subr.bf16.mxu0 0
        %3136 = vmatpush2.bf16.msra.mxu0 0
        %3137 = vmatprep.subr.bf16.mxu0 0
        %3138 = vmatpush2.bf16.msra.mxu0 0
        %3139 = vmatprep.subr.bf16.mxu0 0
        %3140 = vmatpush2.bf16.msra.mxu0 0
        %3141 = vmatprep.subr.bf16.mxu0 0
        %3142 = vmatpush2.bf16.msra.mxu0 0
        %3143 = vmatprep.subr.bf16.mxu0 0
        %3144 = vmatpush2.bf16.msra.mxu0 0
        %3145 = vmatprep.mubr.bf16.mxu0 0
        %3146 = vmatmul.mubr.bf16.gmra.mxu0 %v3041
        %v3147 = vpop.f32.mrf.mxu0
        %v3148 = vadd.f32 0.0, %v3147
        %v3149 = vpop.f32.mrf.mxu0
        %v3150 = vpop.f32.mrf.mxu0
        %v3151 = vadd.f32 0.0, %v3150
        %v3152 = vpop.f32.mrf.mxu0
        %3153 = vmatprep.mubr.bf16.mxu0 0
        %3154 = vmatmul.mubr.bf16.gmra.mxu0 %v3042
        %v3155 = vpop.f32.mrf.mxu0
        %v3156 = vadd.f32 0.0, %v3155
        %v3157 = vpop.f32.mrf.mxu0
        %v3158 = vpop.f32.mrf.mxu0
        %v3159 = vadd.f32 0.0, %v3158
        %v3160 = vpop.f32.mrf.mxu0
        %3161 = vmatprep.mubr.bf16.mxu0 0
        %3162 = vmatmul.mubr.bf16.gmra.mxu0 %v3043
        %v3163 = vpop.f32.mrf.mxu0
        %v3164 = vadd.f32 0.0, %v3163
        %v3165 = vpop.f32.mrf.mxu0
        %v3166 = vpop.f32.mrf.mxu0
        %v3167 = vadd.f32 0.0, %v3166
        %v3168 = vpop.f32.mrf.mxu0
        %3169 = vmatprep.mubr.bf16.mxu0 0
        %3170 = vmatmul.mubr.bf16.gmra.mxu0 %v3044
        %v3171 = vpop.f32.mrf.mxu0
        %v3172 = vadd.f32 0.0, %v3171
        %v3173 = vpop.f32.mrf.mxu0
        %v3174 = vpop.f32.mrf.mxu0
        %v3175 = vadd.f32 0.0, %v3174
        %v3176 = vpop.f32.mrf.mxu0
        %3177 = vmatprep.mubr.bf16.mxu0 0
        %3178 = vmatmul.mubr.bf16.gmra.mxu0 %v3045
        %v3179 = vpop.f32.mrf.mxu0
        %v3180 = vadd.f32 0.0, %v3179
        %v3181 = vpop.f32.mrf.mxu0
        %v3182 = vpop.f32.mrf.mxu0
        %v3183 = vadd.f32 0.0, %v3182
        %v3184 = vpop.f32.mrf.mxu0
        %3185 = vmatprep.mubr.bf16.mxu0 0
        %3186 = vmatmul.mubr.bf16.gmra.mxu0 %v3046
        %v3187 = vpop.f32.mrf.mxu0
        %v3188 = vadd.f32 0.0, %v3187
        %v3189 = vpop.f32.mrf.mxu0
        %v3190 = vpop.f32.mrf.mxu0
        %v3191 = vadd.f32 0.0, %v3190
        %v3192 = vpop.f32.mrf.mxu0
        %3193 = vmatprep.mubr.bf16.mxu0 0
        %3194 = vmatmul.mubr.bf16.gmra.mxu0 %v3047
        %v3195 = vpop.f32.mrf.mxu0
        %v3196 = vadd.f32 0.0, %v3195
        %v3197 = vpop.f32.mrf.mxu0
        %v3198 = vpop.f32.mrf.mxu0
        %v3199 = vadd.f32 0.0, %v3198
        %v3200 = vpop.f32.mrf.mxu0
        %3201 = vmatprep.mubr.bf16.mxu0 0
        %3202 = vmatmul.mubr.bf16.gmra.mxu0 %v3048
        %v3203 = vpop.f32.mrf.mxu0
        %v3204 = vadd.f32 0.0, %v3203
        %v3205 = vpop.f32.mrf.mxu0
        %v3206 = vpop.f32.mrf.mxu0
        %v3207 = vadd.f32 0.0, %v3206
        %v3208 = vpop.f32.mrf.mxu0
        %3209 = vdwg.mxu0
        %v3210 = vadd.f32 %v3009, %v3148
        %v3211 = vadd.f32 %v3010, %v3151
        %v3212 = vadd.f32 %v3011, %v3156
        %v3213 = vadd.f32 %v3012, %v3159
        %v3214 = vadd.f32 %v3013, %v3164
        %v3215 = vadd.f32 %v3014, %v3167
        %v3216 = vadd.f32 %v3015, %v3172
        %v3217 = vadd.f32 %v3016, %v3175
        %v3218 = vadd.f32 %v3017, %v3180
        %v3219 = vadd.f32 %v3018, %v3183
        %v3220 = vadd.f32 %v3019, %v3188
        %v3221 = vadd.f32 %v3020, %v3191
        %v3222 = vadd.f32 %v3021, %v3196
        %v3223 = vadd.f32 %v3022, %v3199
        %v3224 = vadd.f32 %v3023, %v3204
        %v3225 = vadd.f32 %v3024, %v3207
        %v3226 = vld [vmem:[%s2823 + $0x2] sm:$0xff]
        %v3227 = vld [vmem:[%s2823 + $0xa] sm:$0xff]
        %v3228 = vld [vmem:[%s2823 + $0x1a] sm:$0xff]
        %v3229 = vld [vmem:[%s2823 + $0x22] sm:$0xff]
        %v3230 = vld [vmem:[%s2823 + $0x32] sm:$0xff]
        %v3231 = vld [vmem:[%s2823 + $0x3a] sm:$0xff]
        %v3232 = vld [vmem:[%s2823 + $0x4a] sm:$0xff]
        %v3233 = vld [vmem:[%s2823 + $0x52] sm:$0xff]
        %v3234 = vld [vmem:[%s2823 + $0x62] sm:$0xff]
        %v3235 = vld [vmem:[%s2823 + $0x6a] sm:$0xff]
        %v3236 = vld [vmem:[%s2823 + $0x7a] sm:$0xff]
        %v3237 = vld [vmem:[%s2823 + $0x82] sm:$0xff]
        %v3238 = vld [vmem:[%s2823 + $0x92] sm:$0xff]
        %v3239 = vld [vmem:[%s2823 + $0x9a] sm:$0xff]
        %v3240 = vld [vmem:[%s2823 + $0xaa] sm:$0xff]
        %v3241 = vld [vmem:[%s2823 + $0xb2] sm:$0xff]
        %v3242 = vpack.c.bf16 %v3227, %v3226
        %v3243 = vpack.c.bf16 %v3229, %v3228
        %v3244 = vpack.c.bf16 %v3231, %v3230
        %v3245 = vpack.c.bf16 %v3233, %v3232
        %v3246 = vpack.c.bf16 %v3235, %v3234
        %v3247 = vpack.c.bf16 %v3237, %v3236
        %v3248 = vpack.c.bf16 %v3239, %v3238
        %v3249 = vpack.c.bf16 %v3241, %v3240
        %v3250 = vld [vmem:[%s1363] sm:$0xf]
        %v3251 = vld [vmem:[%s1363 + $0x4] sm:$0xf]
        %v3252 = vld [vmem:[%s1363 + $0x8] sm:$0xf]
        %v3253 = vld [vmem:[%s1363 + $0xc] sm:$0xf]
        %v3254 = vld [vmem:[%s1363 + $0x10] sm:$0xf]
        %v3255 = vld [vmem:[%s1363 + $0x14] sm:$0xf]
        %v3256 = vld [vmem:[%s1363 + $0x18] sm:$0xf]
        %v3257 = vld [vmem:[%s1363 + $0x1c] sm:$0xf]
        %v3258 = vld [vmem:[%s1363 + $0x20] sm:$0xf]
        %v3259 = vld [vmem:[%s1363 + $0x24] sm:$0xf]
        %v3260 = vld [vmem:[%s1363 + $0x28] sm:$0xf]
        %v3261 = vld [vmem:[%s1363 + $0x2c] sm:$0xf]
        %v3262 = vld [vmem:[%s1363 + $0x30] sm:$0xf]
        %v3263 = vld [vmem:[%s1363 + $0x34] sm:$0xf]
        %v3264 = vld [vmem:[%s1363 + $0x38] sm:$0xf]
        %v3265 = vld [vmem:[%s1363 + $0x3c] sm:$0xf]
        %v3282 = vunpack.c.l.b16 %v3250
        %v3283 = vunpack.c.l.b16 %v3251
        %v3284 = vunpack.c.l.b16 %v3252
        %v3285 = vunpack.c.l.b16 %v3253
        %v3286 = vunpack.c.l.b16 %v3254
        %v3287 = vunpack.c.l.b16 %v3255
        %v3288 = vunpack.c.l.b16 %v3256
        %v3289 = vunpack.c.l.b16 %v3257
        %v3290 = vunpack.c.l.b16 %v3258
        %v3291 = vunpack.c.l.b16 %v3259
        %v3292 = vunpack.c.l.b16 %v3260
        %v3293 = vunpack.c.l.b16 %v3261
        %v3294 = vunpack.c.l.b16 %v3262
        %v3295 = vunpack.c.l.b16 %v3263
        %v3296 = vunpack.c.l.b16 %v3264
        %v3297 = vunpack.c.l.b16 %v3265
        %v3298 = vpack.c.b16 %v3283, %v3282
        %v3299 = vpack.c.b16 %v3285, %v3284
        %v3300 = vpack.c.b16 %v3287, %v3286
        %v3301 = vpack.c.b16 %v3289, %v3288
        %v3302 = vpack.c.b16 %v3291, %v3290
        %v3303 = vpack.c.b16 %v3293, %v3292
        %v3304 = vpack.c.b16 %v3295, %v3294
        %v3305 = vpack.c.b16 %v3297, %v3296
        %3314 = vmatprep.subr.bf16.mxu0 0
        %3315 = vmatpush1.bf16.msra.mxu0 %v3305
        %3316 = vmatprep.subr.bf16.mxu0 0
        %3317 = vmatpush1.bf16.msra.mxu0 %v3304
        %3318 = vmatprep.subr.bf16.mxu0 0
        %3319 = vmatpush1.bf16.msra.mxu0 %v3303
        %3320 = vmatprep.subr.bf16.mxu0 0
        %3321 = vmatpush1.bf16.msra.mxu0 %v3302
        %3322 = vmatprep.subr.bf16.mxu0 0
        %3323 = vmatpush1.bf16.msra.mxu0 %v3301
        %3324 = vmatprep.subr.bf16.mxu0 0
        %3325 = vmatpush1.bf16.msra.mxu0 %v3300
        %3326 = vmatprep.subr.bf16.mxu0 0
        %3327 = vmatpush1.bf16.msra.mxu0 %v3299
        %3328 = vmatprep.subr.bf16.mxu0 0
        %3329 = vmatpush1.bf16.msra.mxu0 %v3298
        %3330 = vmatprep.subr.bf16.mxu0 0
        %3331 = vmatpush2.bf16.msra.mxu0 0
        %3332 = vmatprep.subr.bf16.mxu0 0
        %3333 = vmatpush2.bf16.msra.mxu0 0
        %3334 = vmatprep.subr.bf16.mxu0 0
        %3335 = vmatpush2.bf16.msra.mxu0 0
        %3336 = vmatprep.subr.bf16.mxu0 0
        %3337 = vmatpush2.bf16.msra.mxu0 0
        %3338 = vmatprep.subr.bf16.mxu0 0
        %3339 = vmatpush2.bf16.msra.mxu0 0
        %3340 = vmatprep.subr.bf16.mxu0 0
        %3341 = vmatpush2.bf16.msra.mxu0 0
        %3342 = vmatprep.subr.bf16.mxu0 0
        %3343 = vmatpush2.bf16.msra.mxu0 0
        %3344 = vmatprep.subr.bf16.mxu0 0
        %3345 = vmatpush2.bf16.msra.mxu0 0
        %3346 = vmatprep.mubr.bf16.mxu0 0
        %3347 = vmatmul.mubr.bf16.gmra.mxu0 %v3242
        %v3348 = vpop.f32.mrf.mxu0
        %v3349 = vadd.f32 0.0, %v3348
        %v3350 = vpop.f32.mrf.mxu0
        %v3351 = vpop.f32.mrf.mxu0
        %v3352 = vadd.f32 0.0, %v3351
        %v3353 = vpop.f32.mrf.mxu0
        %3354 = vmatprep.mubr.bf16.mxu0 0
        %3355 = vmatmul.mubr.bf16.gmra.mxu0 %v3243
        %v3356 = vpop.f32.mrf.mxu0
        %v3357 = vadd.f32 0.0, %v3356
        %v3358 = vpop.f32.mrf.mxu0
        %v3359 = vpop.f32.mrf.mxu0
        %v3360 = vadd.f32 0.0, %v3359
        %v3361 = vpop.f32.mrf.mxu0
        %3362 = vmatprep.mubr.bf16.mxu0 0
        %3363 = vmatmul.mubr.bf16.gmra.mxu0 %v3244
        %v3364 = vpop.f32.mrf.mxu0
        %v3365 = vadd.f32 0.0, %v3364
        %v3366 = vpop.f32.mrf.mxu0
        %v3367 = vpop.f32.mrf.mxu0
        %v3368 = vadd.f32 0.0, %v3367
        %v3369 = vpop.f32.mrf.mxu0
        %3370 = vmatprep.mubr.bf16.mxu0 0
        %3371 = vmatmul.mubr.bf16.gmra.mxu0 %v3245
        %v3372 = vpop.f32.mrf.mxu0
        %v3373 = vadd.f32 0.0, %v3372
        %v3374 = vpop.f32.mrf.mxu0
        %v3375 = vpop.f32.mrf.mxu0
        %v3376 = vadd.f32 0.0, %v3375
        %v3377 = vpop.f32.mrf.mxu0
        %3378 = vmatprep.mubr.bf16.mxu0 0
        %3379 = vmatmul.mubr.bf16.gmra.mxu0 %v3246
        %v3380 = vpop.f32.mrf.mxu0
        %v3381 = vadd.f32 0.0, %v3380
        %v3382 = vpop.f32.mrf.mxu0
        %v3383 = vpop.f32.mrf.mxu0
        %v3384 = vadd.f32 0.0, %v3383
        %v3385 = vpop.f32.mrf.mxu0
        %3386 = vmatprep.mubr.bf16.mxu0 0
        %3387 = vmatmul.mubr.bf16.gmra.mxu0 %v3247
        %v3388 = vpop.f32.mrf.mxu0
        %v3389 = vadd.f32 0.0, %v3388
        %v3390 = vpop.f32.mrf.mxu0
        %v3391 = vpop.f32.mrf.mxu0
        %v3392 = vadd.f32 0.0, %v3391
        %v3393 = vpop.f32.mrf.mxu0
        %3394 = vmatprep.mubr.bf16.mxu0 0
        %3395 = vmatmul.mubr.bf16.gmra.mxu0 %v3248
        %v3396 = vpop.f32.mrf.mxu0
        %v3397 = vadd.f32 0.0, %v3396
        %v3398 = vpop.f32.mrf.mxu0
        %v3399 = vpop.f32.mrf.mxu0
        %v3400 = vadd.f32 0.0, %v3399
        %v3401 = vpop.f32.mrf.mxu0
        %3402 = vmatprep.mubr.bf16.mxu0 0
        %3403 = vmatmul.mubr.bf16.gmra.mxu0 %v3249
        %v3404 = vpop.f32.mrf.mxu0
        %v3405 = vadd.f32 0.0, %v3404
        %v3406 = vpop.f32.mrf.mxu0
        %v3407 = vpop.f32.mrf.mxu0
        %v3408 = vadd.f32 0.0, %v3407
        %v3409 = vpop.f32.mrf.mxu0
        %3410 = vdwg.mxu0
        %v3411 = vadd.f32 %v3210, %v3349
        %v3412 = vadd.f32 %v3211, %v3352
        %v3413 = vadd.f32 %v3212, %v3357
        %v3414 = vadd.f32 %v3213, %v3360
        %v3415 = vadd.f32 %v3214, %v3365
        %v3416 = vadd.f32 %v3215, %v3368
        %v3417 = vadd.f32 %v3216, %v3373
        %v3418 = vadd.f32 %v3217, %v3376
        %v3419 = vadd.f32 %v3218, %v3381
        %v3420 = vadd.f32 %v3219, %v3384
        %v3421 = vadd.f32 %v3220, %v3389
        %v3422 = vadd.f32 %v3221, %v3392
        %v3423 = vadd.f32 %v3222, %v3397
        %v3424 = vadd.f32 %v3223, %v3400
        %v3425 = vadd.f32 %v3224, %v3405
        %v3426 = vadd.f32 %v3225, %v3408
        %s3427 = scalar_lea.vmem [#allocation2], 240
        %v3428 = vld [vmem:[%s3427] sm:$0xff]
        %v3429 = vld [vmem:[%s3427 + $0x8] sm:$0xff]
        %v3430 = vld [vmem:[%s3427 + $0x18] sm:$0xff]
        %v3431 = vld [vmem:[%s3427 + $0x20] sm:$0xff]
        %v3432 = vld [vmem:[%s3427 + $0x30] sm:$0xff]
        %v3433 = vld [vmem:[%s3427 + $0x38] sm:$0xff]
        %v3434 = vld [vmem:[%s3427 + $0x48] sm:$0xff]
        %v3435 = vld [vmem:[%s3427 + $0x50] sm:$0xff]
        %v3436 = vld [vmem:[%s3427 + $0x60] sm:$0xff]
        %v3437 = vld [vmem:[%s3427 + $0x68] sm:$0xff]
        %v3438 = vld [vmem:[%s3427 + $0x78] sm:$0xff]
        %v3439 = vld [vmem:[%s3427 + $0x80] sm:$0xff]
        %v3440 = vld [vmem:[%s3427 + $0x90] sm:$0xff]
        %v3441 = vld [vmem:[%s3427 + $0x98] sm:$0xff]
        %v3442 = vld [vmem:[%s3427 + $0xa8] sm:$0xff]
        %v3443 = vld [vmem:[%s3427 + $0xb0] sm:$0xff]
        %v3444 = vpack.c.bf16 %v3429, %v3428
        %v3445 = vpack.c.bf16 %v3431, %v3430
        %v3446 = vpack.c.bf16 %v3433, %v3432
        %v3447 = vpack.c.bf16 %v3435, %v3434
        %v3448 = vpack.c.bf16 %v3437, %v3436
        %v3449 = vpack.c.bf16 %v3439, %v3438
        %v3450 = vpack.c.bf16 %v3441, %v3440
        %v3451 = vpack.c.bf16 %v3443, %v3442
        %v3452 = vld [vmem:[%s1566] sm:$0xf]
        %v3453 = vld [vmem:[%s1566 + $0x4] sm:$0xf]
        %v3454 = vld [vmem:[%s1566 + $0x8] sm:$0xf]
        %v3455 = vld [vmem:[%s1566 + $0xc] sm:$0xf]
        %v3456 = vld [vmem:[%s1566 + $0x10] sm:$0xf]
        %v3457 = vld [vmem:[%s1566 + $0x14] sm:$0xf]
        %v3458 = vld [vmem:[%s1566 + $0x18] sm:$0xf]
        %v3459 = vld [vmem:[%s1566 + $0x1c] sm:$0xf]
        %v3460 = vld [vmem:[%s1566 + $0x20] sm:$0xf]
        %v3461 = vld [vmem:[%s1566 + $0x24] sm:$0xf]
        %v3462 = vld [vmem:[%s1566 + $0x28] sm:$0xf]
        %v3463 = vld [vmem:[%s1566 + $0x2c] sm:$0xf]
        %v3464 = vld [vmem:[%s1566 + $0x30] sm:$0xf]
        %v3465 = vld [vmem:[%s1566 + $0x34] sm:$0xf]
        %v3466 = vld [vmem:[%s1566 + $0x38] sm:$0xf]
        %v3467 = vld [vmem:[%s1566 + $0x3c] sm:$0xf]
        %v3484 = vunpack.c.l.b16 %v3452
        %v3485 = vunpack.c.l.b16 %v3453
        %v3486 = vunpack.c.l.b16 %v3454
        %v3487 = vunpack.c.l.b16 %v3455
        %v3488 = vunpack.c.l.b16 %v3456
        %v3489 = vunpack.c.l.b16 %v3457
        %v3490 = vunpack.c.l.b16 %v3458
        %v3491 = vunpack.c.l.b16 %v3459
        %v3492 = vunpack.c.l.b16 %v3460
        %v3493 = vunpack.c.l.b16 %v3461
        %v3494 = vunpack.c.l.b16 %v3462
        %v3495 = vunpack.c.l.b16 %v3463
        %v3496 = vunpack.c.l.b16 %v3464
        %v3497 = vunpack.c.l.b16 %v3465
        %v3498 = vunpack.c.l.b16 %v3466
        %v3499 = vunpack.c.l.b16 %v3467
        %v3500 = vpack.c.b16 %v3485, %v3484
        %v3501 = vpack.c.b16 %v3487, %v3486
        %v3502 = vpack.c.b16 %v3489, %v3488
        %v3503 = vpack.c.b16 %v3491, %v3490
        %v3504 = vpack.c.b16 %v3493, %v3492
        %v3505 = vpack.c.b16 %v3495, %v3494
        %v3506 = vpack.c.b16 %v3497, %v3496
        %v3507 = vpack.c.b16 %v3499, %v3498
        %3516 = vmatprep.subr.bf16.mxu0 0
        %3517 = vmatpush1.bf16.msra.mxu0 %v3507
        %3518 = vmatprep.subr.bf16.mxu0 0
        %3519 = vmatpush1.bf16.msra.mxu0 %v3506
        %3520 = vmatprep.subr.bf16.mxu0 0
        %3521 = vmatpush1.bf16.msra.mxu0 %v3505
        %3522 = vmatprep.subr.bf16.mxu0 0
        %3523 = vmatpush1.bf16.msra.mxu0 %v3504
        %3524 = vmatprep.subr.bf16.mxu0 0
        %3525 = vmatpush1.bf16.msra.mxu0 %v3503
        %3526 = vmatprep.subr.bf16.mxu0 0
        %3527 = vmatpush1.bf16.msra.mxu0 %v3502
        %3528 = vmatprep.subr.bf16.mxu0 0
        %3529 = vmatpush1.bf16.msra.mxu0 %v3501
        %3530 = vmatprep.subr.bf16.mxu0 0
        %3531 = vmatpush1.bf16.msra.mxu0 %v3500
        %3532 = vmatprep.subr.bf16.mxu0 0
        %3533 = vmatpush2.bf16.msra.mxu0 0
        %3534 = vmatprep.subr.bf16.mxu0 0
        %3535 = vmatpush2.bf16.msra.mxu0 0
        %3536 = vmatprep.subr.bf16.mxu0 0
        %3537 = vmatpush2.bf16.msra.mxu0 0
        %3538 = vmatprep.subr.bf16.mxu0 0
        %3539 = vmatpush2.bf16.msra.mxu0 0
        %3540 = vmatprep.subr.bf16.mxu0 0
        %3541 = vmatpush2.bf16.msra.mxu0 0
        %3542 = vmatprep.subr.bf16.mxu0 0
        %3543 = vmatpush2.bf16.msra.mxu0 0
        %3544 = vmatprep.subr.bf16.mxu0 0
        %3545 = vmatpush2.bf16.msra.mxu0 0
        %3546 = vmatprep.subr.bf16.mxu0 0
        %3547 = vmatpush2.bf16.msra.mxu0 0
        %3548 = vmatprep.mubr.bf16.mxu0 0
        %3549 = vmatmul.mubr.bf16.gmra.mxu0 %v3444
        %v3550 = vpop.f32.mrf.mxu0
        %v3551 = vadd.f32 0.0, %v3550
        %v3552 = vpop.f32.mrf.mxu0
        %v3553 = vpop.f32.mrf.mxu0
        %v3554 = vadd.f32 0.0, %v3553
        %v3555 = vpop.f32.mrf.mxu0
        %3556 = vmatprep.mubr.bf16.mxu0 0
        %3557 = vmatmul.mubr.bf16.gmra.mxu0 %v3445
        %v3558 = vpop.f32.mrf.mxu0
        %v3559 = vadd.f32 0.0, %v3558
        %v3560 = vpop.f32.mrf.mxu0
        %v3561 = vpop.f32.mrf.mxu0
        %v3562 = vadd.f32 0.0, %v3561
        %v3563 = vpop.f32.mrf.mxu0
        %3564 = vmatprep.mubr.bf16.mxu0 0
        %3565 = vmatmul.mubr.bf16.gmra.mxu0 %v3446
        %v3566 = vpop.f32.mrf.mxu0
        %v3567 = vadd.f32 0.0, %v3566
        %v3568 = vpop.f32.mrf.mxu0
        %v3569 = vpop.f32.mrf.mxu0
        %v3570 = vadd.f32 0.0, %v3569
        %v3571 = vpop.f32.mrf.mxu0
        %3572 = vmatprep.mubr.bf16.mxu0 0
        %3573 = vmatmul.mubr.bf16.gmra.mxu0 %v3447
        %v3574 = vpop.f32.mrf.mxu0
        %v3575 = vadd.f32 0.0, %v3574
        %v3576 = vpop.f32.mrf.mxu0
        %v3577 = vpop.f32.mrf.mxu0
        %v3578 = vadd.f32 0.0, %v3577
        %v3579 = vpop.f32.mrf.mxu0
        %3580 = vmatprep.mubr.bf16.mxu0 0
        %3581 = vmatmul.mubr.bf16.gmra.mxu0 %v3448
        %v3582 = vpop.f32.mrf.mxu0
        %v3583 = vadd.f32 0.0, %v3582
        %v3584 = vpop.f32.mrf.mxu0
        %v3585 = vpop.f32.mrf.mxu0
        %v3586 = vadd.f32 0.0, %v3585
        %v3587 = vpop.f32.mrf.mxu0
        %3588 = vmatprep.mubr.bf16.mxu0 0
        %3589 = vmatmul.mubr.bf16.gmra.mxu0 %v3449
        %v3590 = vpop.f32.mrf.mxu0
        %v3591 = vadd.f32 0.0, %v3590
        %v3592 = vpop.f32.mrf.mxu0
        %v3593 = vpop.f32.mrf.mxu0
        %v3594 = vadd.f32 0.0, %v3593
        %v3595 = vpop.f32.mrf.mxu0
        %3596 = vmatprep.mubr.bf16.mxu0 0
        %3597 = vmatmul.mubr.bf16.gmra.mxu0 %v3450
        %v3598 = vpop.f32.mrf.mxu0
        %v3599 = vadd.f32 0.0, %v3598
        %v3600 = vpop.f32.mrf.mxu0
        %v3601 = vpop.f32.mrf.mxu0
        %v3602 = vadd.f32 0.0, %v3601
        %v3603 = vpop.f32.mrf.mxu0
        %3604 = vmatprep.mubr.bf16.mxu0 0
        %3605 = vmatmul.mubr.bf16.gmra.mxu0 %v3451
        %v3606 = vpop.f32.mrf.mxu0
        %v3607 = vadd.f32 0.0, %v3606
        %v3608 = vpop.f32.mrf.mxu0
        %v3609 = vpop.f32.mrf.mxu0
        %v3610 = vadd.f32 0.0, %v3609
        %v3611 = vpop.f32.mrf.mxu0
        %3612 = vdwg.mxu0
        %v3613 = vadd.f32 %v3411, %v3551
        %v3614 = vadd.f32 %v3412, %v3554
        %v3615 = vadd.f32 %v3413, %v3559
        %v3616 = vadd.f32 %v3414, %v3562
        %v3617 = vadd.f32 %v3415, %v3567
        %v3618 = vadd.f32 %v3416, %v3570
        %v3619 = vadd.f32 %v3417, %v3575
        %v3620 = vadd.f32 %v3418, %v3578
        %v3621 = vadd.f32 %v3419, %v3583
        %v3622 = vadd.f32 %v3420, %v3586
        %v3623 = vadd.f32 %v3421, %v3591
        %v3624 = vadd.f32 %v3422, %v3594
        %v3625 = vadd.f32 %v3423, %v3599
        %v3626 = vadd.f32 %v3424, %v3602
        %v3627 = vadd.f32 %v3425, %v3607
        %v3628 = vadd.f32 %v3426, %v3610
        %v3629 = vld [vmem:[%s3427 + $0x1] sm:$0xff]
        %v3630 = vld [vmem:[%s3427 + $0x9] sm:$0xff]
        %v3631 = vld [vmem:[%s3427 + $0x19] sm:$0xff]
        %v3632 = vld [vmem:[%s3427 + $0x21] sm:$0xff]
        %v3633 = vld [vmem:[%s3427 + $0x31] sm:$0xff]
        %v3634 = vld [vmem:[%s3427 + $0x39] sm:$0xff]
        %v3635 = vld [vmem:[%s3427 + $0x49] sm:$0xff]
        %v3636 = vld [vmem:[%s3427 + $0x51] sm:$0xff]
        %v3637 = vld [vmem:[%s3427 + $0x61] sm:$0xff]
        %v3638 = vld [vmem:[%s3427 + $0x69] sm:$0xff]
        %v3639 = vld [vmem:[%s3427 + $0x79] sm:$0xff]
        %v3640 = vld [vmem:[%s3427 + $0x81] sm:$0xff]
        %v3641 = vld [vmem:[%s3427 + $0x91] sm:$0xff]
        %v3642 = vld [vmem:[%s3427 + $0x99] sm:$0xff]
        %v3643 = vld [vmem:[%s3427 + $0xa9] sm:$0xff]
        %v3644 = vld [vmem:[%s3427 + $0xb1] sm:$0xff]
        %v3645 = vpack.c.bf16 %v3630, %v3629
        %v3646 = vpack.c.bf16 %v3632, %v3631
        %v3647 = vpack.c.bf16 %v3634, %v3633
        %v3648 = vpack.c.bf16 %v3636, %v3635
        %v3649 = vpack.c.bf16 %v3638, %v3637
        %v3650 = vpack.c.bf16 %v3640, %v3639
        %v3651 = vpack.c.bf16 %v3642, %v3641
        %v3652 = vpack.c.bf16 %v3644, %v3643
        %v3653 = vld [vmem:[%s1768] sm:$0xf]
        %v3654 = vld [vmem:[%s1768 + $0x4] sm:$0xf]
        %v3655 = vld [vmem:[%s1768 + $0x8] sm:$0xf]
        %v3656 = vld [vmem:[%s1768 + $0xc] sm:$0xf]
        %v3657 = vld [vmem:[%s1768 + $0x10] sm:$0xf]
        %v3658 = vld [vmem:[%s1768 + $0x14] sm:$0xf]
        %v3659 = vld [vmem:[%s1768 + $0x18] sm:$0xf]
        %v3660 = vld [vmem:[%s1768 + $0x1c] sm:$0xf]
        %v3661 = vld [vmem:[%s1768 + $0x20] sm:$0xf]
        %v3662 = vld [vmem:[%s1768 + $0x24] sm:$0xf]
        %v3663 = vld [vmem:[%s1768 + $0x28] sm:$0xf]
        %v3664 = vld [vmem:[%s1768 + $0x2c] sm:$0xf]
        %v3665 = vld [vmem:[%s1768 + $0x30] sm:$0xf]
        %v3666 = vld [vmem:[%s1768 + $0x34] sm:$0xf]
        %v3667 = vld [vmem:[%s1768 + $0x38] sm:$0xf]
        %v3668 = vld [vmem:[%s1768 + $0x3c] sm:$0xf]
        %v3685 = vunpack.c.l.b16 %v3653
        %v3686 = vunpack.c.l.b16 %v3654
        %v3687 = vunpack.c.l.b16 %v3655
        %v3688 = vunpack.c.l.b16 %v3656
        %v3689 = vunpack.c.l.b16 %v3657
        %v3690 = vunpack.c.l.b16 %v3658
        %v3691 = vunpack.c.l.b16 %v3659
        %v3692 = vunpack.c.l.b16 %v3660
        %v3693 = vunpack.c.l.b16 %v3661
        %v3694 = vunpack.c.l.b16 %v3662
        %v3695 = vunpack.c.l.b16 %v3663
        %v3696 = vunpack.c.l.b16 %v3664
        %v3697 = vunpack.c.l.b16 %v3665
        %v3698 = vunpack.c.l.b16 %v3666
        %v3699 = vunpack.c.l.b16 %v3667
        %v3700 = vunpack.c.l.b16 %v3668
        %v3701 = vpack.c.b16 %v3686, %v3685
        %v3702 = vpack.c.b16 %v3688, %v3687
        %v3703 = vpack.c.b16 %v3690, %v3689
        %v3704 = vpack.c.b16 %v3692, %v3691
        %v3705 = vpack.c.b16 %v3694, %v3693
        %v3706 = vpack.c.b16 %v3696, %v3695
        %v3707 = vpack.c.b16 %v3698, %v3697
        %v3708 = vpack.c.b16 %v3700, %v3699
        %3717 = vmatprep.subr.bf16.mxu0 0
        %3718 = vmatpush1.bf16.msra.mxu0 %v3708
        %3719 = vmatprep.subr.bf16.mxu0 0
        %3720 = vmatpush1.bf16.msra.mxu0 %v3707
        %3721 = vmatprep.subr.bf16.mxu0 0
        %3722 = vmatpush1.bf16.msra.mxu0 %v3706
        %3723 = vmatprep.subr.bf16.mxu0 0
        %3724 = vmatpush1.bf16.msra.mxu0 %v3705
        %3725 = vmatprep.subr.bf16.mxu0 0
        %3726 = vmatpush1.bf16.msra.mxu0 %v3704
        %3727 = vmatprep.subr.bf16.mxu0 0
        %3728 = vmatpush1.bf16.msra.mxu0 %v3703
        %3729 = vmatprep.subr.bf16.mxu0 0
        %3730 = vmatpush1.bf16.msra.mxu0 %v3702
        %3731 = vmatprep.subr.bf16.mxu0 0
        %3732 = vmatpush1.bf16.msra.mxu0 %v3701
        %3733 = vmatprep.subr.bf16.mxu0 0
        %3734 = vmatpush2.bf16.msra.mxu0 0
        %3735 = vmatprep.subr.bf16.mxu0 0
        %3736 = vmatpush2.bf16.msra.mxu0 0
        %3737 = vmatprep.subr.bf16.mxu0 0
        %3738 = vmatpush2.bf16.msra.mxu0 0
        %3739 = vmatprep.subr.bf16.mxu0 0
        %3740 = vmatpush2.bf16.msra.mxu0 0
        %3741 = vmatprep.subr.bf16.mxu0 0
        %3742 = vmatpush2.bf16.msra.mxu0 0
        %3743 = vmatprep.subr.bf16.mxu0 0
        %3744 = vmatpush2.bf16.msra.mxu0 0
        %3745 = vmatprep.subr.bf16.mxu0 0
        %3746 = vmatpush2.bf16.msra.mxu0 0
        %3747 = vmatprep.subr.bf16.mxu0 0
        %3748 = vmatpush2.bf16.msra.mxu0 0
        %3749 = vmatprep.mubr.bf16.mxu0 0
        %3750 = vmatmul.mubr.bf16.gmra.mxu0 %v3645
        %v3751 = vpop.f32.mrf.mxu0
        %v3752 = vadd.f32 0.0, %v3751
        %v3753 = vpop.f32.mrf.mxu0
        %v3754 = vpop.f32.mrf.mxu0
        %v3755 = vadd.f32 0.0, %v3754
        %v3756 = vpop.f32.mrf.mxu0
        %3757 = vmatprep.mubr.bf16.mxu0 0
        %3758 = vmatmul.mubr.bf16.gmra.mxu0 %v3646
        %v3759 = vpop.f32.mrf.mxu0
        %v3760 = vadd.f32 0.0, %v3759
        %v3761 = vpop.f32.mrf.mxu0
        %v3762 = vpop.f32.mrf.mxu0
        %v3763 = vadd.f32 0.0, %v3762
        %v3764 = vpop.f32.mrf.mxu0
        %3765 = vmatprep.mubr.bf16.mxu0 0
        %3766 = vmatmul.mubr.bf16.gmra.mxu0 %v3647
        %v3767 = vpop.f32.mrf.mxu0
        %v3768 = vadd.f32 0.0, %v3767
        %v3769 = vpop.f32.mrf.mxu0
        %v3770 = vpop.f32.mrf.mxu0
        %v3771 = vadd.f32 0.0, %v3770
        %v3772 = vpop.f32.mrf.mxu0
        %3773 = vmatprep.mubr.bf16.mxu0 0
        %3774 = vmatmul.mubr.bf16.gmra.mxu0 %v3648
        %v3775 = vpop.f32.mrf.mxu0
        %v3776 = vadd.f32 0.0, %v3775
        %v3777 = vpop.f32.mrf.mxu0
        %v3778 = vpop.f32.mrf.mxu0
        %v3779 = vadd.f32 0.0, %v3778
        %v3780 = vpop.f32.mrf.mxu0
        %3781 = vmatprep.mubr.bf16.mxu0 0
        %3782 = vmatmul.mubr.bf16.gmra.mxu0 %v3649
        %v3783 = vpop.f32.mrf.mxu0
        %v3784 = vadd.f32 0.0, %v3783
        %v3785 = vpop.f32.mrf.mxu0
        %v3786 = vpop.f32.mrf.mxu0
        %v3787 = vadd.f32 0.0, %v3786
        %v3788 = vpop.f32.mrf.mxu0
        %3789 = vmatprep.mubr.bf16.mxu0 0
        %3790 = vmatmul.mubr.bf16.gmra.mxu0 %v3650
        %v3791 = vpop.f32.mrf.mxu0
        %v3792 = vadd.f32 0.0, %v3791
        %v3793 = vpop.f32.mrf.mxu0
        %v3794 = vpop.f32.mrf.mxu0
        %v3795 = vadd.f32 0.0, %v3794
        %v3796 = vpop.f32.mrf.mxu0
        %3797 = vmatprep.mubr.bf16.mxu0 0
        %3798 = vmatmul.mubr.bf16.gmra.mxu0 %v3651
        %v3799 = vpop.f32.mrf.mxu0
        %v3800 = vadd.f32 0.0, %v3799
        %v3801 = vpop.f32.mrf.mxu0
        %v3802 = vpop.f32.mrf.mxu0
        %v3803 = vadd.f32 0.0, %v3802
        %v3804 = vpop.f32.mrf.mxu0
        %3805 = vmatprep.mubr.bf16.mxu0 0
        %3806 = vmatmul.mubr.bf16.gmra.mxu0 %v3652
        %v3807 = vpop.f32.mrf.mxu0
        %v3808 = vadd.f32 0.0, %v3807
        %v3809 = vpop.f32.mrf.mxu0
        %v3810 = vpop.f32.mrf.mxu0
        %v3811 = vadd.f32 0.0, %v3810
        %v3812 = vpop.f32.mrf.mxu0
        %3813 = vdwg.mxu0
        %v3814 = vadd.f32 %v3613, %v3752
        %v3815 = vadd.f32 %v3614, %v3755
        %v3816 = vadd.f32 %v3615, %v3760
        %v3817 = vadd.f32 %v3616, %v3763
        %v3818 = vadd.f32 %v3617, %v3768
        %v3819 = vadd.f32 %v3618, %v3771
        %v3820 = vadd.f32 %v3619, %v3776
        %v3821 = vadd.f32 %v3620, %v3779
        %v3822 = vadd.f32 %v3621, %v3784
        %v3823 = vadd.f32 %v3622, %v3787
        %v3824 = vadd.f32 %v3623, %v3792
        %v3825 = vadd.f32 %v3624, %v3795
        %v3826 = vadd.f32 %v3625, %v3800
        %v3827 = vadd.f32 %v3626, %v3803
        %v3828 = vadd.f32 %v3627, %v3808
        %v3829 = vadd.f32 %v3628, %v3811
        %v3830 = vld [vmem:[%s3427 + $0x2] sm:$0xff]
        %v3831 = vld [vmem:[%s3427 + $0xa] sm:$0xff]
        %v3832 = vld [vmem:[%s3427 + $0x1a] sm:$0xff]
        %v3833 = vld [vmem:[%s3427 + $0x22] sm:$0xff]
        %v3834 = vld [vmem:[%s3427 + $0x32] sm:$0xff]
        %v3835 = vld [vmem:[%s3427 + $0x3a] sm:$0xff]
        %v3836 = vld [vmem:[%s3427 + $0x4a] sm:$0xff]
        %v3837 = vld [vmem:[%s3427 + $0x52] sm:$0xff]
        %v3838 = vld [vmem:[%s3427 + $0x62] sm:$0xff]
        %v3839 = vld [vmem:[%s3427 + $0x6a] sm:$0xff]
        %v3840 = vld [vmem:[%s3427 + $0x7a] sm:$0xff]
        %v3841 = vld [vmem:[%s3427 + $0x82] sm:$0xff]
        %v3842 = vld [vmem:[%s3427 + $0x92] sm:$0xff]
        %v3843 = vld [vmem:[%s3427 + $0x9a] sm:$0xff]
        %v3844 = vld [vmem:[%s3427 + $0xaa] sm:$0xff]
        %v3845 = vld [vmem:[%s3427 + $0xb2] sm:$0xff]
        %v3846 = vpack.c.bf16 %v3831, %v3830
        %v3847 = vpack.c.bf16 %v3833, %v3832
        %v3848 = vpack.c.bf16 %v3835, %v3834
        %v3849 = vpack.c.bf16 %v3837, %v3836
        %v3850 = vpack.c.bf16 %v3839, %v3838
        %v3851 = vpack.c.bf16 %v3841, %v3840
        %v3852 = vpack.c.bf16 %v3843, %v3842
        %v3853 = vpack.c.bf16 %v3845, %v3844
        %v3854 = vld [vmem:[%s1970] sm:$0xf]
        %v3855 = vld [vmem:[%s1970 + $0x4] sm:$0xf]
        %v3856 = vld [vmem:[%s1970 + $0x8] sm:$0xf]
        %v3857 = vld [vmem:[%s1970 + $0xc] sm:$0xf]
        %v3858 = vld [vmem:[%s1970 + $0x10] sm:$0xf]
        %v3859 = vld [vmem:[%s1970 + $0x14] sm:$0xf]
        %v3860 = vld [vmem:[%s1970 + $0x18] sm:$0xf]
        %v3861 = vld [vmem:[%s1970 + $0x1c] sm:$0xf]
        %v3862 = vld [vmem:[%s1970 + $0x20] sm:$0xf]
        %v3863 = vld [vmem:[%s1970 + $0x24] sm:$0xf]
        %v3864 = vld [vmem:[%s1970 + $0x28] sm:$0xf]
        %v3865 = vld [vmem:[%s1970 + $0x2c] sm:$0xf]
        %v3866 = vld [vmem:[%s1970 + $0x30] sm:$0xf]
        %v3867 = vld [vmem:[%s1970 + $0x34] sm:$0xf]
        %v3868 = vld [vmem:[%s1970 + $0x38] sm:$0xf]
        %v3869 = vld [vmem:[%s1970 + $0x3c] sm:$0xf]
        %v3886 = vunpack.c.l.b16 %v3854
        %v3887 = vunpack.c.l.b16 %v3855
        %v3888 = vunpack.c.l.b16 %v3856
        %v3889 = vunpack.c.l.b16 %v3857
        %v3890 = vunpack.c.l.b16 %v3858
        %v3891 = vunpack.c.l.b16 %v3859
        %v3892 = vunpack.c.l.b16 %v3860
        %v3893 = vunpack.c.l.b16 %v3861
        %v3894 = vunpack.c.l.b16 %v3862
        %v3895 = vunpack.c.l.b16 %v3863
        %v3896 = vunpack.c.l.b16 %v3864
        %v3897 = vunpack.c.l.b16 %v3865
        %v3898 = vunpack.c.l.b16 %v3866
        %v3899 = vunpack.c.l.b16 %v3867
        %v3900 = vunpack.c.l.b16 %v3868
        %v3901 = vunpack.c.l.b16 %v3869
        %v3902 = vpack.c.b16 %v3887, %v3886
        %v3903 = vpack.c.b16 %v3889, %v3888
        %v3904 = vpack.c.b16 %v3891, %v3890
        %v3905 = vpack.c.b16 %v3893, %v3892
        %v3906 = vpack.c.b16 %v3895, %v3894
        %v3907 = vpack.c.b16 %v3897, %v3896
        %v3908 = vpack.c.b16 %v3899, %v3898
        %v3909 = vpack.c.b16 %v3901, %v3900
        %3918 = vmatprep.subr.bf16.mxu0 0
        %3919 = vmatpush1.bf16.msra.mxu0 %v3909
        %3920 = vmatprep.subr.bf16.mxu0 0
        %3921 = vmatpush1.bf16.msra.mxu0 %v3908
        %3922 = vmatprep.subr.bf16.mxu0 0
        %3923 = vmatpush1.bf16.msra.mxu0 %v3907
        %3924 = vmatprep.subr.bf16.mxu0 0
        %3925 = vmatpush1.bf16.msra.mxu0 %v3906
        %3926 = vmatprep.subr.bf16.mxu0 0
        %3927 = vmatpush1.bf16.msra.mxu0 %v3905
        %3928 = vmatprep.subr.bf16.mxu0 0
        %3929 = vmatpush1.bf16.msra.mxu0 %v3904
        %3930 = vmatprep.subr.bf16.mxu0 0
        %3931 = vmatpush1.bf16.msra.mxu0 %v3903
        %3932 = vmatprep.subr.bf16.mxu0 0
        %3933 = vmatpush1.bf16.msra.mxu0 %v3902
        %3934 = vmatprep.subr.bf16.mxu0 0
        %3935 = vmatpush2.bf16.msra.mxu0 0
        %3936 = vmatprep.subr.bf16.mxu0 0
        %3937 = vmatpush2.bf16.msra.mxu0 0
        %3938 = vmatprep.subr.bf16.mxu0 0
        %3939 = vmatpush2.bf16.msra.mxu0 0
        %3940 = vmatprep.subr.bf16.mxu0 0
        %3941 = vmatpush2.bf16.msra.mxu0 0
        %3942 = vmatprep.subr.bf16.mxu0 0
        %3943 = vmatpush2.bf16.msra.mxu0 0
        %3944 = vmatprep.subr.bf16.mxu0 0
        %3945 = vmatpush2.bf16.msra.mxu0 0
        %3946 = vmatprep.subr.bf16.mxu0 0
        %3947 = vmatpush2.bf16.msra.mxu0 0
        %3948 = vmatprep.subr.bf16.mxu0 0
        %3949 = vmatpush2.bf16.msra.mxu0 0
        %3950 = vmatprep.mubr.bf16.mxu0 0
        %3951 = vmatmul.mubr.bf16.gmra.mxu0 %v3846
        %v3952 = vpop.f32.mrf.mxu0
        %v3953 = vadd.f32 0.0, %v3952
        %v3954 = vpop.f32.mrf.mxu0
        %v3955 = vpop.f32.mrf.mxu0
        %v3956 = vadd.f32 0.0, %v3955
        %v3957 = vpop.f32.mrf.mxu0
        %3958 = vmatprep.mubr.bf16.mxu0 0
        %3959 = vmatmul.mubr.bf16.gmra.mxu0 %v3847
        %v3960 = vpop.f32.mrf.mxu0
        %v3961 = vadd.f32 0.0, %v3960
        %v3962 = vpop.f32.mrf.mxu0
        %v3963 = vpop.f32.mrf.mxu0
        %v3964 = vadd.f32 0.0, %v3963
        %v3965 = vpop.f32.mrf.mxu0
        %3966 = vmatprep.mubr.bf16.mxu0 0
        %3967 = vmatmul.mubr.bf16.gmra.mxu0 %v3848
        %v3968 = vpop.f32.mrf.mxu0
        %v3969 = vadd.f32 0.0, %v3968
        %v3970 = vpop.f32.mrf.mxu0
        %v3971 = vpop.f32.mrf.mxu0
        %v3972 = vadd.f32 0.0, %v3971
        %v3973 = vpop.f32.mrf.mxu0
        %3974 = vmatprep.mubr.bf16.mxu0 0
        %3975 = vmatmul.mubr.bf16.gmra.mxu0 %v3849
        %v3976 = vpop.f32.mrf.mxu0
        %v3977 = vadd.f32 0.0, %v3976
        %v3978 = vpop.f32.mrf.mxu0
        %v3979 = vpop.f32.mrf.mxu0
        %v3980 = vadd.f32 0.0, %v3979
        %v3981 = vpop.f32.mrf.mxu0
        %3982 = vmatprep.mubr.bf16.mxu0 0
        %3983 = vmatmul.mubr.bf16.gmra.mxu0 %v3850
        %v3984 = vpop.f32.mrf.mxu0
        %v3985 = vadd.f32 0.0, %v3984
        %v3986 = vpop.f32.mrf.mxu0
        %v3987 = vpop.f32.mrf.mxu0
        %v3988 = vadd.f32 0.0, %v3987
        %v3989 = vpop.f32.mrf.mxu0
        %3990 = vmatprep.mubr.bf16.mxu0 0
        %3991 = vmatmul.mubr.bf16.gmra.mxu0 %v3851
        %v3992 = vpop.f32.mrf.mxu0
        %v3993 = vadd.f32 0.0, %v3992
        %v3994 = vpop.f32.mrf.mxu0
        %v3995 = vpop.f32.mrf.mxu0
        %v3996 = vadd.f32 0.0, %v3995
        %v3997 = vpop.f32.mrf.mxu0
        %3998 = vmatprep.mubr.bf16.mxu0 0
        %3999 = vmatmul.mubr.bf16.gmra.mxu0 %v3852
        %v4000 = vpop.f32.mrf.mxu0
        %v4001 = vadd.f32 0.0, %v4000
        %v4002 = vpop.f32.mrf.mxu0
        %v4003 = vpop.f32.mrf.mxu0
        %v4004 = vadd.f32 0.0, %v4003
        %v4005 = vpop.f32.mrf.mxu0
        %4006 = vmatprep.mubr.bf16.mxu0 0
        %4007 = vmatmul.mubr.bf16.gmra.mxu0 %v3853
        %v4008 = vpop.f32.mrf.mxu0
        %v4009 = vadd.f32 0.0, %v4008
        %v4010 = vpop.f32.mrf.mxu0
        %v4011 = vpop.f32.mrf.mxu0
        %v4012 = vadd.f32 0.0, %v4011
        %v4013 = vpop.f32.mrf.mxu0
        %4014 = vdwg.mxu0
        %v4015 = vadd.f32 %v3814, %v3953
        %v4016 = vadd.f32 %v3815, %v3956
        %v4017 = vadd.f32 %v3816, %v3961
        %v4018 = vadd.f32 %v3817, %v3964
        %v4019 = vadd.f32 %v3818, %v3969
        %v4020 = vadd.f32 %v3819, %v3972
        %v4021 = vadd.f32 %v3820, %v3977
        %v4022 = vadd.f32 %v3821, %v3980
        %v4023 = vadd.f32 %v3822, %v3985
        %v4024 = vadd.f32 %v3823, %v3988
        %v4025 = vadd.f32 %v3824, %v3993
        %v4026 = vadd.f32 %v3825, %v3996
        %v4027 = vadd.f32 %v3826, %v4001
        %v4028 = vadd.f32 %v3827, %v4004
        %v4029 = vadd.f32 %v3828, %v4009
        %v4030 = vadd.f32 %v3829, %v4012
        %v4031 = vld [vmem:[%s2] sm:$0x1]
        %v4033 = vlaneseq
        %v4034 = vshrl.u32 %v4033, 7
        %v4035 = vsub.s32 0, %v4034
        %v4036 = vrot.slane %v4031, %v4035
        %v4038 = vadd.f32 %v4015, %v4036
        %v4039 = vadd.f32 %v4016, %v4036
        %v4040 = vadd.f32 %v4017, %v4036
        %v4041 = vadd.f32 %v4018, %v4036
        %v4042 = vadd.f32 %v4019, %v4036
        %v4043 = vadd.f32 %v4020, %v4036
        %v4044 = vadd.f32 %v4021, %v4036
        %v4045 = vadd.f32 %v4022, %v4036
        %v4046 = vadd.f32 %v4023, %v4036
        %v4047 = vadd.f32 %v4024, %v4036
        %v4048 = vadd.f32 %v4025, %v4036
        %v4049 = vadd.f32 %v4026, %v4036
        %v4050 = vadd.f32 %v4027, %v4036
        %v4051 = vadd.f32 %v4028, %v4036
        %v4052 = vadd.f32 %v4029, %v4036
        %v4053 = vadd.f32 %v4030, %v4036
        %v4054 = vmax.f32 %v4038, 0.0
        %v4055 = vmax.f32 %v4039, 0.0
        %v4056 = vmax.f32 %v4040, 0.0
        %v4057 = vmax.f32 %v4041, 0.0
        %v4058 = vmax.f32 %v4042, 0.0
        %v4059 = vmax.f32 %v4043, 0.0
        %v4060 = vmax.f32 %v4044, 0.0
        %v4061 = vmax.f32 %v4045, 0.0
        %v4062 = vmax.f32 %v4046, 0.0
        %v4063 = vmax.f32 %v4047, 0.0
        %v4064 = vmax.f32 %v4048, 0.0
        %v4065 = vmax.f32 %v4049, 0.0
        %v4066 = vmax.f32 %v4050, 0.0
        %v4067 = vmax.f32 %v4051, 0.0
        %v4068 = vmax.f32 %v4052, 0.0
        %v4069 = vmax.f32 %v4053, 0.0
        %s4070 = scalar_lea.vmem %s234, 128 [#allocation8]
        %4071 = vst [vmem:[%s4070] sm:$0xff] %v4054
        %4072 = vst [vmem:[%s4070 + $0x8] sm:$0xff] %v4055
        %4073 = vst [vmem:[%s4070 + $0x10] sm:$0xff] %v4056
        %4074 = vst [vmem:[%s4070 + $0x18] sm:$0xff] %v4057
        %4075 = vst [vmem:[%s4070 + $0x20] sm:$0xff] %v4058
        %4076 = vst [vmem:[%s4070 + $0x28] sm:$0xff] %v4059
        %4077 = vst [vmem:[%s4070 + $0x30] sm:$0xff] %v4060
        %4078 = vst [vmem:[%s4070 + $0x38] sm:$0xff] %v4061
        %4079 = vst [vmem:[%s4070 + $0x40] sm:$0xff] %v4062
        %4080 = vst [vmem:[%s4070 + $0x48] sm:$0xff] %v4063
        %4081 = vst [vmem:[%s4070 + $0x50] sm:$0xff] %v4064
        %4082 = vst [vmem:[%s4070 + $0x58] sm:$0xff] %v4065
        %4083 = vst [vmem:[%s4070 + $0x60] sm:$0xff] %v4066
        %4084 = vst [vmem:[%s4070 + $0x68] sm:$0xff] %v4067
        %4085 = vst [vmem:[%s4070 + $0x70] sm:$0xff] %v4068
        %4086 = vst [vmem:[%s4070 + $0x78] sm:$0xff] %v4069
        %4087 = vxpose.xlu0.b32.start [1/16] %v4054, 128
        %4088 = vxpose.xlu0.b32.cont [2/16] %v4055, 128
        %4089 = vxpose.xlu0.b32.cont [3/16] %v4056, 128
        %4090 = vxpose.xlu0.b32.cont [4/16] %v4057, 128
        %4091 = vxpose.xlu0.b32.cont [5/16] %v4058, 128
        %4092 = vxpose.xlu0.b32.cont [6/16] %v4059, 128
        %4093 = vxpose.xlu0.b32.cont [7/16] %v4060, 128
        %4094 = vxpose.xlu0.b32.cont [8/16] %v4061, 128
        %4095 = vxpose.xlu0.b32.cont [9/16] %v4062, 128
        %4096 = vxpose.xlu0.b32.cont [10/16] %v4063, 128
        %4097 = vxpose.xlu0.b32.cont [11/16] %v4064, 128
        %4098 = vxpose.xlu0.b32.cont [12/16] %v4065, 128
        %4099 = vxpose.xlu0.b32.cont [13/16] %v4066, 128
        %4100 = vxpose.xlu0.b32.cont [14/16] %v4067, 128
        %4101 = vxpose.xlu0.b32.cont [15/16] %v4068, 128
        %4102 = vxpose.xlu0.b32.end [16/16] %v4069, 128
        %v4103 = vpop.trf.xlu0
        %v4104 = vpop.trf.xlu0
        %v4105 = vpop.trf.xlu0
        %v4106 = vpop.trf.xlu0
        %v4107 = vpop.trf.xlu0
        %v4108 = vpop.trf.xlu0
        %v4109 = vpop.trf.xlu0
        %v4110 = vpop.trf.xlu0
        %v4111 = vpop.trf.xlu0
        %v4112 = vpop.trf.xlu0
        %v4113 = vpop.trf.xlu0
        %v4114 = vpop.trf.xlu0
        %v4115 = vpop.trf.xlu0
        %v4116 = vpop.trf.xlu0
        %v4117 = vpop.trf.xlu0
        %v4118 = vpop.trf.xlu0
        %v4119 = vpack.c.bf16 %v4104, %v4103
        %v4120 = vpack.c.bf16 %v4106, %v4105
        %v4121 = vpack.c.bf16 %v4108, %v4107
        %v4122 = vpack.c.bf16 %v4110, %v4109
        %v4123 = vpack.c.bf16 %v4112, %v4111
        %v4124 = vpack.c.bf16 %v4114, %v4113
        %v4125 = vpack.c.bf16 %v4116, %v4115
        %v4126 = vpack.c.bf16 %v4118, %v4117
        %v4127 = vpack.c.bf16 %v4055, %v4054
        %v4128 = vpack.c.bf16 %v4057, %v4056
        %v4129 = vpack.c.bf16 %v4059, %v4058
        %v4130 = vpack.c.bf16 %v4061, %v4060
        %v4131 = vpack.c.bf16 %v4063, %v4062
        %v4132 = vpack.c.bf16 %v4065, %v4064
        %v4133 = vpack.c.bf16 %v4067, %v4066
        %v4134 = vpack.c.bf16 %v4069, %v4068
        %4135 = vmatprep.subr.bf16.mxu0 0
        %4136 = vmatpush1.bf16.msra.mxu0 %v4134
        %4137 = vmatprep.subr.bf16.mxu0 0
        %4138 = vmatpush1.bf16.msra.mxu0 %v4133
        %4139 = vmatprep.subr.bf16.mxu0 0
        %4140 = vmatpush1.bf16.msra.mxu0 %v4132
        %4141 = vmatprep.subr.bf16.mxu0 0
        %4142 = vmatpush1.bf16.msra.mxu0 %v4131
        %4143 = vmatprep.subr.bf16.mxu0 0
        %4144 = vmatpush1.bf16.msra.mxu0 %v4130
        %4145 = vmatprep.subr.bf16.mxu0 0
        %4146 = vmatpush1.bf16.msra.mxu0 %v4129
        %4147 = vmatprep.subr.bf16.mxu0 0
        %4148 = vmatpush1.bf16.msra.mxu0 %v4128
        %4149 = vmatprep.subr.bf16.mxu0 0
        %4150 = vmatpush1.bf16.msra.mxu0 %v4127
        %4151 = vmatprep.subr.bf16.mxu0 0
        %4152 = vmatpush2.bf16.msra.mxu0 0
        %4153 = vmatprep.subr.bf16.mxu0 0
        %4154 = vmatpush2.bf16.msra.mxu0 0
        %4155 = vmatprep.subr.bf16.mxu0 0
        %4156 = vmatpush2.bf16.msra.mxu0 0
        %4157 = vmatprep.subr.bf16.mxu0 0
        %4158 = vmatpush2.bf16.msra.mxu0 0
        %4159 = vmatprep.subr.bf16.mxu0 0
        %4160 = vmatpush2.bf16.msra.mxu0 0
        %4161 = vmatprep.subr.bf16.mxu0 0
        %4162 = vmatpush2.bf16.msra.mxu0 0
        %4163 = vmatprep.subr.bf16.mxu0 0
        %4164 = vmatpush2.bf16.msra.mxu0 0
        %4165 = vmatprep.subr.bf16.mxu0 0
        %4166 = vmatpush2.bf16.msra.mxu0 0
        %4167 = vmatprep.mubr.bf16.mxu0 0
        %4168 = vmatmul.mubr.bf16.gmra.mxu0 %v4119
        %v4169 = vpop.f32.mrf.mxu0
        %v4170 = vadd.f32 0.0, %v4169
        %v4171 = vpop.f32.mrf.mxu0
        %v4172 = vpop.f32.mrf.mxu0
        %v4173 = vadd.f32 0.0, %v4172
        %v4174 = vpop.f32.mrf.mxu0
        %4175 = vmatprep.mubr.bf16.mxu0 0
        %4176 = vmatmul.mubr.bf16.gmra.mxu0 %v4120
        %v4177 = vpop.f32.mrf.mxu0
        %v4178 = vadd.f32 0.0, %v4177
        %v4179 = vpop.f32.mrf.mxu0
        %v4180 = vpop.f32.mrf.mxu0
        %v4181 = vadd.f32 0.0, %v4180
        %v4182 = vpop.f32.mrf.mxu0
        %4183 = vmatprep.mubr.bf16.mxu0 0
        %4184 = vmatmul.mubr.bf16.gmra.mxu0 %v4121
        %v4185 = vpop.f32.mrf.mxu0
        %v4186 = vadd.f32 0.0, %v4185
        %v4187 = vpop.f32.mrf.mxu0
        %v4188 = vpop.f32.mrf.mxu0
        %v4189 = vadd.f32 0.0, %v4188
        %v4190 = vpop.f32.mrf.mxu0
        %4191 = vmatprep.mubr.bf16.mxu0 0
        %4192 = vmatmul.mubr.bf16.gmra.mxu0 %v4122
        %v4193 = vpop.f32.mrf.mxu0
        %v4194 = vadd.f32 0.0, %v4193
        %v4195 = vpop.f32.mrf.mxu0
        %v4196 = vpop.f32.mrf.mxu0
        %v4197 = vadd.f32 0.0, %v4196
        %v4198 = vpop.f32.mrf.mxu0
        %4199 = vmatprep.mubr.bf16.mxu0 0
        %4200 = vmatmul.mubr.bf16.gmra.mxu0 %v4123
        %v4201 = vpop.f32.mrf.mxu0
        %v4202 = vadd.f32 0.0, %v4201
        %v4203 = vpop.f32.mrf.mxu0
        %v4204 = vpop.f32.mrf.mxu0
        %v4205 = vadd.f32 0.0, %v4204
        %v4206 = vpop.f32.mrf.mxu0
        %4207 = vmatprep.mubr.bf16.mxu0 0
        %4208 = vmatmul.mubr.bf16.gmra.mxu0 %v4124
        %v4209 = vpop.f32.mrf.mxu0
        %v4210 = vadd.f32 0.0, %v4209
        %v4211 = vpop.f32.mrf.mxu0
        %v4212 = vpop.f32.mrf.mxu0
        %v4213 = vadd.f32 0.0, %v4212
        %v4214 = vpop.f32.mrf.mxu0
        %4215 = vmatprep.mubr.bf16.mxu0 0
        %4216 = vmatmul.mubr.bf16.gmra.mxu0 %v4125
        %v4217 = vpop.f32.mrf.mxu0
        %v4218 = vadd.f32 0.0, %v4217
        %v4219 = vpop.f32.mrf.mxu0
        %v4220 = vpop.f32.mrf.mxu0
        %v4221 = vadd.f32 0.0, %v4220
        %v4222 = vpop.f32.mrf.mxu0
        %4223 = vmatprep.mubr.bf16.mxu0 0
        %4224 = vmatmul.mubr.bf16.gmra.mxu0 %v4126
        %v4225 = vpop.f32.mrf.mxu0
        %v4226 = vadd.f32 0.0, %v4225
        %v4227 = vpop.f32.mrf.mxu0
        %v4228 = vpop.f32.mrf.mxu0
        %v4229 = vadd.f32 0.0, %v4228
        %v4230 = vpop.f32.mrf.mxu0
        %4231 = vdwg.mxu0
        %4232 = vmatprep.subr.bf16.mxu0 0
        %4233 = vmatpush1.bf16.msra.mxu0 %v2250
        %4234 = vmatprep.subr.bf16.mxu0 0
        %4235 = vmatpush1.bf16.msra.mxu0 %v2249
        %4236 = vmatprep.subr.bf16.mxu0 0
        %4237 = vmatpush1.bf16.msra.mxu0 %v2248
        %4238 = vmatprep.subr.bf16.mxu0 0
        %4239 = vmatpush1.bf16.msra.mxu0 %v2247
        %4240 = vmatprep.subr.bf16.mxu0 0
        %4241 = vmatpush1.bf16.msra.mxu0 %v2246
        %4242 = vmatprep.subr.bf16.mxu0 0
        %4243 = vmatpush1.bf16.msra.mxu0 %v2245
        %4244 = vmatprep.subr.bf16.mxu0 0
        %4245 = vmatpush1.bf16.msra.mxu0 %v2244
        %4246 = vmatprep.subr.bf16.mxu0 0
        %4247 = vmatpush1.bf16.msra.mxu0 %v2243
        %4248 = vmatprep.subr.bf16.mxu0 0
        %4249 = vmatpush2.bf16.msra.mxu0 0
        %4250 = vmatprep.subr.bf16.mxu0 0
        %4251 = vmatpush2.bf16.msra.mxu0 0
        %4252 = vmatprep.subr.bf16.mxu0 0
        %4253 = vmatpush2.bf16.msra.mxu0 0
        %4254 = vmatprep.subr.bf16.mxu0 0
        %4255 = vmatpush2.bf16.msra.mxu0 0
        %4256 = vmatprep.subr.bf16.mxu0 0
        %4257 = vmatpush2.bf16.msra.mxu0 0
        %4258 = vmatprep.subr.bf16.mxu0 0
        %4259 = vmatpush2.bf16.msra.mxu0 0
        %4260 = vmatprep.subr.bf16.mxu0 0
        %4261 = vmatpush2.bf16.msra.mxu0 0
        %4262 = vmatprep.subr.bf16.mxu0 0
        %4263 = vmatpush2.bf16.msra.mxu0 0
        %4264 = vmatprep.mubr.bf16.mxu0 0
        %4265 = vmatmul.mubr.bf16.gmra.mxu0 %v2235
        %v4266 = vpop.f32.mrf.mxu0
        %v4267 = vadd.f32 %v4170, %v4266
        %v4268 = vpop.f32.mrf.mxu0
        %v4269 = vpop.f32.mrf.mxu0
        %v4270 = vadd.f32 %v4173, %v4269
        %v4271 = vpop.f32.mrf.mxu0
        %4272 = vmatprep.mubr.bf16.mxu0 0
        %4273 = vmatmul.mubr.bf16.gmra.mxu0 %v2236
        %v4274 = vpop.f32.mrf.mxu0
        %v4275 = vadd.f32 %v4178, %v4274
        %v4276 = vpop.f32.mrf.mxu0
        %v4277 = vpop.f32.mrf.mxu0
        %v4278 = vadd.f32 %v4181, %v4277
        %v4279 = vpop.f32.mrf.mxu0
        %4280 = vmatprep.mubr.bf16.mxu0 0
        %4281 = vmatmul.mubr.bf16.gmra.mxu0 %v2237
        %v4282 = vpop.f32.mrf.mxu0
        %v4283 = vadd.f32 %v4186, %v4282
        %v4284 = vpop.f32.mrf.mxu0
        %v4285 = vpop.f32.mrf.mxu0
        %v4286 = vadd.f32 %v4189, %v4285
        %v4287 = vpop.f32.mrf.mxu0
        %4288 = vmatprep.mubr.bf16.mxu0 0
        %4289 = vmatmul.mubr.bf16.gmra.mxu0 %v2238
        %v4290 = vpop.f32.mrf.mxu0
        %v4291 = vadd.f32 %v4194, %v4290
        %v4292 = vpop.f32.mrf.mxu0
        %v4293 = vpop.f32.mrf.mxu0
        %v4294 = vadd.f32 %v4197, %v4293
        %v4295 = vpop.f32.mrf.mxu0
        %4296 = vmatprep.mubr.bf16.mxu0 0
        %4297 = vmatmul.mubr.bf16.gmra.mxu0 %v2239
        %v4298 = vpop.f32.mrf.mxu0
        %v4299 = vadd.f32 %v4202, %v4298
        %v4300 = vpop.f32.mrf.mxu0
        %v4301 = vpop.f32.mrf.mxu0
        %v4302 = vadd.f32 %v4205, %v4301
        %v4303 = vpop.f32.mrf.mxu0
        %4304 = vmatprep.mubr.bf16.mxu0 0
        %4305 = vmatmul.mubr.bf16.gmra.mxu0 %v2240
        %v4306 = vpop.f32.mrf.mxu0
        %v4307 = vadd.f32 %v4210, %v4306
        %v4308 = vpop.f32.mrf.mxu0
        %v4309 = vpop.f32.mrf.mxu0
        %v4310 = vadd.f32 %v4213, %v4309
        %v4311 = vpop.f32.mrf.mxu0
        %4312 = vmatprep.mubr.bf16.mxu0 0
        %4313 = vmatmul.mubr.bf16.gmra.mxu0 %v2241
        %v4314 = vpop.f32.mrf.mxu0
        %v4315 = vadd.f32 %v4218, %v4314
        %v4316 = vpop.f32.mrf.mxu0
        %v4317 = vpop.f32.mrf.mxu0
        %v4318 = vadd.f32 %v4221, %v4317
        %v4319 = vpop.f32.mrf.mxu0
        %4320 = vmatprep.mubr.bf16.mxu0 0
        %4321 = vmatmul.mubr.bf16.gmra.mxu0 %v2242
        %v4322 = vpop.f32.mrf.mxu0
        %v4323 = vadd.f32 %v4226, %v4322
        %v4324 = vpop.f32.mrf.mxu0
        %v4325 = vpop.f32.mrf.mxu0
        %v4326 = vadd.f32 %v4229, %v4325
        %v4327 = vpop.f32.mrf.mxu0
        %4328 = vdwg.mxu0
        %v4329 = vmul.f32 %v4267, 0.00048828125
        %v4330 = vmul.f32 %v4270, 0.00048828125
        %v4331 = vmul.f32 %v4275, 0.00048828125
        %v4332 = vmul.f32 %v4278, 0.00048828125
        %v4333 = vmul.f32 %v4283, 0.00048828125
        %v4334 = vmul.f32 %v4286, 0.00048828125
        %v4335 = vmul.f32 %v4291, 0.00048828125
        %v4336 = vmul.f32 %v4294, 0.00048828125
        %v4337 = vmul.f32 %v4299, 0.00048828125
        %v4338 = vmul.f32 %v4302, 0.00048828125
        %v4339 = vmul.f32 %v4307, 0.00048828125
        %v4340 = vmul.f32 %v4310, 0.00048828125
        %v4341 = vmul.f32 %v4315, 0.00048828125
        %v4342 = vmul.f32 %v4318, 0.00048828125
        %v4343 = vmul.f32 %v4323, 0.00048828125
        %v4344 = vmul.f32 %v4326, 0.00048828125
        %4345 = vst [vmem:[%s241] sm:$0xff] %v4329
        %4346 = vst [vmem:[%s241 + $0x8] sm:$0xff] %v4330
        %4347 = vst [vmem:[%s241 + $0x10] sm:$0xff] %v4331
        %4348 = vst [vmem:[%s241 + $0x18] sm:$0xff] %v4332
        %4349 = vst [vmem:[%s241 + $0x20] sm:$0xff] %v4333
        %4350 = vst [vmem:[%s241 + $0x28] sm:$0xff] %v4334
        %4351 = vst [vmem:[%s241 + $0x30] sm:$0xff] %v4335
        %4352 = vst [vmem:[%s241 + $0x38] sm:$0xff] %v4336
        %4353 = vst [vmem:[%s241 + $0x40] sm:$0xff] %v4337
        %4354 = vst [vmem:[%s241 + $0x48] sm:$0xff] %v4338
        %4355 = vst [vmem:[%s241 + $0x50] sm:$0xff] %v4339
        %4356 = vst [vmem:[%s241 + $0x58] sm:$0xff] %v4340
        %4357 = vst [vmem:[%s241 + $0x60] sm:$0xff] %v4341
        %4358 = vst [vmem:[%s241 + $0x68] sm:$0xff] %v4342
        %4359 = vst [vmem:[%s241 + $0x70] sm:$0xff] %v4343
        %4360 = vst [vmem:[%s241 + $0x78] sm:$0xff] %v4344
        %s4361 = sand.u32 %s102, 1
        %s4362 = scalar_lea.sflag [#allocation5], %s4361
        %s4363 = sand.u32 %s102, 1
        %s4364 = smul.addr %s4363, 256
        %s4365 = scalar_lea.vmem [#allocation8], %s4364
        %s4366 = sand.u32 %s128, 1
        %s4367 = scalar_lea.sflag [#allocation10], %s4366
        %s4368 = sand.u32 %s128, 1
        %s4369 = smul.addr %s4368, 128
        %s4370 = scalar_lea.vmem [#allocation9], %s4369
        // Predicated region
        $region41: #{tpu_custom_call.1} parent=31 // pred_check
          %p4371 = pneg %p112
        $region42: #{tpu_custom_call.1} parent=31 // pred_check_branch
          %4373 = sbr.rel (%p4371) target = $region44
        $region43: #{tpu_custom_call.1} parent=31 // pred_region
          %s4375 = ssub.s32 4096, 4096
          %4376 = vsyncadd %s4362, %s4375
          %s4377 = smul.addr %s26, 32
          %s4378 = smul.addr %s4377, 128
          %s4379 = scalar_lea.hbm %s3, %s4378
          %s4380 = sshll.u32 %s4365, 4
          %s4381 = int_to_ptr.vmem [resolvable:$true] %s4380
          %4386 = dma.vmem_to_hbm [thread:$0]  %s4381, 4096, %s4379, %s4362, 128, 128, 8
        $region44: #{tpu_custom_call.1} parent=31 // pred_fallthru
          _
        // Predicated region
        $region45: #{tpu_custom_call.1} parent=31 // pred_check
          %p4387 = pneg %p138
        $region46: #{tpu_custom_call.1} parent=31 // pred_check_branch
          %4389 = sbr.rel (%p4387) target = $region48
        $region47: #{tpu_custom_call.1} parent=31 // pred_region
          %s4391 = ssub.s32 2048, 2048
          %4392 = vsyncadd %s4367, %s4391
          %s4393 = smul.addr %s26, 16
          %s4394 = smul.addr %s4393, 128
          %s4395 = scalar_lea.hbm %s4, %s4394
          %s4396 = sshll.u32 %s4370, 4
          %s4397 = int_to_ptr.vmem [resolvable:$true] %s4396
          %4402 = dma.vmem_to_hbm [thread:$0]  %s4397, 2048, %s4395, %s4367, 128, 128, 8
        $region48: #{tpu_custom_call.1} parent=31 // pred_fallthru
          _
      $region32: #{tpu_custom_call.1} parent=5 // pred_fallthru
        _
      %p4403 = scmp.le.s32.totalorder 2, %s21
      // Predicated region
      $region49: #{tpu_custom_call.1} parent=5 // pred_check
        %p4404 = pneg %p4403
      $region50: #{tpu_custom_call.1} parent=5 // pred_check_branch
        %4406 = sbr.rel (%p4404) target = $region52
      $region51: #{tpu_custom_call.1} parent=5 // pred_region
        %s4407 = ssub.s32 %s21, 2
        // Predicated region
        $region53: #{tpu_custom_call.1} parent=51 // pred_check
          %p4408 = pneg %p118
        $region54: #{tpu_custom_call.1} parent=51 // pred_check_branch
          %4410 = sbr.rel (%p4408) target = $region56
        $region55: #{tpu_custom_call.1} parent=51 // pred_region
          %s4411 = sand.u32 %s103, 1
          %s4412 = scalar_lea.sflag [#allocation5], %s4411
          %s4413 = sand.u32 %s103, 1
          %s4414 = smul.addr %s4413, 256
          %s4415 = scalar_lea.vmem [#allocation8], %s4414
          %4416 = dma.done %s4412, 4096
        $region56: #{tpu_custom_call.1} parent=51 // pred_fallthru
          _
        // Predicated region
        $region57: #{tpu_custom_call.1} parent=51 // pred_check
          %p4417 = pneg %p144
        $region58: #{tpu_custom_call.1} parent=51 // pred_check_branch
          %4419 = sbr.rel (%p4417) target = $region60
        $region59: #{tpu_custom_call.1} parent=51 // pred_region
          %s4420 = sand.u32 %s129, 1
          %s4421 = scalar_lea.sflag [#allocation10], %s4420
          %s4422 = sand.u32 %s129, 1
          %s4423 = smul.addr %s4422, 128
          %s4424 = scalar_lea.vmem [#allocation9], %s4423
          %4425 = dma.done %s4421, 2048
        $region60: #{tpu_custom_call.1} parent=51 // pred_fallthru
          _
      $region52: #{tpu_custom_call.1} parent=5 // pred_fallthru
        _
    $region6: #{tpu_custom_call.1} parent=1 // loop_footer
      %s25 = sadd.s32 1, %s21
    $region7: #{tpu_custom_call.1} parent=1 // loop_footer_branch
      %20 = sbr.rel target = $region3
    $region8: #{tpu_custom_call.1} parent=1 // loop_exit
      _
    %4426 = vsyncpa [#allocation4], 1
    %s4427 = scalar_lea.sflag [#allocation4], 1
    %4428 = vsyncpa %s4427, 1
    %4429 = vsyncpa [#allocation7], 1
    %4430 = vsyncpa [#allocation5], 1
    %s4431 = scalar_lea.sflag [#allocation5], 1
    %4432 = vsyncpa %s4431, 1
    %4433 = vsyncpa [#allocation10], 1
    %s4434 = scalar_lea.sflag [#allocation10], 1
    %4435 = vsyncpa %s4434, 1

</llo_original>
